<compile_context>
chip_gen: v7x
topology: tpu7x:2x2x1
jax: 0.10.0
libtpu: 0.0.40
codegen_flags: <defaults>
</compile_context>

<pallas_src>
import math
import functools

import jax
import jax.numpy as jnp
from jax.experimental import pallas as pl
from jax.experimental.pallas import tpu as pltpu


_SEG_ORDER = ('g1p', 'g1c', 'sc1', 'sc2', 'sc3', 'g2p', 'g2c')


# ---------------------------------------------------------------------------
# Fused Pallas kernel: whole GhostBottleneckv2 forward for a tile of images.
# In-kernel layout: (channels, H*W)  -- channels on sublanes, flattened spatial
# on the 128-lane axis (H*W must be a multiple of 128).
# ---------------------------------------------------------------------------

def _ghost_bottleneck_kernel(x_ref, wb_ref, o_ref, *, H, W, layout, bias_col):
    HW = H * W
    w_bits = (W - 1).bit_length()            # W is a power of two
    b_tile = x_ref.shape[0]

    # ---- per-grid-step precompute, shared by all b_tile images -------------
    lane = jax.lax.broadcasted_iota(jnp.int32, (1, HW), 1)
    w_idx = jnp.bitwise_and(lane, W - 1)     # lane %  W
    h_idx = jnp.right_shift(lane, w_bits)    # lane // W
    w_even = jnp.bitwise_and(w_idx, 1) == 0
    h_even = jnp.bitwise_and(h_idx, 1) == 0

    offs_3x3 = [(dy, dx) for dy in (-1, 0, 1) for dx in (-1, 0, 1)]
    offs_dfc_h = [(0, 2 * dx) for dx in (-2, -1, 0, 1, 2)]   # dw (1,5), pooled-space
    offs_dfc_v = [(2 * dy, 0) for dy in (-2, -1, 0, 1, 2)]   # dw (5,1), pooled-space

    def make_mask(dy, dx):
        conds = []
        if dx > 0:
            conds.append(w_idx < W - dx)
        if dx < 0:
            conds.append(w_idx >= -dx)
        if dy > 0:
            conds.append(h_idx < H - dy)
        if dy < 0:
            conds.append(h_idx >= -dy)
        valid = conds[0]
        for c in conds[1:]:
            valid = jnp.logical_and(valid, c)
        return valid.astype(jnp.float32)

    masks = {}
    for off in sorted(set(offs_3x3 + offs_dfc_h + offs_dfc_v)):
        if off != (0, 0):
            masks[off] = make_mask(*off)     # (1, HW) f32, computed once

    # Packed (BN-folded) weights & biases, sliced once per grid step.
    def seg(name):
        r0, rows, cols = layout[name]
        w = wb_ref[r0:r0 + rows, 0:cols]                     # (Cout, Cin/taps)
        b = wb_ref[r0:r0 + rows, bias_col:bias_col + 1]      # (Cout, 1)
        return w, b

    g1p_w, g1p_b = seg('g1p')
    g1c_w, g1c_b = seg('g1c')
    sc1_w, sc1_b = seg('sc1')
    sc2_w, sc2_b = seg('sc2')
    sc3_w, sc3_b = seg('sc3')
    g2p_w, g2p_b = seg('g2p')
    g2c_w, g2c_b = seg('g2c')

    def shifted(v, dy, dx):
        """v sampled at spatial offset (dy, dx) with zero 'same' padding.

        Spatial dims are flattened on the lane axis, so the shift is a lane
        roll (XLU, co-issues with VPU FMAs) times a precomputed validity mask.
        """
        d = dy * W + dx
        out = v if d == 0 else pltpu.roll(v, (-d) % HW, axis=1)
        m = masks.get((dy, dx))
        return out if m is None else out * m

    def pointwise(v, w, b, relu):
        """1x1 conv + folded BN.

        Cin < 32 (this toy config): Cin unrolled VPU rank-1 updates — an 8/16
        deep contraction would use <1% of the MXU and only add push/pop latency.
        Cin >= 32 (production widths): MXU contraction.
        """
        cout, cin = w.shape
        if cin >= 32:
            acc = jnp.dot(w, v, preferred_element_type=jnp.float32)
        else:
            acc = jnp.zeros((cout, v.shape[1]), jnp.float32)
            for ci in range(cin):
                acc = acc + w[:, ci:ci + 1] * v[ci:ci + 1, :]
        acc = acc + b
        return jnp.maximum(acc, 0.0) if relu else acc

    def depthwise(v, w, b, offsets, relu):
        """Depthwise conv + folded BN: per-tap XLU roll + VPU FMA."""
        acc = jnp.zeros(v.shape, jnp.float32)
        for t, (dy, dx) in enumerate(offsets):
            acc = acc + w[:, t:t + 1] * shifted(v, dy, dx)
        acc = acc + b
        return jnp.maximum(acc, 0.0) if relu else acc

    def process_one(bi, carry):
        x = x_ref[bi]                        # (in_chs, HW) f32, lane-dense

        # ---- DFC (attention) branch of ghost1 ------------------------------
        # Carried in a "block-constant" full-resolution form: each value equals
        # the pooled-branch value of its 2x2 block.  Pooled-space convs become
        # full-res convs with offsets scaled by 2, and the final nearest-2x
        # upsample of the gate becomes a no-op.
        right = pltpu.roll(x, HW - 1, axis=1)            # x[h, w + 1]
        left = pltpu.roll(x, 1, axis=1)                  # x[h, w - 1]
        row_sum = x + jnp.where(w_even, right, left)     # horizontal 2-sum per 2x2
        below = pltpu.roll(row_sum, HW - W, axis=1)      # row_sum[h + 1, w]
        above = pltpu.roll(row_sum, W, axis=1)           # row_sum[h - 1, w]
        pooled = 0.25 * (row_sum + jnp.where(h_even, below, above))  # avg_pool2d(2,2)

        r = pointwise(pooled, sc1_w, sc1_b, relu=False)
        r = depthwise(r, sc2_w, sc2_b, offs_dfc_h, relu=False)   # dw (1,5)
        r = depthwise(r, sc3_w, sc3_b, offs_dfc_v, relu=False)   # dw (5,1)
        # sigmoid via tanh: divide goes to the EUP path, co-issues with VPU work.
        gate = 0.5 * (jnp.tanh(0.5 * r) + 1.0)           # already upsampled

        # ---- ghost1 main branch (primary 1x1 + cheap 3x3 dw), ReLU ---------
        x1 = pointwise(x, g1p_w, g1p_b, relu=True)
        x2 = depthwise(x1, g1c_w, g1c_b, offs_3x3, relu=True)
        hidden = jnp.concatenate([x1, x2], axis=0) * gate        # (mid_chs, HW)

        # stride == 1 -> no conv_dw/bn_dw; se_ratio == 0 -> no SE; identity
        # shortcut.
        # TODO(synk): conv_dw (stride>1), SeModule (se_ratio>0) and the
        # conv-shortcut branches are config-gated off for this block and not
        # implemented.

        # ---- ghost2 (original mode, no ReLU) --------------------------------
        y1 = pointwise(hidden, g2p_w, g2p_b, relu=False)
        y2 = depthwise(y1, g2c_w, g2c_b, offs_3x3, relu=False)

        # Single full-width (8-sublane aligned) store; residual reuses the
        # already-loaded x instead of re-reading x_ref.
        o_ref[bi] = jnp.concatenate([y1, y2], axis=0) + x
        return carry

    jax.lax.fori_loop(0, b_tile, process_one, 0, unroll=True)


# ---------------------------------------------------------------------------
# Parameter packing: all conv weights + folded-BN biases into ONE f32 buffer.
# Row-blocks are padded to 8-sublane boundaries; bias sits in the last column.
# ---------------------------------------------------------------------------

def _pack_params(p):
    col_max = max(p[f'{n}_w'].shape[1] for n in _SEG_ORDER)
    blocks = []
    layout = {}
    r0 = 0
    for n in _SEG_ORDER:
        w = p[f'{n}_w'].astype(jnp.float32)
        b = p[f'{n}_b'].astype(jnp.float32).reshape(-1, 1)
        rows, cols = w.shape
        blk = jnp.concatenate(
            [w, jnp.zeros((rows, col_max - cols), jnp.float32), b], axis=1)
        pad_r = (-rows) % 8
        if pad_r:
            blk = jnp.concatenate(
                [blk, jnp.zeros((pad_r, col_max + 1), jnp.float32)], axis=0)
        blocks.append(blk)
        layout[n] = (r0, rows, cols)
        r0 += rows + pad_r
    wb = jnp.concatenate(blocks, axis=0)     # (rows_total, col_max + 1)
    return wb, layout, col_max


def _pick_b_tile(N, in_chs, out_chs, HW, vmem_budget_bytes=8 << 20):
    """Largest batch tile whose double-buffered in+out blocks fit the budget,
    keeping the grid length >= 2 so both v7x TensorCores get work."""
    per_img = (in_chs + out_chs) * HW * 4 * 2   # f32, double-buffered in + out
    best = 1
    for bt in range(1, N + 1):
        if N % bt:
            continue
        if per_img * bt > vmem_budget_bytes:
            continue
        if N // bt < 2 and N >= 2:
            continue
        best = bt
    return best


# ---------------------------------------------------------------------------
# Wrapper: one pallas_call, grid over batch tiles of B_TILE images.
# ---------------------------------------------------------------------------

def ghost_bottleneck_v2_forward(x_nchw, p, b_tile=None):
    """Fused GhostBottleneckv2 forward.  x_nchw: (N, in_chs, H, W) float32."""
    N, in_chs, H, W = x_nchw.shape
    HW = H * W
    init1, new1 = p['g1p_w'].shape[0], p['g1c_w'].shape[0]
    init2, new2 = p['g2p_w'].shape[0], p['g2c_w'].shape[0]
    mid_chs = init1 + new1
    out_chs = init2 + new2
    # Fused-kernel assumptions for this config: ghost concat widths equal
    # mid/out channels exactly (ratio=2) and the shortcut is the identity.
    assert p['sc1_w'].shape[0] == mid_chs and p['g2p_w'].shape[1] == mid_chs
    assert in_chs == out_chs
    assert H % 2 == 0 and W % 2 == 0
    assert (H & (H - 1)) == 0 and (W & (W - 1)) == 0   # powers of two
    assert HW % 128 == 0                               # lane-dense spatial axis
    # TODO(synk): support real G-GhostRegNet sizes (56/28/14/7) by padding W to a
    # lane-friendly stride and adding spatial (lane-axis) tiling with a halo.

    if b_tile is None:
        b_tile = _pick_b_tile(N, in_chs, out_chs, HW)
    assert N % b_tile == 0

    # TODO(synk): bf16 HBM I/O for v6e/v7x (upcast to f32 inside the kernel).
    x_flat = x_nchw.reshape(N, in_chs, HW).astype(jnp.float32)
    wb, layout, bias_col = _pack_params(p)

    y_flat = pl.pallas_call(
        functools.partial(_ghost_bottleneck_kernel, H=H, W=W,
                          layout=layout, bias_col=bias_col),
        out_shape=jax.ShapeDtypeStruct((N, out_chs, HW), jnp.float32),
        grid=(N // b_tile,),
        in_specs=[pl.BlockSpec((b_tile, in_chs, HW), lambda i: (i, 0, 0)),
                  pl.BlockSpec(wb.shape, lambda i: (0, 0))],   # 1 param DMA
        out_specs=pl.BlockSpec((b_tile, out_chs, HW), lambda i: (i, 0, 0)),
        compiler_params=pltpu.CompilerParams(
            dimension_semantics=("parallel",)),        # shard batch across TCs
    )(x_flat, wb)

    return y_flat.reshape(N, out_chs, H, W)


# ---------------------------------------------------------------------------
# Deterministic synthetic parameters (BatchNorm pre-folded into the convs).
# ---------------------------------------------------------------------------

def _bn_fold(key, c):
    k1, k2, k3, k4 = jax.random.split(key, 4)
    gamma = jax.random.uniform(k1, (c,), jnp.float32, 0.5, 1.5)
    beta = 0.1 * jax.random.normal(k2, (c,), jnp.float32)
    mean = 0.1 * jax.random.normal(k3, (c,), jnp.float32)
    var = jax.random.uniform(k4, (c,), jnp.float32, 0.5, 1.5)
    scale = gamma / jnp.sqrt(var + 1e-5)
    bias = beta - mean * scale
    return scale, bias


def init_params(key, in_chs, mid_chs, out_chs):
    ratio = 2
    init1 = math.ceil(mid_chs / ratio)     # ghost1 primary out channels
    new1 = init1 * (ratio - 1)             # ghost1 cheap out channels
    init2 = math.ceil(out_chs / ratio)     # ghost2 primary out channels
    new2 = init2 * (ratio - 1)             # ghost2 cheap out channels
    ks = jax.random.split(key, 14)

    def pw(kw, kb, cin, cout):             # 1x1 conv + BN -> (Cout, Cin), (Cout,)
        w = jax.random.normal(kw, (cout, cin), jnp.float32) / math.sqrt(cin)
        s, b = _bn_fold(kb, cout)
        return w * s[:, None], b

    def dw(kw, kb, taps, c):               # depthwise conv + BN -> (C, taps), (C,)
        w = 0.3 * jax.random.normal(kw, (c, taps), jnp.float32)
        s, b = _bn_fold(kb, c)
        return w * s[:, None], b

    p = {}
    p['g1p_w'], p['g1p_b'] = pw(ks[0], ks[1], in_chs, init1)
    p['g1c_w'], p['g1c_b'] = dw(ks[2], ks[3], 9, new1)
    p['sc1_w'], p['sc1_b'] = pw(ks[4], ks[5], in_chs, mid_chs)
    p['sc2_w'], p['sc2_b'] = dw(ks[6], ks[7], 5, mid_chs)
    p['sc3_w'], p['sc3_b'] = dw(ks[8], ks[9], 5, mid_chs)
    p['g2p_w'], p['g2p_b'] = pw(ks[10], ks[11], mid_chs, init2)
    p['g2c_w'], p['g2c_b'] = dw(ks[12], ks[13], 9, new2)
    return p


# ---------------------------------------------------------------------------
# Pure-JAX (non-Pallas) reference, mirroring the PyTorch block, for a
# numerical check of the fused kernel.
# ---------------------------------------------------------------------------

def _ref_pointwise(x, w, b, relu):
    y = jnp.einsum('oc,nchw->nohw', w, x, precision=jax.lax.Precision.HIGHEST)
    y = y + b[None, :, None, None]
    return jnp.maximum(y, 0.0) if relu else y


def _ref_depthwise(x, w, b, kh, kw, relu):
    n, c, hgt, wid = x.shape
    ph, pw_ = (kh - 1) // 2, (kw - 1) // 2
    xp = jnp.pad(x, ((0, 0), (0, 0), (ph, ph), (pw_, pw_)))
    acc = jnp.zeros_like(x)
    t = 0
    for i in range(kh):
        for j in range(kw):
            acc = acc + xp[:, :, i:i + hgt, j:j + wid] * w[None, :, t, None, None]
            t += 1
    y = acc + b[None, :, None, None]
    return jnp.maximum(y, 0.0) if relu else y


def reference_forward(x_nchw, p):
    x = x_nchw.astype(jnp.float32)
    n, c, hgt, wid = x.shape
    residual = x
    # ghost1 DFC branch: short_conv(avg_pool2d(x, 2, 2)) -> sigmoid -> nearest 2x
    pooled = x.reshape(n, c, hgt // 2, 2, wid // 2, 2).mean(axis=(3, 5))
    r = _ref_pointwise(pooled, p['sc1_w'], p['sc1_b'], relu=False)
    r = _ref_depthwise(r, p['sc2_w'], p['sc2_b'], 1, 5, relu=False)
    r = _ref_depthwise(r, p['sc3_w'], p['sc3_b'], 5, 1, relu=False)
    gate = jax.nn.sigmoid(r)
    gate = jnp.repeat(jnp.repeat(gate, 2, axis=2), 2, axis=3)
    # ghost1 main branch
    x1 = _ref_pointwise(x, p['g1p_w'], p['g1p_b'], relu=True)
    x2 = _ref_depthwise(x1, p['g1c_w'], p['g1c_b'], 3, 3, relu=True)
    hidden = jnp.concatenate([x1, x2], axis=1) * gate
    # ghost2
    y1 = _ref_pointwise(hidden, p['g2p_w'], p['g2p_b'], relu=False)
    y2 = _ref_depthwise(y1, p['g2c_w'], p['g2c_b'], 3, 3, relu=False)
    y = jnp.concatenate([y1, y2], axis=1)
    return y + residual


if __name__ == "__main__":
    key = jax.random.PRNGKey(0)
    kx, kp = jax.random.split(key)

    # N=4 with B_TILE=2 -> grid=(2,): amortizes per-step overhead and keeps both
    # v7x TensorCores busy.
    N, in_chs, H, W = 4, 8, 16, 16
    mid_chs, out_chs = 16, 8

    x = jax.random.normal(kx, (N, in_chs, H, W), jnp.float32)
    params = init_params(kp, in_chs, mid_chs, out_chs)

    fwd = jax.jit(ghost_bottleneck_v2_forward)
    y = jax.block_until_ready(fwd(x, params))
    assert y.shape == (N, out_chs, H, W), y.shape
    assert bool(jnp.all(jnp.isfinite(y)))

    # Numerical check of the fused kernel against the plain-JAX reference.
    y_ref = jax.block_until_ready(reference_forward(x, params))
    max_err = float(jnp.max(jnp.abs(y - y_ref)))
    assert max_err < 2e-3, f"kernel/reference mismatch: max abs err = {max_err}"

    print("KERNEL_OK")
</pallas_src>

<mosaic_0001>
module attributes {stable_mosaic.version = 11 : i64} {
  func.func @_ghost_bottleneck_kernel(%arg0: i32, %arg1: memref<2x8x256xf32, #tpu.memory_space<vmem>>, %arg2: memref<80x17xf32, #tpu.memory_space<vmem>>, %arg3: memref<2x8x256xf32, #tpu.memory_space<vmem>>) attributes {dimension_semantics = [#tpu.dimension_semantics<parallel>], iteration_bounds = array<i64: 2>, scalar_prefetch = 0 : i64, scratch_operands = 0 : i64, tpu.core_type = #tpu.core_type<tc>, window_params = [{transform_indices = @transform_0, window_bounds = array<i64: 2, 8, 256>}, {pipeline_mode = #tpu.pipeline_mode<synchronous>, transform_indices = @transform_1, window_bounds = array<i64: 80, 17>}, {transform_indices = @transform_2, window_bounds = array<i64: 2, 8, 256>}]} {
    %0 = tpu.iota {dimensions = array<i32: 1>} : vector<1x256xi32>
    %c15_i32 = arith.constant 15 : i32
    %1 = vector.broadcast %c15_i32 : i32 to vector<1x256xi32>
    %2 = arith.andi %0, %1 : vector<1x256xi32>
    %c4_i32 = arith.constant 4 : i32
    %3 = vector.broadcast %c4_i32 : i32 to vector<1x256xi32>
    %4 = arith.shrsi %0, %3 : vector<1x256xi32>
    %c1_i32 = arith.constant 1 : i32
    %5 = vector.broadcast %c1_i32 : i32 to vector<1x256xi32>
    %6 = arith.andi %2, %5 : vector<1x256xi32>
    %c0_i32 = arith.constant 0 : i32
    %7 = vector.broadcast %c0_i32 : i32 to vector<1x256xi32>
    %8 = arith.cmpi eq, %6, %7 : vector<1x256xi32>
    %c1_i32_0 = arith.constant 1 : i32
    %9 = vector.broadcast %c1_i32_0 : i32 to vector<1x256xi32>
    %10 = arith.andi %4, %9 : vector<1x256xi32>
    %c0_i32_1 = arith.constant 0 : i32
    %11 = vector.broadcast %c0_i32_1 : i32 to vector<1x256xi32>
    %12 = arith.cmpi eq, %10, %11 : vector<1x256xi32>
    %c4_i32_2 = arith.constant 4 : i32
    %13 = vector.broadcast %c4_i32_2 : i32 to vector<1x256xi32>
    %14 = arith.cmpi sge, %4, %13 : vector<1x256xi32>
    %15 = arith.extui %14 : vector<1x256xi1> to vector<1x256xi32>
    %16 = arith.sitofp %15 : vector<1x256xi32> to vector<1x256xf32>
    %c2_i32 = arith.constant 2 : i32
    %17 = vector.broadcast %c2_i32 : i32 to vector<1x256xi32>
    %18 = arith.cmpi sge, %4, %17 : vector<1x256xi32>
    %19 = arith.extui %18 : vector<1x256xi1> to vector<1x256xi32>
    %20 = arith.sitofp %19 : vector<1x256xi32> to vector<1x256xf32>
    %c1_i32_3 = arith.constant 1 : i32
    %21 = vector.broadcast %c1_i32_3 : i32 to vector<1x256xi32>
    %22 = arith.cmpi sge, %2, %21 : vector<1x256xi32>
    %c1_i32_4 = arith.constant 1 : i32
    %23 = vector.broadcast %c1_i32_4 : i32 to vector<1x256xi32>
    %24 = arith.cmpi sge, %4, %23 : vector<1x256xi32>
    %25 = arith.andi %22, %24 : vector<1x256xi1>
    %26 = arith.extui %25 : vector<1x256xi1> to vector<1x256xi32>
    %27 = arith.sitofp %26 : vector<1x256xi32> to vector<1x256xf32>
    %c1_i32_5 = arith.constant 1 : i32
    %28 = vector.broadcast %c1_i32_5 : i32 to vector<1x256xi32>
    %29 = arith.cmpi sge, %4, %28 : vector<1x256xi32>
    %30 = arith.extui %29 : vector<1x256xi1> to vector<1x256xi32>
    %31 = arith.sitofp %30 : vector<1x256xi32> to vector<1x256xf32>
    %c15_i32_6 = arith.constant 15 : i32
    %32 = vector.broadcast %c15_i32_6 : i32 to vector<1x256xi32>
    %33 = arith.cmpi slt, %2, %32 : vector<1x256xi32>
    %c1_i32_7 = arith.constant 1 : i32
    %34 = vector.broadcast %c1_i32_7 : i32 to vector<1x256xi32>
    %35 = arith.cmpi sge, %4, %34 : vector<1x256xi32>
    %36 = arith.andi %33, %35 : vector<1x256xi1>
    %37 = arith.extui %36 : vector<1x256xi1> to vector<1x256xi32>
    %38 = arith.sitofp %37 : vector<1x256xi32> to vector<1x256xf32>
    %c4_i32_8 = arith.constant 4 : i32
    %39 = vector.broadcast %c4_i32_8 : i32 to vector<1x256xi32>
    %40 = arith.cmpi sge, %2, %39 : vector<1x256xi32>
    %41 = arith.extui %40 : vector<1x256xi1> to vector<1x256xi32>
    %42 = arith.sitofp %41 : vector<1x256xi32> to vector<1x256xf32>
    %c2_i32_9 = arith.constant 2 : i32
    %43 = vector.broadcast %c2_i32_9 : i32 to vector<1x256xi32>
    %44 = arith.cmpi sge, %2, %43 : vector<1x256xi32>
    %45 = arith.extui %44 : vector<1x256xi1> to vector<1x256xi32>
    %46 = arith.sitofp %45 : vector<1x256xi32> to vector<1x256xf32>
    %c1_i32_10 = arith.constant 1 : i32
    %47 = vector.broadcast %c1_i32_10 : i32 to vector<1x256xi32>
    %48 = arith.cmpi sge, %2, %47 : vector<1x256xi32>
    %49 = arith.extui %48 : vector<1x256xi1> to vector<1x256xi32>
    %50 = arith.sitofp %49 : vector<1x256xi32> to vector<1x256xf32>
    %c15_i32_11 = arith.constant 15 : i32
    %51 = vector.broadcast %c15_i32_11 : i32 to vector<1x256xi32>
    %52 = arith.cmpi slt, %2, %51 : vector<1x256xi32>
    %53 = arith.extui %52 : vector<1x256xi1> to vector<1x256xi32>
    %54 = arith.sitofp %53 : vector<1x256xi32> to vector<1x256xf32>
    %c14_i32 = arith.constant 14 : i32
    %55 = vector.broadcast %c14_i32 : i32 to vector<1x256xi32>
    %56 = arith.cmpi slt, %2, %55 : vector<1x256xi32>
    %57 = arith.extui %56 : vector<1x256xi1> to vector<1x256xi32>
    %58 = arith.sitofp %57 : vector<1x256xi32> to vector<1x256xf32>
    %c12_i32 = arith.constant 12 : i32
    %59 = vector.broadcast %c12_i32 : i32 to vector<1x256xi32>
    %60 = arith.cmpi slt, %2, %59 : vector<1x256xi32>
    %61 = arith.extui %60 : vector<1x256xi1> to vector<1x256xi32>
    %62 = arith.sitofp %61 : vector<1x256xi32> to vector<1x256xf32>
    %c1_i32_12 = arith.constant 1 : i32
    %63 = vector.broadcast %c1_i32_12 : i32 to vector<1x256xi32>
    %64 = arith.cmpi sge, %2, %63 : vector<1x256xi32>
    %c15_i32_13 = arith.constant 15 : i32
    %65 = vector.broadcast %c15_i32_13 : i32 to vector<1x256xi32>
    %66 = arith.cmpi slt, %4, %65 : vector<1x256xi32>
    %67 = arith.andi %64, %66 : vector<1x256xi1>
    %68 = arith.extui %67 : vector<1x256xi1> to vector<1x256xi32>
    %69 = arith.sitofp %68 : vector<1x256xi32> to vector<1x256xf32>
    %c15_i32_14 = arith.constant 15 : i32
    %70 = vector.broadcast %c15_i32_14 : i32 to vector<1x256xi32>
    %71 = arith.cmpi slt, %4, %70 : vector<1x256xi32>
    %72 = arith.extui %71 : vector<1x256xi1> to vector<1x256xi32>
    %73 = arith.sitofp %72 : vector<1x256xi32> to vector<1x256xf32>
    %c15_i32_15 = arith.constant 15 : i32
    %74 = vector.broadcast %c15_i32_15 : i32 to vector<1x256xi32>
    %75 = arith.cmpi slt, %2, %74 : vector<1x256xi32>
    %c15_i32_16 = arith.constant 15 : i32
    %76 = vector.broadcast %c15_i32_16 : i32 to vector<1x256xi32>
    %77 = arith.cmpi slt, %4, %76 : vector<1x256xi32>
    %78 = arith.andi %75, %77 : vector<1x256xi1>
    %79 = arith.extui %78 : vector<1x256xi1> to vector<1x256xi32>
    %80 = arith.sitofp %79 : vector<1x256xi32> to vector<1x256xf32>
    %c14_i32_17 = arith.constant 14 : i32
    %81 = vector.broadcast %c14_i32_17 : i32 to vector<1x256xi32>
    %82 = arith.cmpi slt, %4, %81 : vector<1x256xi32>
    %83 = arith.extui %82 : vector<1x256xi1> to vector<1x256xi32>
    %84 = arith.sitofp %83 : vector<1x256xi32> to vector<1x256xf32>
    %c12_i32_18 = arith.constant 12 : i32
    %85 = vector.broadcast %c12_i32_18 : i32 to vector<1x256xi32>
    %86 = arith.cmpi slt, %4, %85 : vector<1x256xi32>
    %87 = arith.extui %86 : vector<1x256xi1> to vector<1x256xi32>
    %88 = arith.sitofp %87 : vector<1x256xi32> to vector<1x256xf32>
    %c0 = arith.constant 0 : index
    %c0_19 = arith.constant 0 : index
    %89 = vector.load %arg2[%c0, %c0_19] : memref<80x17xf32, #tpu.memory_space<vmem>>, vector<8x8xf32>
    %c0_20 = arith.constant 0 : index
    %c16 = arith.constant 16 : index
    %90 = vector.load %arg2[%c0_20, %c16] : memref<80x17xf32, #tpu.memory_space<vmem>>, vector<8x1xf32>
    %c8 = arith.constant 8 : index
    %c0_21 = arith.constant 0 : index
    %91 = vector.load %arg2[%c8, %c0_21] : memref<80x17xf32, #tpu.memory_space<vmem>>, vector<8x9xf32>
    %c8_22 = arith.constant 8 : index
    %c16_23 = arith.constant 16 : index
    %92 = vector.load %arg2[%c8_22, %c16_23] : memref<80x17xf32, #tpu.memory_space<vmem>>, vector<8x1xf32>
    %c16_24 = arith.constant 16 : index
    %c0_25 = arith.constant 0 : index
    %93 = vector.load %arg2[%c16_24, %c0_25] : memref<80x17xf32, #tpu.memory_space<vmem>>, vector<16x8xf32>
    %c16_26 = arith.constant 16 : index
    %c16_27 = arith.constant 16 : index
    %94 = vector.load %arg2[%c16_26, %c16_27] : memref<80x17xf32, #tpu.memory_space<vmem>>, vector<16x1xf32>
    %c32 = arith.constant 32 : index
    %c0_28 = arith.constant 0 : index
    %95 = vector.load %arg2[%c32, %c0_28] : memref<80x17xf32, #tpu.memory_space<vmem>>, vector<16x5xf32>
    %c32_29 = arith.constant 32 : index
    %c16_30 = arith.constant 16 : index
    %96 = vector.load %arg2[%c32_29, %c16_30] : memref<80x17xf32, #tpu.memory_space<vmem>>, vector<16x1xf32>
    %c48 = arith.constant 48 : index
    %c0_31 = arith.constant 0 : index
    %97 = vector.load %arg2[%c48, %c0_31] : memref<80x17xf32, #tpu.memory_space<vmem>>, vector<16x5xf32>
    %c48_32 = arith.constant 48 : index
    %c16_33 = arith.constant 16 : index
    %98 = vector.load %arg2[%c48_32, %c16_33] : memref<80x17xf32, #tpu.memory_space<vmem>>, vector<16x1xf32>
    %c64 = arith.constant 64 : index
    %c0_34 = arith.constant 0 : index
    %99 = vector.load %arg2[%c64, %c0_34] : memref<80x17xf32, #tpu.memory_space<vmem>>, vector<4x16xf32>
    %c64_35 = arith.constant 64 : index
    %c16_36 = arith.constant 16 : index
    %100 = vector.load %arg2[%c64_35, %c16_36] : memref<80x17xf32, #tpu.memory_space<vmem>>, vector<4x1xf32>
    %c72 = arith.constant 72 : index
    %c0_37 = arith.constant 0 : index
    %101 = vector.load %arg2[%c72, %c0_37] : memref<80x17xf32, #tpu.memory_space<vmem>>, vector<4x9xf32>
    %c72_38 = arith.constant 72 : index
    %c16_39 = arith.constant 16 : index
    %102 = vector.load %arg2[%c72_38, %c16_39] : memref<80x17xf32, #tpu.memory_space<vmem>>, vector<4x1xf32>
    %c0_i32_40 = arith.constant 0 : i32
    %103 = arith.index_cast %c0_i32_40 : i32 to index
    %c0_41 = arith.constant 0 : index
    %c0_42 = arith.constant 0 : index
    %104 = vector.load %arg1[%103, %c0_41, %c0_42] : memref<2x8x256xf32, #tpu.memory_space<vmem>>, vector<1x8x256xf32>
    %105 = vector.shape_cast %104 : vector<1x8x256xf32> to vector<8x256xf32>
    %c255_i32 = arith.constant 255 : i32
    %106 = tpu.dynamic_rotate %105 by %c255_i32 dim 1 : vector<8x256xf32>, i32 -> vector<8x256xf32>
    %c1_i32_43 = arith.constant 1 : i32
    %107 = tpu.dynamic_rotate %105 by %c1_i32_43 dim 1 : vector<8x256xf32>, i32 -> vector<8x256xf32>
    %108 = vector.shape_cast %8 : vector<1x256xi1> to vector<1x256xi1>
    %109 = vector.broadcast %108 : vector<1x256xi1> to vector<8x256xi1>
    %110 = arith.select %109, %106, %107 : vector<8x256xi1>, vector<8x256xf32>
    %111 = arith.addf %105, %110 : vector<8x256xf32>
    %c240_i32 = arith.constant 240 : i32
    %112 = tpu.dynamic_rotate %111 by %c240_i32 dim 1 : vector<8x256xf32>, i32 -> vector<8x256xf32>
    %c16_i32 = arith.constant 16 : i32
    %113 = tpu.dynamic_rotate %111 by %c16_i32 dim 1 : vector<8x256xf32>, i32 -> vector<8x256xf32>
    %114 = vector.shape_cast %12 : vector<1x256xi1> to vector<1x256xi1>
    %115 = vector.broadcast %114 : vector<1x256xi1> to vector<8x256xi1>
    %116 = arith.select %115, %112, %113 : vector<8x256xi1>, vector<8x256xf32>
    %117 = arith.addf %111, %116 : vector<8x256xf32>
    %cst = arith.constant 2.500000e-01 : f32
    %118 = vector.broadcast %cst : f32 to vector<8x256xf32>
    %119 = arith.mulf %118, %117 : vector<8x256xf32>
    %cst_44 = arith.constant 0.000000e+00 : f32
    %120 = vector.broadcast %cst_44 : f32 to vector<16x256xf32>
    %121 = vector.extract_strided_slice %93 {offsets = [0, 0], sizes = [16, 1], strides = [1, 1]} : vector<16x8xf32> to vector<16x1xf32>
    %122 = vector.extract_strided_slice %119 {offsets = [0, 0], sizes = [1, 256], strides = [1, 1]} : vector<8x256xf32> to vector<1x256xf32>
    %123 = vector.broadcast %121 : vector<16x1xf32> to vector<16x256xf32>
    %124 = vector.broadcast %122 : vector<1x256xf32> to vector<16x256xf32>
    %125 = arith.mulf %123, %124 : vector<16x256xf32>
    %126 = arith.addf %120, %125 : vector<16x256xf32>
    %127 = vector.extract_strided_slice %93 {offsets = [0, 1], sizes = [16, 1], strides = [1, 1]} : vector<16x8xf32> to vector<16x1xf32>
    %128 = vector.extract_strided_slice %119 {offsets = [1, 0], sizes = [1, 256], strides = [1, 1]} : vector<8x256xf32> to vector<1x256xf32>
    %129 = vector.broadcast %127 : vector<16x1xf32> to vector<16x256xf32>
    %130 = vector.broadcast %128 : vector<1x256xf32> to vector<16x256xf32>
    %131 = arith.mulf %129, %130 : vector<16x256xf32>
    %132 = arith.addf %126, %131 : vector<16x256xf32>
    %133 = vector.extract_strided_slice %93 {offsets = [0, 2], sizes = [16, 1], strides = [1, 1]} : vector<16x8xf32> to vector<16x1xf32>
    %134 = vector.extract_strided_slice %119 {offsets = [2, 0], sizes = [1, 256], strides = [1, 1]} : vector<8x256xf32> to vector<1x256xf32>
    %135 = vector.broadcast %133 : vector<16x1xf32> to vector<16x256xf32>
    %136 = vector.broadcast %134 : vector<1x256xf32> to vector<16x256xf32>
    %137 = arith.mulf %135, %136 : vector<16x256xf32>
    %138 = arith.addf %132, %137 : vector<16x256xf32>
    %139 = vector.extract_strided_slice %93 {offsets = [0, 3], sizes = [16, 1], strides = [1, 1]} : vector<16x8xf32> to vector<16x1xf32>
    %140 = vector.extract_strided_slice %119 {offsets = [3, 0], sizes = [1, 256], strides = [1, 1]} : vector<8x256xf32> to vector<1x256xf32>
    %141 = vector.broadcast %139 : vector<16x1xf32> to vector<16x256xf32>
    %142 = vector.broadcast %140 : vector<1x256xf32> to vector<16x256xf32>
    %143 = arith.mulf %141, %142 : vector<16x256xf32>
    %144 = arith.addf %138, %143 : vector<16x256xf32>
    %145 = vector.extract_strided_slice %93 {offsets = [0, 4], sizes = [16, 1], strides = [1, 1]} : vector<16x8xf32> to vector<16x1xf32>
    %146 = vector.extract_strided_slice %119 {offsets = [4, 0], sizes = [1, 256], strides = [1, 1]} : vector<8x256xf32> to vector<1x256xf32>
    %147 = vector.broadcast %145 : vector<16x1xf32> to vector<16x256xf32>
    %148 = vector.broadcast %146 : vector<1x256xf32> to vector<16x256xf32>
    %149 = arith.mulf %147, %148 : vector<16x256xf32>
    %150 = arith.addf %144, %149 : vector<16x256xf32>
    %151 = vector.extract_strided_slice %93 {offsets = [0, 5], sizes = [16, 1], strides = [1, 1]} : vector<16x8xf32> to vector<16x1xf32>
    %152 = vector.extract_strided_slice %119 {offsets = [5, 0], sizes = [1, 256], strides = [1, 1]} : vector<8x256xf32> to vector<1x256xf32>
    %153 = vector.broadcast %151 : vector<16x1xf32> to vector<16x256xf32>
    %154 = vector.broadcast %152 : vector<1x256xf32> to vector<16x256xf32>
    %155 = arith.mulf %153, %154 : vector<16x256xf32>
    %156 = arith.addf %150, %155 : vector<16x256xf32>
    %157 = vector.extract_strided_slice %93 {offsets = [0, 6], sizes = [16, 1], strides = [1, 1]} : vector<16x8xf32> to vector<16x1xf32>
    %158 = vector.extract_strided_slice %119 {offsets = [6, 0], sizes = [1, 256], strides = [1, 1]} : vector<8x256xf32> to vector<1x256xf32>
    %159 = vector.broadcast %157 : vector<16x1xf32> to vector<16x256xf32>
    %160 = vector.broadcast %158 : vector<1x256xf32> to vector<16x256xf32>
    %161 = arith.mulf %159, %160 : vector<16x256xf32>
    %162 = arith.addf %156, %161 : vector<16x256xf32>
    %163 = vector.extract_strided_slice %93 {offsets = [0, 7], sizes = [16, 1], strides = [1, 1]} : vector<16x8xf32> to vector<16x1xf32>
    %164 = vector.extract_strided_slice %119 {offsets = [7, 0], sizes = [1, 256], strides = [1, 1]} : vector<8x256xf32> to vector<1x256xf32>
    %165 = vector.broadcast %163 : vector<16x1xf32> to vector<16x256xf32>
    %166 = vector.broadcast %164 : vector<1x256xf32> to vector<16x256xf32>
    %167 = arith.mulf %165, %166 : vector<16x256xf32>
    %168 = arith.addf %162, %167 : vector<16x256xf32>
    %169 = vector.broadcast %94 : vector<16x1xf32> to vector<16x256xf32>
    %170 = arith.addf %168, %169 : vector<16x256xf32>
    %cst_45 = arith.constant 0.000000e+00 : f32
    %171 = vector.broadcast %cst_45 : f32 to vector<16x256xf32>
    %172 = vector.extract_strided_slice %95 {offsets = [0, 0], sizes = [16, 1], strides = [1, 1]} : vector<16x5xf32> to vector<16x1xf32>
    %c4_i32_46 = arith.constant 4 : i32
    %173 = tpu.dynamic_rotate %170 by %c4_i32_46 dim 1 : vector<16x256xf32>, i32 -> vector<16x256xf32>
    %174 = vector.broadcast %42 : vector<1x256xf32> to vector<16x256xf32>
    %175 = arith.mulf %173, %174 : vector<16x256xf32>
    %176 = vector.broadcast %172 : vector<16x1xf32> to vector<16x256xf32>
    %177 = arith.mulf %176, %175 : vector<16x256xf32>
    %178 = arith.addf %171, %177 : vector<16x256xf32>
    %179 = vector.extract_strided_slice %95 {offsets = [0, 1], sizes = [16, 1], strides = [1, 1]} : vector<16x5xf32> to vector<16x1xf32>
    %c2_i32_47 = arith.constant 2 : i32
    %180 = tpu.dynamic_rotate %170 by %c2_i32_47 dim 1 : vector<16x256xf32>, i32 -> vector<16x256xf32>
    %181 = vector.broadcast %46 : vector<1x256xf32> to vector<16x256xf32>
    %182 = arith.mulf %180, %181 : vector<16x256xf32>
    %183 = vector.broadcast %179 : vector<16x1xf32> to vector<16x256xf32>
    %184 = arith.mulf %183, %182 : vector<16x256xf32>
    %185 = arith.addf %178, %184 : vector<16x256xf32>
    %186 = vector.extract_strided_slice %95 {offsets = [0, 2], sizes = [16, 1], strides = [1, 1]} : vector<16x5xf32> to vector<16x1xf32>
    %187 = vector.broadcast %186 : vector<16x1xf32> to vector<16x256xf32>
    %188 = arith.mulf %187, %170 : vector<16x256xf32>
    %189 = arith.addf %185, %188 : vector<16x256xf32>
    %190 = vector.extract_strided_slice %95 {offsets = [0, 3], sizes = [16, 1], strides = [1, 1]} : vector<16x5xf32> to vector<16x1xf32>
    %c254_i32 = arith.constant 254 : i32
    %191 = tpu.dynamic_rotate %170 by %c254_i32 dim 1 : vector<16x256xf32>, i32 -> vector<16x256xf32>
    %192 = vector.broadcast %58 : vector<1x256xf32> to vector<16x256xf32>
    %193 = arith.mulf %191, %192 : vector<16x256xf32>
    %194 = vector.broadcast %190 : vector<16x1xf32> to vector<16x256xf32>
    %195 = arith.mulf %194, %193 : vector<16x256xf32>
    %196 = arith.addf %189, %195 : vector<16x256xf32>
    %197 = vector.extract_strided_slice %95 {offsets = [0, 4], sizes = [16, 1], strides = [1, 1]} : vector<16x5xf32> to vector<16x1xf32>
    %c252_i32 = arith.constant 252 : i32
    %198 = tpu.dynamic_rotate %170 by %c252_i32 dim 1 : vector<16x256xf32>, i32 -> vector<16x256xf32>
    %199 = vector.broadcast %62 : vector<1x256xf32> to vector<16x256xf32>
    %200 = arith.mulf %198, %199 : vector<16x256xf32>
    %201 = vector.broadcast %197 : vector<16x1xf32> to vector<16x256xf32>
    %202 = arith.mulf %201, %200 : vector<16x256xf32>
    %203 = arith.addf %196, %202 : vector<16x256xf32>
    %204 = vector.broadcast %96 : vector<16x1xf32> to vector<16x256xf32>
    %205 = arith.addf %203, %204 : vector<16x256xf32>
    %cst_48 = arith.constant 0.000000e+00 : f32
    %206 = vector.broadcast %cst_48 : f32 to vector<16x256xf32>
    %207 = vector.extract_strided_slice %97 {offsets = [0, 0], sizes = [16, 1], strides = [1, 1]} : vector<16x5xf32> to vector<16x1xf32>
    %c64_i32 = arith.constant 64 : i32
    %208 = tpu.dynamic_rotate %205 by %c64_i32 dim 1 : vector<16x256xf32>, i32 -> vector<16x256xf32>
    %209 = vector.broadcast %16 : vector<1x256xf32> to vector<16x256xf32>
    %210 = arith.mulf %208, %209 : vector<16x256xf32>
    %211 = vector.broadcast %207 : vector<16x1xf32> to vector<16x256xf32>
    %212 = arith.mulf %211, %210 : vector<16x256xf32>
    %213 = arith.addf %206, %212 : vector<16x256xf32>
    %214 = vector.extract_strided_slice %97 {offsets = [0, 1], sizes = [16, 1], strides = [1, 1]} : vector<16x5xf32> to vector<16x1xf32>
    %c32_i32 = arith.constant 32 : i32
    %215 = tpu.dynamic_rotate %205 by %c32_i32 dim 1 : vector<16x256xf32>, i32 -> vector<16x256xf32>
    %216 = vector.broadcast %20 : vector<1x256xf32> to vector<16x256xf32>
    %217 = arith.mulf %215, %216 : vector<16x256xf32>
    %218 = vector.broadcast %214 : vector<16x1xf32> to vector<16x256xf32>
    %219 = arith.mulf %218, %217 : vector<16x256xf32>
    %220 = arith.addf %213, %219 : vector<16x256xf32>
    %221 = vector.extract_strided_slice %97 {offsets = [0, 2], sizes = [16, 1], strides = [1, 1]} : vector<16x5xf32> to vector<16x1xf32>
    %222 = vector.broadcast %221 : vector<16x1xf32> to vector<16x256xf32>
    %223 = arith.mulf %222, %205 : vector<16x256xf32>
    %224 = arith.addf %220, %223 : vector<16x256xf32>
    %225 = vector.extract_strided_slice %97 {offsets = [0, 3], sizes = [16, 1], strides = [1, 1]} : vector<16x5xf32> to vector<16x1xf32>
    %c224_i32 = arith.constant 224 : i32
    %226 = tpu.dynamic_rotate %205 by %c224_i32 dim 1 : vector<16x256xf32>, i32 -> vector<16x256xf32>
    %227 = vector.broadcast %84 : vector<1x256xf32> to vector<16x256xf32>
    %228 = arith.mulf %226, %227 : vector<16x256xf32>
    %229 = vector.broadcast %225 : vector<16x1xf32> to vector<16x256xf32>
    %230 = arith.mulf %229, %228 : vector<16x256xf32>
    %231 = arith.addf %224, %230 : vector<16x256xf32>
    %232 = vector.extract_strided_slice %97 {offsets = [0, 4], sizes = [16, 1], strides = [1, 1]} : vector<16x5xf32> to vector<16x1xf32>
    %c192_i32 = arith.constant 192 : i32
    %233 = tpu.dynamic_rotate %205 by %c192_i32 dim 1 : vector<16x256xf32>, i32 -> vector<16x256xf32>
    %234 = vector.broadcast %88 : vector<1x256xf32> to vector<16x256xf32>
    %235 = arith.mulf %233, %234 : vector<16x256xf32>
    %236 = vector.broadcast %232 : vector<16x1xf32> to vector<16x256xf32>
    %237 = arith.mulf %236, %235 : vector<16x256xf32>
    %238 = arith.addf %231, %237 : vector<16x256xf32>
    %239 = vector.broadcast %98 : vector<16x1xf32> to vector<16x256xf32>
    %240 = arith.addf %238, %239 : vector<16x256xf32>
    %cst_49 = arith.constant 5.000000e-01 : f32
    %241 = vector.broadcast %cst_49 : f32 to vector<16x256xf32>
    %242 = arith.mulf %241, %240 : vector<16x256xf32>
    %243 = math.tanh %242 : vector<16x256xf32>
    %cst_50 = arith.constant 1.000000e+00 : f32
    %244 = vector.broadcast %cst_50 : f32 to vector<16x256xf32>
    %245 = arith.addf %243, %244 : vector<16x256xf32>
    %cst_51 = arith.constant 5.000000e-01 : f32
    %246 = vector.broadcast %cst_51 : f32 to vector<16x256xf32>
    %247 = arith.mulf %246, %245 : vector<16x256xf32>
    %cst_52 = arith.constant 0.000000e+00 : f32
    %248 = vector.broadcast %cst_52 : f32 to vector<8x256xf32>
    %249 = vector.extract_strided_slice %89 {offsets = [0, 0], sizes = [8, 1], strides = [1, 1]} : vector<8x8xf32> to vector<8x1xf32>
    %250 = vector.extract_strided_slice %105 {offsets = [0, 0], sizes = [1, 256], strides = [1, 1]} : vector<8x256xf32> to vector<1x256xf32>
    %251 = vector.broadcast %249 : vector<8x1xf32> to vector<8x256xf32>
    %252 = vector.broadcast %250 : vector<1x256xf32> to vector<8x256xf32>
    %253 = arith.mulf %251, %252 : vector<8x256xf32>
    %254 = arith.addf %248, %253 : vector<8x256xf32>
    %255 = vector.extract_strided_slice %89 {offsets = [0, 1], sizes = [8, 1], strides = [1, 1]} : vector<8x8xf32> to vector<8x1xf32>
    %256 = vector.extract_strided_slice %105 {offsets = [1, 0], sizes = [1, 256], strides = [1, 1]} : vector<8x256xf32> to vector<1x256xf32>
    %257 = vector.broadcast %255 : vector<8x1xf32> to vector<8x256xf32>
    %258 = vector.broadcast %256 : vector<1x256xf32> to vector<8x256xf32>
    %259 = arith.mulf %257, %258 : vector<8x256xf32>
    %260 = arith.addf %254, %259 : vector<8x256xf32>
    %261 = vector.extract_strided_slice %89 {offsets = [0, 2], sizes = [8, 1], strides = [1, 1]} : vector<8x8xf32> to vector<8x1xf32>
    %262 = vector.extract_strided_slice %105 {offsets = [2, 0], sizes = [1, 256], strides = [1, 1]} : vector<8x256xf32> to vector<1x256xf32>
    %263 = vector.broadcast %261 : vector<8x1xf32> to vector<8x256xf32>
    %264 = vector.broadcast %262 : vector<1x256xf32> to vector<8x256xf32>
    %265 = arith.mulf %263, %264 : vector<8x256xf32>
    %266 = arith.addf %260, %265 : vector<8x256xf32>
    %267 = vector.extract_strided_slice %89 {offsets = [0, 3], sizes = [8, 1], strides = [1, 1]} : vector<8x8xf32> to vector<8x1xf32>
    %268 = vector.extract_strided_slice %105 {offsets = [3, 0], sizes = [1, 256], strides = [1, 1]} : vector<8x256xf32> to vector<1x256xf32>
    %269 = vector.broadcast %267 : vector<8x1xf32> to vector<8x256xf32>
    %270 = vector.broadcast %268 : vector<1x256xf32> to vector<8x256xf32>
    %271 = arith.mulf %269, %270 : vector<8x256xf32>
    %272 = arith.addf %266, %271 : vector<8x256xf32>
    %273 = vector.extract_strided_slice %89 {offsets = [0, 4], sizes = [8, 1], strides = [1, 1]} : vector<8x8xf32> to vector<8x1xf32>
    %274 = vector.extract_strided_slice %105 {offsets = [4, 0], sizes = [1, 256], strides = [1, 1]} : vector<8x256xf32> to vector<1x256xf32>
    %275 = vector.broadcast %273 : vector<8x1xf32> to vector<8x256xf32>
    %276 = vector.broadcast %274 : vector<1x256xf32> to vector<8x256xf32>
    %277 = arith.mulf %275, %276 : vector<8x256xf32>
    %278 = arith.addf %272, %277 : vector<8x256xf32>
    %279 = vector.extract_strided_slice %89 {offsets = [0, 5], sizes = [8, 1], strides = [1, 1]} : vector<8x8xf32> to vector<8x1xf32>
    %280 = vector.extract_strided_slice %105 {offsets = [5, 0], sizes = [1, 256], strides = [1, 1]} : vector<8x256xf32> to vector<1x256xf32>
    %281 = vector.broadcast %279 : vector<8x1xf32> to vector<8x256xf32>
    %282 = vector.broadcast %280 : vector<1x256xf32> to vector<8x256xf32>
    %283 = arith.mulf %281, %282 : vector<8x256xf32>
    %284 = arith.addf %278, %283 : vector<8x256xf32>
    %285 = vector.extract_strided_slice %89 {offsets = [0, 6], sizes = [8, 1], strides = [1, 1]} : vector<8x8xf32> to vector<8x1xf32>
    %286 = vector.extract_strided_slice %105 {offsets = [6, 0], sizes = [1, 256], strides = [1, 1]} : vector<8x256xf32> to vector<1x256xf32>
    %287 = vector.broadcast %285 : vector<8x1xf32> to vector<8x256xf32>
    %288 = vector.broadcast %286 : vector<1x256xf32> to vector<8x256xf32>
    %289 = arith.mulf %287, %288 : vector<8x256xf32>
    %290 = arith.addf %284, %289 : vector<8x256xf32>
    %291 = vector.extract_strided_slice %89 {offsets = [0, 7], sizes = [8, 1], strides = [1, 1]} : vector<8x8xf32> to vector<8x1xf32>
    %292 = vector.extract_strided_slice %105 {offsets = [7, 0], sizes = [1, 256], strides = [1, 1]} : vector<8x256xf32> to vector<1x256xf32>
    %293 = vector.broadcast %291 : vector<8x1xf32> to vector<8x256xf32>
    %294 = vector.broadcast %292 : vector<1x256xf32> to vector<8x256xf32>
    %295 = arith.mulf %293, %294 : vector<8x256xf32>
    %296 = arith.addf %290, %295 : vector<8x256xf32>
    %297 = vector.broadcast %90 : vector<8x1xf32> to vector<8x256xf32>
    %298 = arith.addf %296, %297 : vector<8x256xf32>
    %cst_53 = arith.constant 0.000000e+00 : f32
    %299 = vector.broadcast %cst_53 : f32 to vector<8x256xf32>
    %300 = arith.maximumf %298, %299 : vector<8x256xf32>
    %cst_54 = arith.constant 0.000000e+00 : f32
    %301 = vector.broadcast %cst_54 : f32 to vector<8x256xf32>
    %302 = vector.extract_strided_slice %91 {offsets = [0, 0], sizes = [8, 1], strides = [1, 1]} : vector<8x9xf32> to vector<8x1xf32>
    %c17_i32 = arith.constant 17 : i32
    %303 = tpu.dynamic_rotate %300 by %c17_i32 dim 1 : vector<8x256xf32>, i32 -> vector<8x256xf32>
    %304 = vector.broadcast %27 : vector<1x256xf32> to vector<8x256xf32>
    %305 = arith.mulf %303, %304 : vector<8x256xf32>
    %306 = vector.broadcast %302 : vector<8x1xf32> to vector<8x256xf32>
    %307 = arith.mulf %306, %305 : vector<8x256xf32>
    %308 = arith.addf %301, %307 : vector<8x256xf32>
    %309 = vector.extract_strided_slice %91 {offsets = [0, 1], sizes = [8, 1], strides = [1, 1]} : vector<8x9xf32> to vector<8x1xf32>
    %c16_i32_55 = arith.constant 16 : i32
    %310 = tpu.dynamic_rotate %300 by %c16_i32_55 dim 1 : vector<8x256xf32>, i32 -> vector<8x256xf32>
    %311 = vector.broadcast %31 : vector<1x256xf32> to vector<8x256xf32>
    %312 = arith.mulf %310, %311 : vector<8x256xf32>
    %313 = vector.broadcast %309 : vector<8x1xf32> to vector<8x256xf32>
    %314 = arith.mulf %313, %312 : vector<8x256xf32>
    %315 = arith.addf %308, %314 : vector<8x256xf32>
    %316 = vector.extract_strided_slice %91 {offsets = [0, 2], sizes = [8, 1], strides = [1, 1]} : vector<8x9xf32> to vector<8x1xf32>
    %c15_i32_56 = arith.constant 15 : i32
    %317 = tpu.dynamic_rotate %300 by %c15_i32_56 dim 1 : vector<8x256xf32>, i32 -> vector<8x256xf32>
    %318 = vector.broadcast %38 : vector<1x256xf32> to vector<8x256xf32>
    %319 = arith.mulf %317, %318 : vector<8x256xf32>
    %320 = vector.broadcast %316 : vector<8x1xf32> to vector<8x256xf32>
    %321 = arith.mulf %320, %319 : vector<8x256xf32>
    %322 = arith.addf %315, %321 : vector<8x256xf32>
    %323 = vector.extract_strided_slice %91 {offsets = [0, 3], sizes = [8, 1], strides = [1, 1]} : vector<8x9xf32> to vector<8x1xf32>
    %c1_i32_57 = arith.constant 1 : i32
    %324 = tpu.dynamic_rotate %300 by %c1_i32_57 dim 1 : vector<8x256xf32>, i32 -> vector<8x256xf32>
    %325 = vector.broadcast %50 : vector<1x256xf32> to vector<8x256xf32>
    %326 = arith.mulf %324, %325 : vector<8x256xf32>
    %327 = vector.broadcast %323 : vector<8x1xf32> to vector<8x256xf32>
    %328 = arith.mulf %327, %326 : vector<8x256xf32>
    %329 = arith.addf %322, %328 : vector<8x256xf32>
    %330 = vector.extract_strided_slice %91 {offsets = [0, 4], sizes = [8, 1], strides = [1, 1]} : vector<8x9xf32> to vector<8x1xf32>
    %331 = vector.broadcast %330 : vector<8x1xf32> to vector<8x256xf32>
    %332 = arith.mulf %331, %300 : vector<8x256xf32>
    %333 = arith.addf %329, %332 : vector<8x256xf32>
    %334 = vector.extract_strided_slice %91 {offsets = [0, 5], sizes = [8, 1], strides = [1, 1]} : vector<8x9xf32> to vector<8x1xf32>
    %c255_i32_58 = arith.constant 255 : i32
    %335 = tpu.dynamic_rotate %300 by %c255_i32_58 dim 1 : vector<8x256xf32>, i32 -> vector<8x256xf32>
    %336 = vector.broadcast %54 : vector<1x256xf32> to vector<8x256xf32>
    %337 = arith.mulf %335, %336 : vector<8x256xf32>
    %338 = vector.broadcast %334 : vector<8x1xf32> to vector<8x256xf32>
    %339 = arith.mulf %338, %337 : vector<8x256xf32>
    %340 = arith.addf %333, %339 : vector<8x256xf32>
    %341 = vector.extract_strided_slice %91 {offsets = [0, 6], sizes = [8, 1], strides = [1, 1]} : vector<8x9xf32> to vector<8x1xf32>
    %c241_i32 = arith.constant 241 : i32
    %342 = tpu.dynamic_rotate %300 by %c241_i32 dim 1 : vector<8x256xf32>, i32 -> vector<8x256xf32>
    %343 = vector.broadcast %69 : vector<1x256xf32> to vector<8x256xf32>
    %344 = arith.mulf %342, %343 : vector<8x256xf32>
    %345 = vector.broadcast %341 : vector<8x1xf32> to vector<8x256xf32>
    %346 = arith.mulf %345, %344 : vector<8x256xf32>
    %347 = arith.addf %340, %346 : vector<8x256xf32>
    %348 = vector.extract_strided_slice %91 {offsets = [0, 7], sizes = [8, 1], strides = [1, 1]} : vector<8x9xf32> to vector<8x1xf32>
    %c240_i32_59 = arith.constant 240 : i32
    %349 = tpu.dynamic_rotate %300 by %c240_i32_59 dim 1 : vector<8x256xf32>, i32 -> vector<8x256xf32>
    %350 = vector.broadcast %73 : vector<1x256xf32> to vector<8x256xf32>
    %351 = arith.mulf %349, %350 : vector<8x256xf32>
    %352 = vector.broadcast %348 : vector<8x1xf32> to vector<8x256xf32>
    %353 = arith.mulf %352, %351 : vector<8x256xf32>
    %354 = arith.addf %347, %353 : vector<8x256xf32>
    %355 = vector.extract_strided_slice %91 {offsets = [0, 8], sizes = [8, 1], strides = [1, 1]} : vector<8x9xf32> to vector<8x1xf32>
    %c239_i32 = arith.constant 239 : i32
    %356 = tpu.dynamic_rotate %300 by %c239_i32 dim 1 : vector<8x256xf32>, i32 -> vector<8x256xf32>
    %357 = vector.broadcast %80 : vector<1x256xf32> to vector<8x256xf32>
    %358 = arith.mulf %356, %357 : vector<8x256xf32>
    %359 = vector.broadcast %355 : vector<8x1xf32> to vector<8x256xf32>
    %360 = arith.mulf %359, %358 : vector<8x256xf32>
    %361 = arith.addf %354, %360 : vector<8x256xf32>
    %362 = vector.broadcast %92 : vector<8x1xf32> to vector<8x256xf32>
    %363 = arith.addf %361, %362 : vector<8x256xf32>
    %cst_60 = arith.constant 0.000000e+00 : f32
    %364 = vector.broadcast %cst_60 : f32 to vector<8x256xf32>
    %365 = arith.maximumf %363, %364 : vector<8x256xf32>
    %366 = tpu.concatenate %300, %365 in 0 : vector<8x256xf32>, vector<8x256xf32> -> vector<16x256xf32>
    %367 = arith.mulf %366, %247 : vector<16x256xf32>
    %cst_61 = arith.constant 0.000000e+00 : f32
    %368 = vector.broadcast %cst_61 : f32 to vector<4x256xf32>
    %369 = vector.extract_strided_slice %99 {offsets = [0, 0], sizes = [4, 1], strides = [1, 1]} : vector<4x16xf32> to vector<4x1xf32>
    %370 = vector.extract_strided_slice %367 {offsets = [0, 0], sizes = [1, 256], strides = [1, 1]} : vector<16x256xf32> to vector<1x256xf32>
    %371 = vector.broadcast %369 : vector<4x1xf32> to vector<4x256xf32>
    %372 = vector.broadcast %370 : vector<1x256xf32> to vector<4x256xf32>
    %373 = arith.mulf %371, %372 : vector<4x256xf32>
    %374 = arith.addf %368, %373 : vector<4x256xf32>
    %375 = vector.extract_strided_slice %99 {offsets = [0, 1], sizes = [4, 1], strides = [1, 1]} : vector<4x16xf32> to vector<4x1xf32>
    %376 = vector.extract_strided_slice %367 {offsets = [1, 0], sizes = [1, 256], strides = [1, 1]} : vector<16x256xf32> to vector<1x256xf32>
    %377 = vector.broadcast %375 : vector<4x1xf32> to vector<4x256xf32>
    %378 = vector.broadcast %376 : vector<1x256xf32> to vector<4x256xf32>
    %379 = arith.mulf %377, %378 : vector<4x256xf32>
    %380 = arith.addf %374, %379 : vector<4x256xf32>
    %381 = vector.extract_strided_slice %99 {offsets = [0, 2], sizes = [4, 1], strides = [1, 1]} : vector<4x16xf32> to vector<4x1xf32>
    %382 = vector.extract_strided_slice %367 {offsets = [2, 0], sizes = [1, 256], strides = [1, 1]} : vector<16x256xf32> to vector<1x256xf32>
    %383 = vector.broadcast %381 : vector<4x1xf32> to vector<4x256xf32>
    %384 = vector.broadcast %382 : vector<1x256xf32> to vector<4x256xf32>
    %385 = arith.mulf %383, %384 : vector<4x256xf32>
    %386 = arith.addf %380, %385 : vector<4x256xf32>
    %387 = vector.extract_strided_slice %99 {offsets = [0, 3], sizes = [4, 1], strides = [1, 1]} : vector<4x16xf32> to vector<4x1xf32>
    %388 = vector.extract_strided_slice %367 {offsets = [3, 0], sizes = [1, 256], strides = [1, 1]} : vector<16x256xf32> to vector<1x256xf32>
    %389 = vector.broadcast %387 : vector<4x1xf32> to vector<4x256xf32>
    %390 = vector.broadcast %388 : vector<1x256xf32> to vector<4x256xf32>
    %391 = arith.mulf %389, %390 : vector<4x256xf32>
    %392 = arith.addf %386, %391 : vector<4x256xf32>
    %393 = vector.extract_strided_slice %99 {offsets = [0, 4], sizes = [4, 1], strides = [1, 1]} : vector<4x16xf32> to vector<4x1xf32>
    %394 = vector.extract_strided_slice %367 {offsets = [4, 0], sizes = [1, 256], strides = [1, 1]} : vector<16x256xf32> to vector<1x256xf32>
    %395 = vector.broadcast %393 : vector<4x1xf32> to vector<4x256xf32>
    %396 = vector.broadcast %394 : vector<1x256xf32> to vector<4x256xf32>
    %397 = arith.mulf %395, %396 : vector<4x256xf32>
    %398 = arith.addf %392, %397 : vector<4x256xf32>
    %399 = vector.extract_strided_slice %99 {offsets = [0, 5], sizes = [4, 1], strides = [1, 1]} : vector<4x16xf32> to vector<4x1xf32>
    %400 = vector.extract_strided_slice %367 {offsets = [5, 0], sizes = [1, 256], strides = [1, 1]} : vector<16x256xf32> to vector<1x256xf32>
    %401 = vector.broadcast %399 : vector<4x1xf32> to vector<4x256xf32>
    %402 = vector.broadcast %400 : vector<1x256xf32> to vector<4x256xf32>
    %403 = arith.mulf %401, %402 : vector<4x256xf32>
    %404 = arith.addf %398, %403 : vector<4x256xf32>
    %405 = vector.extract_strided_slice %99 {offsets = [0, 6], sizes = [4, 1], strides = [1, 1]} : vector<4x16xf32> to vector<4x1xf32>
    %406 = vector.extract_strided_slice %367 {offsets = [6, 0], sizes = [1, 256], strides = [1, 1]} : vector<16x256xf32> to vector<1x256xf32>
    %407 = vector.broadcast %405 : vector<4x1xf32> to vector<4x256xf32>
    %408 = vector.broadcast %406 : vector<1x256xf32> to vector<4x256xf32>
    %409 = arith.mulf %407, %408 : vector<4x256xf32>
    %410 = arith.addf %404, %409 : vector<4x256xf32>
    %411 = vector.extract_strided_slice %99 {offsets = [0, 7], sizes = [4, 1], strides = [1, 1]} : vector<4x16xf32> to vector<4x1xf32>
    %412 = vector.extract_strided_slice %367 {offsets = [7, 0], sizes = [1, 256], strides = [1, 1]} : vector<16x256xf32> to vector<1x256xf32>
    %413 = vector.broadcast %411 : vector<4x1xf32> to vector<4x256xf32>
    %414 = vector.broadcast %412 : vector<1x256xf32> to vector<4x256xf32>
    %415 = arith.mulf %413, %414 : vector<4x256xf32>
    %416 = arith.addf %410, %415 : vector<4x256xf32>
    %417 = vector.extract_strided_slice %99 {offsets = [0, 8], sizes = [4, 1], strides = [1, 1]} : vector<4x16xf32> to vector<4x1xf32>
    %418 = vector.extract_strided_slice %367 {offsets = [8, 0], sizes = [1, 256], strides = [1, 1]} : vector<16x256xf32> to vector<1x256xf32>
    %419 = vector.broadcast %417 : vector<4x1xf32> to vector<4x256xf32>
    %420 = vector.broadcast %418 : vector<1x256xf32> to vector<4x256xf32>
    %421 = arith.mulf %419, %420 : vector<4x256xf32>
    %422 = arith.addf %416, %421 : vector<4x256xf32>
    %423 = vector.extract_strided_slice %99 {offsets = [0, 9], sizes = [4, 1], strides = [1, 1]} : vector<4x16xf32> to vector<4x1xf32>
    %424 = vector.extract_strided_slice %367 {offsets = [9, 0], sizes = [1, 256], strides = [1, 1]} : vector<16x256xf32> to vector<1x256xf32>
    %425 = vector.broadcast %423 : vector<4x1xf32> to vector<4x256xf32>
    %426 = vector.broadcast %424 : vector<1x256xf32> to vector<4x256xf32>
    %427 = arith.mulf %425, %426 : vector<4x256xf32>
    %428 = arith.addf %422, %427 : vector<4x256xf32>
    %429 = vector.extract_strided_slice %99 {offsets = [0, 10], sizes = [4, 1], strides = [1, 1]} : vector<4x16xf32> to vector<4x1xf32>
    %430 = vector.extract_strided_slice %367 {offsets = [10, 0], sizes = [1, 256], strides = [1, 1]} : vector<16x256xf32> to vector<1x256xf32>
    %431 = vector.broadcast %429 : vector<4x1xf32> to vector<4x256xf32>
    %432 = vector.broadcast %430 : vector<1x256xf32> to vector<4x256xf32>
    %433 = arith.mulf %431, %432 : vector<4x256xf32>
    %434 = arith.addf %428, %433 : vector<4x256xf32>
    %435 = vector.extract_strided_slice %99 {offsets = [0, 11], sizes = [4, 1], strides = [1, 1]} : vector<4x16xf32> to vector<4x1xf32>
    %436 = vector.extract_strided_slice %367 {offsets = [11, 0], sizes = [1, 256], strides = [1, 1]} : vector<16x256xf32> to vector<1x256xf32>
    %437 = vector.broadcast %435 : vector<4x1xf32> to vector<4x256xf32>
    %438 = vector.broadcast %436 : vector<1x256xf32> to vector<4x256xf32>
    %439 = arith.mulf %437, %438 : vector<4x256xf32>
    %440 = arith.addf %434, %439 : vector<4x256xf32>
    %441 = vector.extract_strided_slice %99 {offsets = [0, 12], sizes = [4, 1], strides = [1, 1]} : vector<4x16xf32> to vector<4x1xf32>
    %442 = vector.extract_strided_slice %367 {offsets = [12, 0], sizes = [1, 256], strides = [1, 1]} : vector<16x256xf32> to vector<1x256xf32>
    %443 = vector.broadcast %441 : vector<4x1xf32> to vector<4x256xf32>
    %444 = vector.broadcast %442 : vector<1x256xf32> to vector<4x256xf32>
    %445 = arith.mulf %443, %444 : vector<4x256xf32>
    %446 = arith.addf %440, %445 : vector<4x256xf32>
    %447 = vector.extract_strided_slice %99 {offsets = [0, 13], sizes = [4, 1], strides = [1, 1]} : vector<4x16xf32> to vector<4x1xf32>
    %448 = vector.extract_strided_slice %367 {offsets = [13, 0], sizes = [1, 256], strides = [1, 1]} : vector<16x256xf32> to vector<1x256xf32>
    %449 = vector.broadcast %447 : vector<4x1xf32> to vector<4x256xf32>
    %450 = vector.broadcast %448 : vector<1x256xf32> to vector<4x256xf32>
    %451 = arith.mulf %449, %450 : vector<4x256xf32>
    %452 = arith.addf %446, %451 : vector<4x256xf32>
    %453 = vector.extract_strided_slice %99 {offsets = [0, 14], sizes = [4, 1], strides = [1, 1]} : vector<4x16xf32> to vector<4x1xf32>
    %454 = vector.extract_strided_slice %367 {offsets = [14, 0], sizes = [1, 256], strides = [1, 1]} : vector<16x256xf32> to vector<1x256xf32>
    %455 = vector.broadcast %453 : vector<4x1xf32> to vector<4x256xf32>
    %456 = vector.broadcast %454 : vector<1x256xf32> to vector<4x256xf32>
    %457 = arith.mulf %455, %456 : vector<4x256xf32>
    %458 = arith.addf %452, %457 : vector<4x256xf32>
    %459 = vector.extract_strided_slice %99 {offsets = [0, 15], sizes = [4, 1], strides = [1, 1]} : vector<4x16xf32> to vector<4x1xf32>
    %460 = vector.extract_strided_slice %367 {offsets = [15, 0], sizes = [1, 256], strides = [1, 1]} : vector<16x256xf32> to vector<1x256xf32>
    %461 = vector.broadcast %459 : vector<4x1xf32> to vector<4x256xf32>
    %462 = vector.broadcast %460 : vector<1x256xf32> to vector<4x256xf32>
    %463 = arith.mulf %461, %462 : vector<4x256xf32>
    %464 = arith.addf %458, %463 : vector<4x256xf32>
    %465 = vector.broadcast %100 : vector<4x1xf32> to vector<4x256xf32>
    %466 = arith.addf %464, %465 : vector<4x256xf32>
    %cst_62 = arith.constant 0.000000e+00 : f32
    %467 = vector.broadcast %cst_62 : f32 to vector<4x256xf32>
    %468 = vector.extract_strided_slice %101 {offsets = [0, 0], sizes = [4, 1], strides = [1, 1]} : vector<4x9xf32> to vector<4x1xf32>
    %c17_i32_63 = arith.constant 17 : i32
    %469 = tpu.dynamic_rotate %466 by %c17_i32_63 dim 1 : vector<4x256xf32>, i32 -> vector<4x256xf32>
    %470 = vector.broadcast %27 : vector<1x256xf32> to vector<4x256xf32>
    %471 = arith.mulf %469, %470 : vector<4x256xf32>
    %472 = vector.broadcast %468 : vector<4x1xf32> to vector<4x256xf32>
    %473 = arith.mulf %472, %471 : vector<4x256xf32>
    %474 = arith.addf %467, %473 : vector<4x256xf32>
    %475 = vector.extract_strided_slice %101 {offsets = [0, 1], sizes = [4, 1], strides = [1, 1]} : vector<4x9xf32> to vector<4x1xf32>
    %c16_i32_64 = arith.constant 16 : i32
    %476 = tpu.dynamic_rotate %466 by %c16_i32_64 dim 1 : vector<4x256xf32>, i32 -> vector<4x256xf32>
    %477 = vector.broadcast %31 : vector<1x256xf32> to vector<4x256xf32>
    %478 = arith.mulf %476, %477 : vector<4x256xf32>
    %479 = vector.broadcast %475 : vector<4x1xf32> to vector<4x256xf32>
    %480 = arith.mulf %479, %478 : vector<4x256xf32>
    %481 = arith.addf %474, %480 : vector<4x256xf32>
    %482 = vector.extract_strided_slice %101 {offsets = [0, 2], sizes = [4, 1], strides = [1, 1]} : vector<4x9xf32> to vector<4x1xf32>
    %c15_i32_65 = arith.constant 15 : i32
    %483 = tpu.dynamic_rotate %466 by %c15_i32_65 dim 1 : vector<4x256xf32>, i32 -> vector<4x256xf32>
    %484 = vector.broadcast %38 : vector<1x256xf32> to vector<4x256xf32>
    %485 = arith.mulf %483, %484 : vector<4x256xf32>
    %486 = vector.broadcast %482 : vector<4x1xf32> to vector<4x256xf32>
    %487 = arith.mulf %486, %485 : vector<4x256xf32>
    %488 = arith.addf %481, %487 : vector<4x256xf32>
    %489 = vector.extract_strided_slice %101 {offsets = [0, 3], sizes = [4, 1], strides = [1, 1]} : vector<4x9xf32> to vector<4x1xf32>
    %c1_i32_66 = arith.constant 1 : i32
    %490 = tpu.dynamic_rotate %466 by %c1_i32_66 dim 1 : vector<4x256xf32>, i32 -> vector<4x256xf32>
    %491 = vector.broadcast %50 : vector<1x256xf32> to vector<4x256xf32>
    %492 = arith.mulf %490, %491 : vector<4x256xf32>
    %493 = vector.broadcast %489 : vector<4x1xf32> to vector<4x256xf32>
    %494 = arith.mulf %493, %492 : vector<4x256xf32>
    %495 = arith.addf %488, %494 : vector<4x256xf32>
    %496 = vector.extract_strided_slice %101 {offsets = [0, 4], sizes = [4, 1], strides = [1, 1]} : vector<4x9xf32> to vector<4x1xf32>
    %497 = vector.broadcast %496 : vector<4x1xf32> to vector<4x256xf32>
    %498 = arith.mulf %497, %466 : vector<4x256xf32>
    %499 = arith.addf %495, %498 : vector<4x256xf32>
    %500 = vector.extract_strided_slice %101 {offsets = [0, 5], sizes = [4, 1], strides = [1, 1]} : vector<4x9xf32> to vector<4x1xf32>
    %c255_i32_67 = arith.constant 255 : i32
    %501 = tpu.dynamic_rotate %466 by %c255_i32_67 dim 1 : vector<4x256xf32>, i32 -> vector<4x256xf32>
    %502 = vector.broadcast %54 : vector<1x256xf32> to vector<4x256xf32>
    %503 = arith.mulf %501, %502 : vector<4x256xf32>
    %504 = vector.broadcast %500 : vector<4x1xf32> to vector<4x256xf32>
    %505 = arith.mulf %504, %503 : vector<4x256xf32>
    %506 = arith.addf %499, %505 : vector<4x256xf32>
    %507 = vector.extract_strided_slice %101 {offsets = [0, 6], sizes = [4, 1], strides = [1, 1]} : vector<4x9xf32> to vector<4x1xf32>
    %c241_i32_68 = arith.constant 241 : i32
    %508 = tpu.dynamic_rotate %466 by %c241_i32_68 dim 1 : vector<4x256xf32>, i32 -> vector<4x256xf32>
    %509 = vector.broadcast %69 : vector<1x256xf32> to vector<4x256xf32>
    %510 = arith.mulf %508, %509 : vector<4x256xf32>
    %511 = vector.broadcast %507 : vector<4x1xf32> to vector<4x256xf32>
    %512 = arith.mulf %511, %510 : vector<4x256xf32>
    %513 = arith.addf %506, %512 : vector<4x256xf32>
    %514 = vector.extract_strided_slice %101 {offsets = [0, 7], sizes = [4, 1], strides = [1, 1]} : vector<4x9xf32> to vector<4x1xf32>
    %c240_i32_69 = arith.constant 240 : i32
    %515 = tpu.dynamic_rotate %466 by %c240_i32_69 dim 1 : vector<4x256xf32>, i32 -> vector<4x256xf32>
    %516 = vector.broadcast %73 : vector<1x256xf32> to vector<4x256xf32>
    %517 = arith.mulf %515, %516 : vector<4x256xf32>
    %518 = vector.broadcast %514 : vector<4x1xf32> to vector<4x256xf32>
    %519 = arith.mulf %518, %517 : vector<4x256xf32>
    %520 = arith.addf %513, %519 : vector<4x256xf32>
    %521 = vector.extract_strided_slice %101 {offsets = [0, 8], sizes = [4, 1], strides = [1, 1]} : vector<4x9xf32> to vector<4x1xf32>
    %c239_i32_70 = arith.constant 239 : i32
    %522 = tpu.dynamic_rotate %466 by %c239_i32_70 dim 1 : vector<4x256xf32>, i32 -> vector<4x256xf32>
    %523 = vector.broadcast %80 : vector<1x256xf32> to vector<4x256xf32>
    %524 = arith.mulf %522, %523 : vector<4x256xf32>
    %525 = vector.broadcast %521 : vector<4x1xf32> to vector<4x256xf32>
    %526 = arith.mulf %525, %524 : vector<4x256xf32>
    %527 = arith.addf %520, %526 : vector<4x256xf32>
    %528 = vector.broadcast %102 : vector<4x1xf32> to vector<4x256xf32>
    %529 = arith.addf %527, %528 : vector<4x256xf32>
    %530 = tpu.concatenate %466, %529 in 0 : vector<4x256xf32>, vector<4x256xf32> -> vector<8x256xf32>
    %531 = arith.addf %530, %105 : vector<8x256xf32>
    %532 = arith.index_cast %c0_i32_40 : i32 to index
    %c0_71 = arith.constant 0 : index
    %c0_72 = arith.constant 0 : index
    %533 = vector.load %arg3[%532, %c0_71, %c0_72] : memref<2x8x256xf32, #tpu.memory_space<vmem>>, vector<1x8x256xf32>
    %534 = vector.shape_cast %533 : vector<1x8x256xf32> to vector<8x256xf32>
    %535 = vector.shape_cast %531 : vector<8x256xf32> to vector<1x8x256xf32>
    tpu.vector_store %arg3[%532, %c0_71, %c0_72], %535 {strides = array<i32>} : memref<2x8x256xf32, #tpu.memory_space<vmem>>, vector<1x8x256xf32>,
    %c1_i32_73 = arith.constant 1 : i32
    %536 = arith.index_cast %c1_i32_73 : i32 to index
    %c0_74 = arith.constant 0 : index
    %c0_75 = arith.constant 0 : index
    %537 = vector.load %arg1[%536, %c0_74, %c0_75] : memref<2x8x256xf32, #tpu.memory_space<vmem>>, vector<1x8x256xf32>
    %538 = vector.shape_cast %537 : vector<1x8x256xf32> to vector<8x256xf32>
    %c255_i32_76 = arith.constant 255 : i32
    %539 = tpu.dynamic_rotate %538 by %c255_i32_76 dim 1 : vector<8x256xf32>, i32 -> vector<8x256xf32>
    %c1_i32_77 = arith.constant 1 : i32
    %540 = tpu.dynamic_rotate %538 by %c1_i32_77 dim 1 : vector<8x256xf32>, i32 -> vector<8x256xf32>
    %541 = vector.shape_cast %8 : vector<1x256xi1> to vector<1x256xi1>
    %542 = vector.broadcast %541 : vector<1x256xi1> to vector<8x256xi1>
    %543 = arith.select %542, %539, %540 : vector<8x256xi1>, vector<8x256xf32>
    %544 = arith.addf %538, %543 : vector<8x256xf32>
    %c240_i32_78 = arith.constant 240 : i32
    %545 = tpu.dynamic_rotate %544 by %c240_i32_78 dim 1 : vector<8x256xf32>, i32 -> vector<8x256xf32>
    %c16_i32_79 = arith.constant 16 : i32
    %546 = tpu.dynamic_rotate %544 by %c16_i32_79 dim 1 : vector<8x256xf32>, i32 -> vector<8x256xf32>
    %547 = vector.shape_cast %12 : vector<1x256xi1> to vector<1x256xi1>
    %548 = vector.broadcast %547 : vector<1x256xi1> to vector<8x256xi1>
    %549 = arith.select %548, %545, %546 : vector<8x256xi1>, vector<8x256xf32>
    %550 = arith.addf %544, %549 : vector<8x256xf32>
    %cst_80 = arith.constant 2.500000e-01 : f32
    %551 = vector.broadcast %cst_80 : f32 to vector<8x256xf32>
    %552 = arith.mulf %551, %550 : vector<8x256xf32>
    %cst_81 = arith.constant 0.000000e+00 : f32
    %553 = vector.broadcast %cst_81 : f32 to vector<16x256xf32>
    %554 = vector.extract_strided_slice %93 {offsets = [0, 0], sizes = [16, 1], strides = [1, 1]} : vector<16x8xf32> to vector<16x1xf32>
    %555 = vector.extract_strided_slice %552 {offsets = [0, 0], sizes = [1, 256], strides = [1, 1]} : vector<8x256xf32> to vector<1x256xf32>
    %556 = vector.broadcast %554 : vector<16x1xf32> to vector<16x256xf32>
    %557 = vector.broadcast %555 : vector<1x256xf32> to vector<16x256xf32>
    %558 = arith.mulf %556, %557 : vector<16x256xf32>
    %559 = arith.addf %553, %558 : vector<16x256xf32>
    %560 = vector.extract_strided_slice %93 {offsets = [0, 1], sizes = [16, 1], strides = [1, 1]} : vector<16x8xf32> to vector<16x1xf32>
    %561 = vector.extract_strided_slice %552 {offsets = [1, 0], sizes = [1, 256], strides = [1, 1]} : vector<8x256xf32> to vector<1x256xf32>
    %562 = vector.broadcast %560 : vector<16x1xf32> to vector<16x256xf32>
    %563 = vector.broadcast %561 : vector<1x256xf32> to vector<16x256xf32>
    %564 = arith.mulf %562, %563 : vector<16x256xf32>
    %565 = arith.addf %559, %564 : vector<16x256xf32>
    %566 = vector.extract_strided_slice %93 {offsets = [0, 2], sizes = [16, 1], strides = [1, 1]} : vector<16x8xf32> to vector<16x1xf32>
    %567 = vector.extract_strided_slice %552 {offsets = [2, 0], sizes = [1, 256], strides = [1, 1]} : vector<8x256xf32> to vector<1x256xf32>
    %568 = vector.broadcast %566 : vector<16x1xf32> to vector<16x256xf32>
    %569 = vector.broadcast %567 : vector<1x256xf32> to vector<16x256xf32>
    %570 = arith.mulf %568, %569 : vector<16x256xf32>
    %571 = arith.addf %565, %570 : vector<16x256xf32>
    %572 = vector.extract_strided_slice %93 {offsets = [0, 3], sizes = [16, 1], strides = [1, 1]} : vector<16x8xf32> to vector<16x1xf32>
    %573 = vector.extract_strided_slice %552 {offsets = [3, 0], sizes = [1, 256], strides = [1, 1]} : vector<8x256xf32> to vector<1x256xf32>
    %574 = vector.broadcast %572 : vector<16x1xf32> to vector<16x256xf32>
    %575 = vector.broadcast %573 : vector<1x256xf32> to vector<16x256xf32>
    %576 = arith.mulf %574, %575 : vector<16x256xf32>
    %577 = arith.addf %571, %576 : vector<16x256xf32>
    %578 = vector.extract_strided_slice %93 {offsets = [0, 4], sizes = [16, 1], strides = [1, 1]} : vector<16x8xf32> to vector<16x1xf32>
    %579 = vector.extract_strided_slice %552 {offsets = [4, 0], sizes = [1, 256], strides = [1, 1]} : vector<8x256xf32> to vector<1x256xf32>
    %580 = vector.broadcast %578 : vector<16x1xf32> to vector<16x256xf32>
    %581 = vector.broadcast %579 : vector<1x256xf32> to vector<16x256xf32>
    %582 = arith.mulf %580, %581 : vector<16x256xf32>
    %583 = arith.addf %577, %582 : vector<16x256xf32>
    %584 = vector.extract_strided_slice %93 {offsets = [0, 5], sizes = [16, 1], strides = [1, 1]} : vector<16x8xf32> to vector<16x1xf32>
    %585 = vector.extract_strided_slice %552 {offsets = [5, 0], sizes = [1, 256], strides = [1, 1]} : vector<8x256xf32> to vector<1x256xf32>
    %586 = vector.broadcast %584 : vector<16x1xf32> to vector<16x256xf32>
    %587 = vector.broadcast %585 : vector<1x256xf32> to vector<16x256xf32>
    %588 = arith.mulf %586, %587 : vector<16x256xf32>
    %589 = arith.addf %583, %588 : vector<16x256xf32>
    %590 = vector.extract_strided_slice %93 {offsets = [0, 6], sizes = [16, 1], strides = [1, 1]} : vector<16x8xf32> to vector<16x1xf32>
    %591 = vector.extract_strided_slice %552 {offsets = [6, 0], sizes = [1, 256], strides = [1, 1]} : vector<8x256xf32> to vector<1x256xf32>
    %592 = vector.broadcast %590 : vector<16x1xf32> to vector<16x256xf32>
    %593 = vector.broadcast %591 : vector<1x256xf32> to vector<16x256xf32>
    %594 = arith.mulf %592, %593 : vector<16x256xf32>
    %595 = arith.addf %589, %594 : vector<16x256xf32>
    %596 = vector.extract_strided_slice %93 {offsets = [0, 7], sizes = [16, 1], strides = [1, 1]} : vector<16x8xf32> to vector<16x1xf32>
    %597 = vector.extract_strided_slice %552 {offsets = [7, 0], sizes = [1, 256], strides = [1, 1]} : vector<8x256xf32> to vector<1x256xf32>
    %598 = vector.broadcast %596 : vector<16x1xf32> to vector<16x256xf32>
    %599 = vector.broadcast %597 : vector<1x256xf32> to vector<16x256xf32>
    %600 = arith.mulf %598, %599 : vector<16x256xf32>
    %601 = arith.addf %595, %600 : vector<16x256xf32>
    %602 = vector.broadcast %94 : vector<16x1xf32> to vector<16x256xf32>
    %603 = arith.addf %601, %602 : vector<16x256xf32>
    %cst_82 = arith.constant 0.000000e+00 : f32
    %604 = vector.broadcast %cst_82 : f32 to vector<16x256xf32>
    %605 = vector.extract_strided_slice %95 {offsets = [0, 0], sizes = [16, 1], strides = [1, 1]} : vector<16x5xf32> to vector<16x1xf32>
    %c4_i32_83 = arith.constant 4 : i32
    %606 = tpu.dynamic_rotate %603 by %c4_i32_83 dim 1 : vector<16x256xf32>, i32 -> vector<16x256xf32>
    %607 = vector.broadcast %42 : vector<1x256xf32> to vector<16x256xf32>
    %608 = arith.mulf %606, %607 : vector<16x256xf32>
    %609 = vector.broadcast %605 : vector<16x1xf32> to vector<16x256xf32>
    %610 = arith.mulf %609, %608 : vector<16x256xf32>
    %611 = arith.addf %604, %610 : vector<16x256xf32>
    %612 = vector.extract_strided_slice %95 {offsets = [0, 1], sizes = [16, 1], strides = [1, 1]} : vector<16x5xf32> to vector<16x1xf32>
    %c2_i32_84 = arith.constant 2 : i32
    %613 = tpu.dynamic_rotate %603 by %c2_i32_84 dim 1 : vector<16x256xf32>, i32 -> vector<16x256xf32>
    %614 = vector.broadcast %46 : vector<1x256xf32> to vector<16x256xf32>
    %615 = arith.mulf %613, %614 : vector<16x256xf32>
    %616 = vector.broadcast %612 : vector<16x1xf32> to vector<16x256xf32>
    %617 = arith.mulf %616, %615 : vector<16x256xf32>
    %618 = arith.addf %611, %617 : vector<16x256xf32>
    %619 = vector.extract_strided_slice %95 {offsets = [0, 2], sizes = [16, 1], strides = [1, 1]} : vector<16x5xf32> to vector<16x1xf32>
    %620 = vector.broadcast %619 : vector<16x1xf32> to vector<16x256xf32>
    %621 = arith.mulf %620, %603 : vector<16x256xf32>
    %622 = arith.addf %618, %621 : vector<16x256xf32>
    %623 = vector.extract_strided_slice %95 {offsets = [0, 3], sizes = [16, 1], strides = [1, 1]} : vector<16x5xf32> to vector<16x1xf32>
    %c254_i32_85 = arith.constant 254 : i32
    %624 = tpu.dynamic_rotate %603 by %c254_i32_85 dim 1 : vector<16x256xf32>, i32 -> vector<16x256xf32>
    %625 = vector.broadcast %58 : vector<1x256xf32> to vector<16x256xf32>
    %626 = arith.mulf %624, %625 : vector<16x256xf32>
    %627 = vector.broadcast %623 : vector<16x1xf32> to vector<16x256xf32>
    %628 = arith.mulf %627, %626 : vector<16x256xf32>
    %629 = arith.addf %622, %628 : vector<16x256xf32>
    %630 = vector.extract_strided_slice %95 {offsets = [0, 4], sizes = [16, 1], strides = [1, 1]} : vector<16x5xf32> to vector<16x1xf32>
    %c252_i32_86 = arith.constant 252 : i32
    %631 = tpu.dynamic_rotate %603 by %c252_i32_86 dim 1 : vector<16x256xf32>, i32 -> vector<16x256xf32>
    %632 = vector.broadcast %62 : vector<1x256xf32> to vector<16x256xf32>
    %633 = arith.mulf %631, %632 : vector<16x256xf32>
    %634 = vector.broadcast %630 : vector<16x1xf32> to vector<16x256xf32>
    %635 = arith.mulf %634, %633 : vector<16x256xf32>
    %636 = arith.addf %629, %635 : vector<16x256xf32>
    %637 = vector.broadcast %96 : vector<16x1xf32> to vector<16x256xf32>
    %638 = arith.addf %636, %637 : vector<16x256xf32>
    %cst_87 = arith.constant 0.000000e+00 : f32
    %639 = vector.broadcast %cst_87 : f32 to vector<16x256xf32>
    %640 = vector.extract_strided_slice %97 {offsets = [0, 0], sizes = [16, 1], strides = [1, 1]} : vector<16x5xf32> to vector<16x1xf32>
    %c64_i32_88 = arith.constant 64 : i32
    %641 = tpu.dynamic_rotate %638 by %c64_i32_88 dim 1 : vector<16x256xf32>, i32 -> vector<16x256xf32>
    %642 = vector.broadcast %16 : vector<1x256xf32> to vector<16x256xf32>
    %643 = arith.mulf %641, %642 : vector<16x256xf32>
    %644 = vector.broadcast %640 : vector<16x1xf32> to vector<16x256xf32>
    %645 = arith.mulf %644, %643 : vector<16x256xf32>
    %646 = arith.addf %639, %645 : vector<16x256xf32>
    %647 = vector.extract_strided_slice %97 {offsets = [0, 1], sizes = [16, 1], strides = [1, 1]} : vector<16x5xf32> to vector<16x1xf32>
    %c32_i32_89 = arith.constant 32 : i32
    %648 = tpu.dynamic_rotate %638 by %c32_i32_89 dim 1 : vector<16x256xf32>, i32 -> vector<16x256xf32>
    %649 = vector.broadcast %20 : vector<1x256xf32> to vector<16x256xf32>
    %650 = arith.mulf %648, %649 : vector<16x256xf32>
    %651 = vector.broadcast %647 : vector<16x1xf32> to vector<16x256xf32>
    %652 = arith.mulf %651, %650 : vector<16x256xf32>
    %653 = arith.addf %646, %652 : vector<16x256xf32>
    %654 = vector.extract_strided_slice %97 {offsets = [0, 2], sizes = [16, 1], strides = [1, 1]} : vector<16x5xf32> to vector<16x1xf32>
    %655 = vector.broadcast %654 : vector<16x1xf32> to vector<16x256xf32>
    %656 = arith.mulf %655, %638 : vector<16x256xf32>
    %657 = arith.addf %653, %656 : vector<16x256xf32>
    %658 = vector.extract_strided_slice %97 {offsets = [0, 3], sizes = [16, 1], strides = [1, 1]} : vector<16x5xf32> to vector<16x1xf32>
    %c224_i32_90 = arith.constant 224 : i32
    %659 = tpu.dynamic_rotate %638 by %c224_i32_90 dim 1 : vector<16x256xf32>, i32 -> vector<16x256xf32>
    %660 = vector.broadcast %84 : vector<1x256xf32> to vector<16x256xf32>
    %661 = arith.mulf %659, %660 : vector<16x256xf32>
    %662 = vector.broadcast %658 : vector<16x1xf32> to vector<16x256xf32>
    %663 = arith.mulf %662, %661 : vector<16x256xf32>
    %664 = arith.addf %657, %663 : vector<16x256xf32>
    %665 = vector.extract_strided_slice %97 {offsets = [0, 4], sizes = [16, 1], strides = [1, 1]} : vector<16x5xf32> to vector<16x1xf32>
    %c192_i32_91 = arith.constant 192 : i32
    %666 = tpu.dynamic_rotate %638 by %c192_i32_91 dim 1 : vector<16x256xf32>, i32 -> vector<16x256xf32>
    %667 = vector.broadcast %88 : vector<1x256xf32> to vector<16x256xf32>
    %668 = arith.mulf %666, %667 : vector<16x256xf32>
    %669 = vector.broadcast %665 : vector<16x1xf32> to vector<16x256xf32>
    %670 = arith.mulf %669, %668 : vector<16x256xf32>
    %671 = arith.addf %664, %670 : vector<16x256xf32>
    %672 = vector.broadcast %98 : vector<16x1xf32> to vector<16x256xf32>
    %673 = arith.addf %671, %672 : vector<16x256xf32>
    %cst_92 = arith.constant 5.000000e-01 : f32
    %674 = vector.broadcast %cst_92 : f32 to vector<16x256xf32>
    %675 = arith.mulf %674, %673 : vector<16x256xf32>
    %676 = math.tanh %675 : vector<16x256xf32>
    %cst_93 = arith.constant 1.000000e+00 : f32
    %677 = vector.broadcast %cst_93 : f32 to vector<16x256xf32>
    %678 = arith.addf %676, %677 : vector<16x256xf32>
    %cst_94 = arith.constant 5.000000e-01 : f32
    %679 = vector.broadcast %cst_94 : f32 to vector<16x256xf32>
    %680 = arith.mulf %679, %678 : vector<16x256xf32>
    %cst_95 = arith.constant 0.000000e+00 : f32
    %681 = vector.broadcast %cst_95 : f32 to vector<8x256xf32>
    %682 = vector.extract_strided_slice %89 {offsets = [0, 0], sizes = [8, 1], strides = [1, 1]} : vector<8x8xf32> to vector<8x1xf32>
    %683 = vector.extract_strided_slice %538 {offsets = [0, 0], sizes = [1, 256], strides = [1, 1]} : vector<8x256xf32> to vector<1x256xf32>
    %684 = vector.broadcast %682 : vector<8x1xf32> to vector<8x256xf32>
    %685 = vector.broadcast %683 : vector<1x256xf32> to vector<8x256xf32>
    %686 = arith.mulf %684, %685 : vector<8x256xf32>
    %687 = arith.addf %681, %686 : vector<8x256xf32>
    %688 = vector.extract_strided_slice %89 {offsets = [0, 1], sizes = [8, 1], strides = [1, 1]} : vector<8x8xf32> to vector<8x1xf32>
    %689 = vector.extract_strided_slice %538 {offsets = [1, 0], sizes = [1, 256], strides = [1, 1]} : vector<8x256xf32> to vector<1x256xf32>
    %690 = vector.broadcast %688 : vector<8x1xf32> to vector<8x256xf32>
    %691 = vector.broadcast %689 : vector<1x256xf32> to vector<8x256xf32>
    %692 = arith.mulf %690, %691 : vector<8x256xf32>
    %693 = arith.addf %687, %692 : vector<8x256xf32>
    %694 = vector.extract_strided_slice %89 {offsets = [0, 2], sizes = [8, 1], strides = [1, 1]} : vector<8x8xf32> to vector<8x1xf32>
    %695 = vector.extract_strided_slice %538 {offsets = [2, 0], sizes = [1, 256], strides = [1, 1]} : vector<8x256xf32> to vector<1x256xf32>
    %696 = vector.broadcast %694 : vector<8x1xf32> to vector<8x256xf32>
    %697 = vector.broadcast %695 : vector<1x256xf32> to vector<8x256xf32>
    %698 = arith.mulf %696, %697 : vector<8x256xf32>
    %699 = arith.addf %693, %698 : vector<8x256xf32>
    %700 = vector.extract_strided_slice %89 {offsets = [0, 3], sizes = [8, 1], strides = [1, 1]} : vector<8x8xf32> to vector<8x1xf32>
    %701 = vector.extract_strided_slice %538 {offsets = [3, 0], sizes = [1, 256], strides = [1, 1]} : vector<8x256xf32> to vector<1x256xf32>
    %702 = vector.broadcast %700 : vector<8x1xf32> to vector<8x256xf32>
    %703 = vector.broadcast %701 : vector<1x256xf32> to vector<8x256xf32>
    %704 = arith.mulf %702, %703 : vector<8x256xf32>
    %705 = arith.addf %699, %704 : vector<8x256xf32>
    %706 = vector.extract_strided_slice %89 {offsets = [0, 4], sizes = [8, 1], strides = [1, 1]} : vector<8x8xf32> to vector<8x1xf32>
    %707 = vector.extract_strided_slice %538 {offsets = [4, 0], sizes = [1, 256], strides = [1, 1]} : vector<8x256xf32> to vector<1x256xf32>
    %708 = vector.broadcast %706 : vector<8x1xf32> to vector<8x256xf32>
    %709 = vector.broadcast %707 : vector<1x256xf32> to vector<8x256xf32>
    %710 = arith.mulf %708, %709 : vector<8x256xf32>
    %711 = arith.addf %705, %710 : vector<8x256xf32>
    %712 = vector.extract_strided_slice %89 {offsets = [0, 5], sizes = [8, 1], strides = [1, 1]} : vector<8x8xf32> to vector<8x1xf32>
    %713 = vector.extract_strided_slice %538 {offsets = [5, 0], sizes = [1, 256], strides = [1, 1]} : vector<8x256xf32> to vector<1x256xf32>
    %714 = vector.broadcast %712 : vector<8x1xf32> to vector<8x256xf32>
    %715 = vector.broadcast %713 : vector<1x256xf32> to vector<8x256xf32>
    %716 = arith.mulf %714, %715 : vector<8x256xf32>
    %717 = arith.addf %711, %716 : vector<8x256xf32>
    %718 = vector.extract_strided_slice %89 {offsets = [0, 6], sizes = [8, 1], strides = [1, 1]} : vector<8x8xf32> to vector<8x1xf32>
    %719 = vector.extract_strided_slice %538 {offsets = [6, 0], sizes = [1, 256], strides = [1, 1]} : vector<8x256xf32> to vector<1x256xf32>
    %720 = vector.broadcast %718 : vector<8x1xf32> to vector<8x256xf32>
    %721 = vector.broadcast %719 : vector<1x256xf32> to vector<8x256xf32>
    %722 = arith.mulf %720, %721 : vector<8x256xf32>
    %723 = arith.addf %717, %722 : vector<8x256xf32>
    %724 = vector.extract_strided_slice %89 {offsets = [0, 7], sizes = [8, 1], strides = [1, 1]} : vector<8x8xf32> to vector<8x1xf32>
    %725 = vector.extract_strided_slice %538 {offsets = [7, 0], sizes = [1, 256], strides = [1, 1]} : vector<8x256xf32> to vector<1x256xf32>
    %726 = vector.broadcast %724 : vector<8x1xf32> to vector<8x256xf32>
    %727 = vector.broadcast %725 : vector<1x256xf32> to vector<8x256xf32>
    %728 = arith.mulf %726, %727 : vector<8x256xf32>
    %729 = arith.addf %723, %728 : vector<8x256xf32>
    %730 = vector.broadcast %90 : vector<8x1xf32> to vector<8x256xf32>
    %731 = arith.addf %729, %730 : vector<8x256xf32>
    %cst_96 = arith.constant 0.000000e+00 : f32
    %732 = vector.broadcast %cst_96 : f32 to vector<8x256xf32>
    %733 = arith.maximumf %731, %732 : vector<8x256xf32>
    %cst_97 = arith.constant 0.000000e+00 : f32
    %734 = vector.broadcast %cst_97 : f32 to vector<8x256xf32>
    %735 = vector.extract_strided_slice %91 {offsets = [0, 0], sizes = [8, 1], strides = [1, 1]} : vector<8x9xf32> to vector<8x1xf32>
    %c17_i32_98 = arith.constant 17 : i32
    %736 = tpu.dynamic_rotate %733 by %c17_i32_98 dim 1 : vector<8x256xf32>, i32 -> vector<8x256xf32>
    %737 = vector.broadcast %27 : vector<1x256xf32> to vector<8x256xf32>
    %738 = arith.mulf %736, %737 : vector<8x256xf32>
    %739 = vector.broadcast %735 : vector<8x1xf32> to vector<8x256xf32>
    %740 = arith.mulf %739, %738 : vector<8x256xf32>
    %741 = arith.addf %734, %740 : vector<8x256xf32>
    %742 = vector.extract_strided_slice %91 {offsets = [0, 1], sizes = [8, 1], strides = [1, 1]} : vector<8x9xf32> to vector<8x1xf32>
    %c16_i32_99 = arith.constant 16 : i32
    %743 = tpu.dynamic_rotate %733 by %c16_i32_99 dim 1 : vector<8x256xf32>, i32 -> vector<8x256xf32>
    %744 = vector.broadcast %31 : vector<1x256xf32> to vector<8x256xf32>
    %745 = arith.mulf %743, %744 : vector<8x256xf32>
    %746 = vector.broadcast %742 : vector<8x1xf32> to vector<8x256xf32>
    %747 = arith.mulf %746, %745 : vector<8x256xf32>
    %748 = arith.addf %741, %747 : vector<8x256xf32>
    %749 = vector.extract_strided_slice %91 {offsets = [0, 2], sizes = [8, 1], strides = [1, 1]} : vector<8x9xf32> to vector<8x1xf32>
    %c15_i32_100 = arith.constant 15 : i32
    %750 = tpu.dynamic_rotate %733 by %c15_i32_100 dim 1 : vector<8x256xf32>, i32 -> vector<8x256xf32>
    %751 = vector.broadcast %38 : vector<1x256xf32> to vector<8x256xf32>
    %752 = arith.mulf %750, %751 : vector<8x256xf32>
    %753 = vector.broadcast %749 : vector<8x1xf32> to vector<8x256xf32>
    %754 = arith.mulf %753, %752 : vector<8x256xf32>
    %755 = arith.addf %748, %754 : vector<8x256xf32>
    %756 = vector.extract_strided_slice %91 {offsets = [0, 3], sizes = [8, 1], strides = [1, 1]} : vector<8x9xf32> to vector<8x1xf32>
    %c1_i32_101 = arith.constant 1 : i32
    %757 = tpu.dynamic_rotate %733 by %c1_i32_101 dim 1 : vector<8x256xf32>, i32 -> vector<8x256xf32>
    %758 = vector.broadcast %50 : vector<1x256xf32> to vector<8x256xf32>
    %759 = arith.mulf %757, %758 : vector<8x256xf32>
    %760 = vector.broadcast %756 : vector<8x1xf32> to vector<8x256xf32>
    %761 = arith.mulf %760, %759 : vector<8x256xf32>
    %762 = arith.addf %755, %761 : vector<8x256xf32>
    %763 = vector.extract_strided_slice %91 {offsets = [0, 4], sizes = [8, 1], strides = [1, 1]} : vector<8x9xf32> to vector<8x1xf32>
    %764 = vector.broadcast %763 : vector<8x1xf32> to vector<8x256xf32>
    %765 = arith.mulf %764, %733 : vector<8x256xf32>
    %766 = arith.addf %762, %765 : vector<8x256xf32>
    %767 = vector.extract_strided_slice %91 {offsets = [0, 5], sizes = [8, 1], strides = [1, 1]} : vector<8x9xf32> to vector<8x1xf32>
    %c255_i32_102 = arith.constant 255 : i32
    %768 = tpu.dynamic_rotate %733 by %c255_i32_102 dim 1 : vector<8x256xf32>, i32 -> vector<8x256xf32>
    %769 = vector.broadcast %54 : vector<1x256xf32> to vector<8x256xf32>
    %770 = arith.mulf %768, %769 : vector<8x256xf32>
    %771 = vector.broadcast %767 : vector<8x1xf32> to vector<8x256xf32>
    %772 = arith.mulf %771, %770 : vector<8x256xf32>
    %773 = arith.addf %766, %772 : vector<8x256xf32>
    %774 = vector.extract_strided_slice %91 {offsets = [0, 6], sizes = [8, 1], strides = [1, 1]} : vector<8x9xf32> to vector<8x1xf32>
    %c241_i32_103 = arith.constant 241 : i32
    %775 = tpu.dynamic_rotate %733 by %c241_i32_103 dim 1 : vector<8x256xf32>, i32 -> vector<8x256xf32>
    %776 = vector.broadcast %69 : vector<1x256xf32> to vector<8x256xf32>
    %777 = arith.mulf %775, %776 : vector<8x256xf32>
    %778 = vector.broadcast %774 : vector<8x1xf32> to vector<8x256xf32>
    %779 = arith.mulf %778, %777 : vector<8x256xf32>
    %780 = arith.addf %773, %779 : vector<8x256xf32>
    %781 = vector.extract_strided_slice %91 {offsets = [0, 7], sizes = [8, 1], strides = [1, 1]} : vector<8x9xf32> to vector<8x1xf32>
    %c240_i32_104 = arith.constant 240 : i32
    %782 = tpu.dynamic_rotate %733 by %c240_i32_104 dim 1 : vector<8x256xf32>, i32 -> vector<8x256xf32>
    %783 = vector.broadcast %73 : vector<1x256xf32> to vector<8x256xf32>
    %784 = arith.mulf %782, %783 : vector<8x256xf32>
    %785 = vector.broadcast %781 : vector<8x1xf32> to vector<8x256xf32>
    %786 = arith.mulf %785, %784 : vector<8x256xf32>
    %787 = arith.addf %780, %786 : vector<8x256xf32>
    %788 = vector.extract_strided_slice %91 {offsets = [0, 8], sizes = [8, 1], strides = [1, 1]} : vector<8x9xf32> to vector<8x1xf32>
    %c239_i32_105 = arith.constant 239 : i32
    %789 = tpu.dynamic_rotate %733 by %c239_i32_105 dim 1 : vector<8x256xf32>, i32 -> vector<8x256xf32>
    %790 = vector.broadcast %80 : vector<1x256xf32> to vector<8x256xf32>
    %791 = arith.mulf %789, %790 : vector<8x256xf32>
    %792 = vector.broadcast %788 : vector<8x1xf32> to vector<8x256xf32>
    %793 = arith.mulf %792, %791 : vector<8x256xf32>
    %794 = arith.addf %787, %793 : vector<8x256xf32>
    %795 = vector.broadcast %92 : vector<8x1xf32> to vector<8x256xf32>
    %796 = arith.addf %794, %795 : vector<8x256xf32>
    %cst_106 = arith.constant 0.000000e+00 : f32
    %797 = vector.broadcast %cst_106 : f32 to vector<8x256xf32>
    %798 = arith.maximumf %796, %797 : vector<8x256xf32>
    %799 = tpu.concatenate %733, %798 in 0 : vector<8x256xf32>, vector<8x256xf32> -> vector<16x256xf32>
    %800 = arith.mulf %799, %680 : vector<16x256xf32>
    %cst_107 = arith.constant 0.000000e+00 : f32
    %801 = vector.broadcast %cst_107 : f32 to vector<4x256xf32>
    %802 = vector.extract_strided_slice %99 {offsets = [0, 0], sizes = [4, 1], strides = [1, 1]} : vector<4x16xf32> to vector<4x1xf32>
    %803 = vector.extract_strided_slice %800 {offsets = [0, 0], sizes = [1, 256], strides = [1, 1]} : vector<16x256xf32> to vector<1x256xf32>
    %804 = vector.broadcast %802 : vector<4x1xf32> to vector<4x256xf32>
    %805 = vector.broadcast %803 : vector<1x256xf32> to vector<4x256xf32>
    %806 = arith.mulf %804, %805 : vector<4x256xf32>
    %807 = arith.addf %801, %806 : vector<4x256xf32>
    %808 = vector.extract_strided_slice %99 {offsets = [0, 1], sizes = [4, 1], strides = [1, 1]} : vector<4x16xf32> to vector<4x1xf32>
    %809 = vector.extract_strided_slice %800 {offsets = [1, 0], sizes = [1, 256], strides = [1, 1]} : vector<16x256xf32> to vector<1x256xf32>
    %810 = vector.broadcast %808 : vector<4x1xf32> to vector<4x256xf32>
    %811 = vector.broadcast %809 : vector<1x256xf32> to vector<4x256xf32>
    %812 = arith.mulf %810, %811 : vector<4x256xf32>
    %813 = arith.addf %807, %812 : vector<4x256xf32>
    %814 = vector.extract_strided_slice %99 {offsets = [0, 2], sizes = [4, 1], strides = [1, 1]} : vector<4x16xf32> to vector<4x1xf32>
    %815 = vector.extract_strided_slice %800 {offsets = [2, 0], sizes = [1, 256], strides = [1, 1]} : vector<16x256xf32> to vector<1x256xf32>
    %816 = vector.broadcast %814 : vector<4x1xf32> to vector<4x256xf32>
    %817 = vector.broadcast %815 : vector<1x256xf32> to vector<4x256xf32>
    %818 = arith.mulf %816, %817 : vector<4x256xf32>
    %819 = arith.addf %813, %818 : vector<4x256xf32>
    %820 = vector.extract_strided_slice %99 {offsets = [0, 3], sizes = [4, 1], strides = [1, 1]} : vector<4x16xf32> to vector<4x1xf32>
    %821 = vector.extract_strided_slice %800 {offsets = [3, 0], sizes = [1, 256], strides = [1, 1]} : vector<16x256xf32> to vector<1x256xf32>
    %822 = vector.broadcast %820 : vector<4x1xf32> to vector<4x256xf32>
    %823 = vector.broadcast %821 : vector<1x256xf32> to vector<4x256xf32>
    %824 = arith.mulf %822, %823 : vector<4x256xf32>
    %825 = arith.addf %819, %824 : vector<4x256xf32>
    %826 = vector.extract_strided_slice %99 {offsets = [0, 4], sizes = [4, 1], strides = [1, 1]} : vector<4x16xf32> to vector<4x1xf32>
    %827 = vector.extract_strided_slice %800 {offsets = [4, 0], sizes = [1, 256], strides = [1, 1]} : vector<16x256xf32> to vector<1x256xf32>
    %828 = vector.broadcast %826 : vector<4x1xf32> to vector<4x256xf32>
    %829 = vector.broadcast %827 : vector<1x256xf32> to vector<4x256xf32>
    %830 = arith.mulf %828, %829 : vector<4x256xf32>
    %831 = arith.addf %825, %830 : vector<4x256xf32>
    %832 = vector.extract_strided_slice %99 {offsets = [0, 5], sizes = [4, 1], strides = [1, 1]} : vector<4x16xf32> to vector<4x1xf32>
    %833 = vector.extract_strided_slice %800 {offsets = [5, 0], sizes = [1, 256], strides = [1, 1]} : vector<16x256xf32> to vector<1x256xf32>
    %834 = vector.broadcast %832 : vector<4x1xf32> to vector<4x256xf32>
    %835 = vector.broadcast %833 : vector<1x256xf32> to vector<4x256xf32>
    %836 = arith.mulf %834, %835 : vector<4x256xf32>
    %837 = arith.addf %831, %836 : vector<4x256xf32>
    %838 = vector.extract_strided_slice %99 {offsets = [0, 6], sizes = [4, 1], strides = [1, 1]} : vector<4x16xf32> to vector<4x1xf32>
    %839 = vector.extract_strided_slice %800 {offsets = [6, 0], sizes = [1, 256], strides = [1, 1]} : vector<16x256xf32> to vector<1x256xf32>
    %840 = vector.broadcast %838 : vector<4x1xf32> to vector<4x256xf32>
    %841 = vector.broadcast %839 : vector<1x256xf32> to vector<4x256xf32>
    %842 = arith.mulf %840, %841 : vector<4x256xf32>
    %843 = arith.addf %837, %842 : vector<4x256xf32>
    %844 = vector.extract_strided_slice %99 {offsets = [0, 7], sizes = [4, 1], strides = [1, 1]} : vector<4x16xf32> to vector<4x1xf32>
    %845 = vector.extract_strided_slice %800 {offsets = [7, 0], sizes = [1, 256], strides = [1, 1]} : vector<16x256xf32> to vector<1x256xf32>
    %846 = vector.broadcast %844 : vector<4x1xf32> to vector<4x256xf32>
    %847 = vector.broadcast %845 : vector<1x256xf32> to vector<4x256xf32>
    %848 = arith.mulf %846, %847 : vector<4x256xf32>
    %849 = arith.addf %843, %848 : vector<4x256xf32>
    %850 = vector.extract_strided_slice %99 {offsets = [0, 8], sizes = [4, 1], strides = [1, 1]} : vector<4x16xf32> to vector<4x1xf32>
    %851 = vector.extract_strided_slice %800 {offsets = [8, 0], sizes = [1, 256], strides = [1, 1]} : vector<16x256xf32> to vector<1x256xf32>
    %852 = vector.broadcast %850 : vector<4x1xf32> to vector<4x256xf32>
    %853 = vector.broadcast %851 : vector<1x256xf32> to vector<4x256xf32>
    %854 = arith.mulf %852, %853 : vector<4x256xf32>
    %855 = arith.addf %849, %854 : vector<4x256xf32>
    %856 = vector.extract_strided_slice %99 {offsets = [0, 9], sizes = [4, 1], strides = [1, 1]} : vector<4x16xf32> to vector<4x1xf32>
    %857 = vector.extract_strided_slice %800 {offsets = [9, 0], sizes = [1, 256], strides = [1, 1]} : vector<16x256xf32> to vector<1x256xf32>
    %858 = vector.broadcast %856 : vector<4x1xf32> to vector<4x256xf32>
    %859 = vector.broadcast %857 : vector<1x256xf32> to vector<4x256xf32>
    %860 = arith.mulf %858, %859 : vector<4x256xf32>
    %861 = arith.addf %855, %860 : vector<4x256xf32>
    %862 = vector.extract_strided_slice %99 {offsets = [0, 10], sizes = [4, 1], strides = [1, 1]} : vector<4x16xf32> to vector<4x1xf32>
    %863 = vector.extract_strided_slice %800 {offsets = [10, 0], sizes = [1, 256], strides = [1, 1]} : vector<16x256xf32> to vector<1x256xf32>
    %864 = vector.broadcast %862 : vector<4x1xf32> to vector<4x256xf32>
    %865 = vector.broadcast %863 : vector<1x256xf32> to vector<4x256xf32>
    %866 = arith.mulf %864, %865 : vector<4x256xf32>
    %867 = arith.addf %861, %866 : vector<4x256xf32>
    %868 = vector.extract_strided_slice %99 {offsets = [0, 11], sizes = [4, 1], strides = [1, 1]} : vector<4x16xf32> to vector<4x1xf32>
    %869 = vector.extract_strided_slice %800 {offsets = [11, 0], sizes = [1, 256], strides = [1, 1]} : vector<16x256xf32> to vector<1x256xf32>
    %870 = vector.broadcast %868 : vector<4x1xf32> to vector<4x256xf32>
    %871 = vector.broadcast %869 : vector<1x256xf32> to vector<4x256xf32>
    %872 = arith.mulf %870, %871 : vector<4x256xf32>
    %873 = arith.addf %867, %872 : vector<4x256xf32>
    %874 = vector.extract_strided_slice %99 {offsets = [0, 12], sizes = [4, 1], strides = [1, 1]} : vector<4x16xf32> to vector<4x1xf32>
    %875 = vector.extract_strided_slice %800 {offsets = [12, 0], sizes = [1, 256], strides = [1, 1]} : vector<16x256xf32> to vector<1x256xf32>
    %876 = vector.broadcast %874 : vector<4x1xf32> to vector<4x256xf32>
    %877 = vector.broadcast %875 : vector<1x256xf32> to vector<4x256xf32>
    %878 = arith.mulf %876, %877 : vector<4x256xf32>
    %879 = arith.addf %873, %878 : vector<4x256xf32>
    %880 = vector.extract_strided_slice %99 {offsets = [0, 13], sizes = [4, 1], strides = [1, 1]} : vector<4x16xf32> to vector<4x1xf32>
    %881 = vector.extract_strided_slice %800 {offsets = [13, 0], sizes = [1, 256], strides = [1, 1]} : vector<16x256xf32> to vector<1x256xf32>
    %882 = vector.broadcast %880 : vector<4x1xf32> to vector<4x256xf32>
    %883 = vector.broadcast %881 : vector<1x256xf32> to vector<4x256xf32>
    %884 = arith.mulf %882, %883 : vector<4x256xf32>
    %885 = arith.addf %879, %884 : vector<4x256xf32>
    %886 = vector.extract_strided_slice %99 {offsets = [0, 14], sizes = [4, 1], strides = [1, 1]} : vector<4x16xf32> to vector<4x1xf32>
    %887 = vector.extract_strided_slice %800 {offsets = [14, 0], sizes = [1, 256], strides = [1, 1]} : vector<16x256xf32> to vector<1x256xf32>
    %888 = vector.broadcast %886 : vector<4x1xf32> to vector<4x256xf32>
    %889 = vector.broadcast %887 : vector<1x256xf32> to vector<4x256xf32>
    %890 = arith.mulf %888, %889 : vector<4x256xf32>
    %891 = arith.addf %885, %890 : vector<4x256xf32>
    %892 = vector.extract_strided_slice %99 {offsets = [0, 15], sizes = [4, 1], strides = [1, 1]} : vector<4x16xf32> to vector<4x1xf32>
    %893 = vector.extract_strided_slice %800 {offsets = [15, 0], sizes = [1, 256], strides = [1, 1]} : vector<16x256xf32> to vector<1x256xf32>
    %894 = vector.broadcast %892 : vector<4x1xf32> to vector<4x256xf32>
    %895 = vector.broadcast %893 : vector<1x256xf32> to vector<4x256xf32>
    %896 = arith.mulf %894, %895 : vector<4x256xf32>
    %897 = arith.addf %891, %896 : vector<4x256xf32>
    %898 = vector.broadcast %100 : vector<4x1xf32> to vector<4x256xf32>
    %899 = arith.addf %897, %898 : vector<4x256xf32>
    %cst_108 = arith.constant 0.000000e+00 : f32
    %900 = vector.broadcast %cst_108 : f32 to vector<4x256xf32>
    %901 = vector.extract_strided_slice %101 {offsets = [0, 0], sizes = [4, 1], strides = [1, 1]} : vector<4x9xf32> to vector<4x1xf32>
    %c17_i32_109 = arith.constant 17 : i32
    %902 = tpu.dynamic_rotate %899 by %c17_i32_109 dim 1 : vector<4x256xf32>, i32 -> vector<4x256xf32>
    %903 = vector.broadcast %27 : vector<1x256xf32> to vector<4x256xf32>
    %904 = arith.mulf %902, %903 : vector<4x256xf32>
    %905 = vector.broadcast %901 : vector<4x1xf32> to vector<4x256xf32>
    %906 = arith.mulf %905, %904 : vector<4x256xf32>
    %907 = arith.addf %900, %906 : vector<4x256xf32>
    %908 = vector.extract_strided_slice %101 {offsets = [0, 1], sizes = [4, 1], strides = [1, 1]} : vector<4x9xf32> to vector<4x1xf32>
    %c16_i32_110 = arith.constant 16 : i32
    %909 = tpu.dynamic_rotate %899 by %c16_i32_110 dim 1 : vector<4x256xf32>, i32 -> vector<4x256xf32>
    %910 = vector.broadcast %31 : vector<1x256xf32> to vector<4x256xf32>
    %911 = arith.mulf %909, %910 : vector<4x256xf32>
    %912 = vector.broadcast %908 : vector<4x1xf32> to vector<4x256xf32>
    %913 = arith.mulf %912, %911 : vector<4x256xf32>
    %914 = arith.addf %907, %913 : vector<4x256xf32>
    %915 = vector.extract_strided_slice %101 {offsets = [0, 2], sizes = [4, 1], strides = [1, 1]} : vector<4x9xf32> to vector<4x1xf32>
    %c15_i32_111 = arith.constant 15 : i32
    %916 = tpu.dynamic_rotate %899 by %c15_i32_111 dim 1 : vector<4x256xf32>, i32 -> vector<4x256xf32>
    %917 = vector.broadcast %38 : vector<1x256xf32> to vector<4x256xf32>
    %918 = arith.mulf %916, %917 : vector<4x256xf32>
    %919 = vector.broadcast %915 : vector<4x1xf32> to vector<4x256xf32>
    %920 = arith.mulf %919, %918 : vector<4x256xf32>
    %921 = arith.addf %914, %920 : vector<4x256xf32>
    %922 = vector.extract_strided_slice %101 {offsets = [0, 3], sizes = [4, 1], strides = [1, 1]} : vector<4x9xf32> to vector<4x1xf32>
    %c1_i32_112 = arith.constant 1 : i32
    %923 = tpu.dynamic_rotate %899 by %c1_i32_112 dim 1 : vector<4x256xf32>, i32 -> vector<4x256xf32>
    %924 = vector.broadcast %50 : vector<1x256xf32> to vector<4x256xf32>
    %925 = arith.mulf %923, %924 : vector<4x256xf32>
    %926 = vector.broadcast %922 : vector<4x1xf32> to vector<4x256xf32>
    %927 = arith.mulf %926, %925 : vector<4x256xf32>
    %928 = arith.addf %921, %927 : vector<4x256xf32>
    %929 = vector.extract_strided_slice %101 {offsets = [0, 4], sizes = [4, 1], strides = [1, 1]} : vector<4x9xf32> to vector<4x1xf32>
    %930 = vector.broadcast %929 : vector<4x1xf32> to vector<4x256xf32>
    %931 = arith.mulf %930, %899 : vector<4x256xf32>
    %932 = arith.addf %928, %931 : vector<4x256xf32>
    %933 = vector.extract_strided_slice %101 {offsets = [0, 5], sizes = [4, 1], strides = [1, 1]} : vector<4x9xf32> to vector<4x1xf32>
    %c255_i32_113 = arith.constant 255 : i32
    %934 = tpu.dynamic_rotate %899 by %c255_i32_113 dim 1 : vector<4x256xf32>, i32 -> vector<4x256xf32>
    %935 = vector.broadcast %54 : vector<1x256xf32> to vector<4x256xf32>
    %936 = arith.mulf %934, %935 : vector<4x256xf32>
    %937 = vector.broadcast %933 : vector<4x1xf32> to vector<4x256xf32>
    %938 = arith.mulf %937, %936 : vector<4x256xf32>
    %939 = arith.addf %932, %938 : vector<4x256xf32>
    %940 = vector.extract_strided_slice %101 {offsets = [0, 6], sizes = [4, 1], strides = [1, 1]} : vector<4x9xf32> to vector<4x1xf32>
    %c241_i32_114 = arith.constant 241 : i32
    %941 = tpu.dynamic_rotate %899 by %c241_i32_114 dim 1 : vector<4x256xf32>, i32 -> vector<4x256xf32>
    %942 = vector.broadcast %69 : vector<1x256xf32> to vector<4x256xf32>
    %943 = arith.mulf %941, %942 : vector<4x256xf32>
    %944 = vector.broadcast %940 : vector<4x1xf32> to vector<4x256xf32>
    %945 = arith.mulf %944, %943 : vector<4x256xf32>
    %946 = arith.addf %939, %945 : vector<4x256xf32>
    %947 = vector.extract_strided_slice %101 {offsets = [0, 7], sizes = [4, 1], strides = [1, 1]} : vector<4x9xf32> to vector<4x1xf32>
    %c240_i32_115 = arith.constant 240 : i32
    %948 = tpu.dynamic_rotate %899 by %c240_i32_115 dim 1 : vector<4x256xf32>, i32 -> vector<4x256xf32>
    %949 = vector.broadcast %73 : vector<1x256xf32> to vector<4x256xf32>
    %950 = arith.mulf %948, %949 : vector<4x256xf32>
    %951 = vector.broadcast %947 : vector<4x1xf32> to vector<4x256xf32>
    %952 = arith.mulf %951, %950 : vector<4x256xf32>
    %953 = arith.addf %946, %952 : vector<4x256xf32>
    %954 = vector.extract_strided_slice %101 {offsets = [0, 8], sizes = [4, 1], strides = [1, 1]} : vector<4x9xf32> to vector<4x1xf32>
    %c239_i32_116 = arith.constant 239 : i32
    %955 = tpu.dynamic_rotate %899 by %c239_i32_116 dim 1 : vector<4x256xf32>, i32 -> vector<4x256xf32>
    %956 = vector.broadcast %80 : vector<1x256xf32> to vector<4x256xf32>
    %957 = arith.mulf %955, %956 : vector<4x256xf32>
    %958 = vector.broadcast %954 : vector<4x1xf32> to vector<4x256xf32>
    %959 = arith.mulf %958, %957 : vector<4x256xf32>
    %960 = arith.addf %953, %959 : vector<4x256xf32>
    %961 = vector.broadcast %102 : vector<4x1xf32> to vector<4x256xf32>
    %962 = arith.addf %960, %961 : vector<4x256xf32>
    %963 = tpu.concatenate %899, %962 in 0 : vector<4x256xf32>, vector<4x256xf32> -> vector<8x256xf32>
    %964 = arith.addf %963, %538 : vector<8x256xf32>
    %965 = arith.index_cast %c1_i32_73 : i32 to index
    %c0_117 = arith.constant 0 : index
    %c0_118 = arith.constant 0 : index
    %966 = vector.load %arg3[%965, %c0_117, %c0_118] : memref<2x8x256xf32, #tpu.memory_space<vmem>>, vector<1x8x256xf32>
    %967 = vector.shape_cast %966 : vector<1x8x256xf32> to vector<8x256xf32>
    %968 = vector.shape_cast %964 : vector<8x256xf32> to vector<1x8x256xf32>
    tpu.vector_store %arg3[%965, %c0_117, %c0_118], %968 {strides = array<i32>} : memref<2x8x256xf32, #tpu.memory_space<vmem>>, vector<1x8x256xf32>,
    %c2_i32_119 = arith.constant 2 : i32
    return
  }
  func.func @transform_0(%arg0: i32) -> (i32, i32, i32) {
    %c0_i32 = arith.constant 0 : i32
    %c0_i32_0 = arith.constant 0 : i32
    %c0_i32_1 = arith.constant 0 : i32
    return %arg0, %c0_i32, %c0_i32_0 : i32, i32, i32
  }
  func.func @transform_1(%arg0: i32) -> (i32, i32) {
    %c0_i32 = arith.constant 0 : i32
    %c0_i32_0 = arith.constant 0 : i32
    %c0_i32_1 = arith.constant 0 : i32
    return %c0_i32, %c0_i32_0 : i32, i32
  }
  func.func @transform_2(%arg0: i32) -> (i32, i32, i32) {
    %c0_i32 = arith.constant 0 : i32
    %c0_i32_0 = arith.constant 0 : i32
    %c0_i32_1 = arith.constant 0 : i32
    return %arg0, %c0_i32, %c0_i32_0 : i32, i32, i32
  }
}

</mosaic_0001>

<llo_original>
// kernel: ghost_bottleneck_v2_forward.1
$region0: #{ghost_bottleneck_v2_forward.1}
  #allocation0 [shape = 'u32[]', space=smem, size = 0x4, offset = 0x4, fixed_abs, tag = 'smem constant byte address 0x4 - core index']
  #allocation1 [shape = 'u32[144,128]{1,0:T(1,128)}', space=vmem, size = 0x12000, scoped, tag = 'internal scratch']
  %s0 = inlined_call_operand.vmem [shape: f32[4,8,256], index: 0, kind: input, shape index: {}]
  %s1 = inlined_call_operand.vmem [shape: f32[80,17], index: 1, kind: input, shape index: {}]
  %s2 = inlined_call_operand.vmem [shape: f32[4,8,256], index: 2, kind: output, shape index: {}]
  %s3 = sld [smem:[#allocation0]]
  $region41: #{ghost_bottleneck_v2_forward.1} parent=0
    _
  %s5 = ssub.s32 1, %s3
  %s6 = scalar_select 0, %s5, %s3
  loop: start=0, step=1, limit=4
  $region2: #{ghost_bottleneck_v2_forward.1} parent=0 // loop_pre_header
    _
  $region3: #{ghost_bottleneck_v2_forward.1} parent=0 // loop_header
    %s8 = sphi 0, %s12
    %p9 = scmp.ge.s32.totalorder %s8, 4
    %s18 = sphi 0, %s20
    %s21 = sphi 0, %s18
    %s22 = sphi 0, %s21
    %s38 = sphi 0, %s22
    %s42 = sphi 0, %s42
    %s44 = sphi 0, %s42
    %s45 = sphi 0, %s44
    %s59 = sphi 0, %s45
    %s65 = sphi 0, %s67
    %s68 = sphi 0, %s65
    %s69 = sphi 0, %s68
    %s85 = sphi 0, %s69
  $region4: #{ghost_bottleneck_v2_forward.1} parent=0 // loop_header_branch
    %11 = sbr.rel (%p9) target = $region8
  $region5: #{ghost_bottleneck_v2_forward.1} parent=0 // loop_body
    %s13 = ssub.s32 %s8, 1
    %s14 = ssub.s32 %s8, 2
    %s15 = sadd.s32 %s8, 1
    %s16 = ssub.s32 %s8, %s15
    %p17 = scmp.eq.s32.totalorder %s16, 0
    %s19 = sadd.s32 %s18, 1
    %s20 = scalar_select %p17, %s18, %s19
    %p23 = pneg %p17
    %p24 = scmp.eq.s32.totalorder %s8, 1
    %p25 = por %p23, %p24
    %p26 = scmp.ne.s32.totalorder %s18, %s21
    %p27 = scmp.eq.s32.totalorder %s8, 0
    %p28 = por %p26, %p27
    %p29 = scmp.ne.s32.totalorder %s18, %s21
    %p30 = scmp.eq.s32.totalorder %s13, 1
    %p31 = por %p29, %p30
    %p32 = scmp.ne.s32.totalorder %s21, %s22
    %p33 = scmp.eq.s32.totalorder %s13, 0
    %p34 = por %p32, %p33
    %p35 = scmp.ne.s32.totalorder %s21, %s22
    %p36 = scmp.eq.s32.totalorder %s14, 1
    %p37 = por %p35, %p36
    %p39 = scmp.ne.s32.totalorder %s22, %s38
    %p40 = scmp.eq.s32.totalorder %s14, 0
    %p41 = por %p39, %p40
    %s43 = sadd.s32 %s42, 1
    %p46 = scmp.eq.s32.totalorder %s8, 1
    %p47 = scmp.ne.s32.totalorder %s42, %s44
    %p48 = scmp.eq.s32.totalorder %s8, 0
    %p49 = por %p47, %p48
    %p50 = scmp.ne.s32.totalorder %s42, %s44
    %p51 = scmp.eq.s32.totalorder %s13, 1
    %p52 = por %p50, %p51
    %p53 = scmp.ne.s32.totalorder %s44, %s45
    %p54 = scmp.eq.s32.totalorder %s13, 0
    %p55 = por %p53, %p54
    %p56 = scmp.ne.s32.totalorder %s44, %s45
    %p57 = scmp.eq.s32.totalorder %s14, 1
    %p58 = por %p56, %p57
    %p60 = scmp.ne.s32.totalorder %s45, %s59
    %p61 = scmp.eq.s32.totalorder %s14, 0
    %p62 = por %p60, %p61
    %s63 = ssub.s32 %s8, %s15
    %p64 = scmp.eq.s32.totalorder %s63, 0
    %s66 = sadd.s32 %s65, 1
    %s67 = scalar_select %p64, %s65, %s66
    %p70 = pneg %p64
    %p71 = scmp.eq.s32.totalorder %s8, 1
    %p72 = por %p70, %p71
    %p73 = scmp.ne.s32.totalorder %s65, %s68
    %p74 = scmp.eq.s32.totalorder %s8, 0
    %p75 = por %p73, %p74
    %p76 = scmp.ne.s32.totalorder %s65, %s68
    %p77 = scmp.eq.s32.totalorder %s13, 1
    %p78 = por %p76, %p77
    %p79 = scmp.ne.s32.totalorder %s68, %s69
    %p80 = scmp.eq.s32.totalorder %s13, 0
    %p81 = por %p79, %p80
    %p82 = scmp.ne.s32.totalorder %s68, %s69
    %p83 = scmp.eq.s32.totalorder %s14, 1
    %p84 = por %p82, %p83
    %p86 = scmp.ne.s32.totalorder %s69, %s85
    %p87 = scmp.eq.s32.totalorder %s14, 0
    %p88 = por %p86, %p87
    %p89 = scmp.le.s32.totalorder 1, %s8
    %p90 = scmp.lt.s32.totalorder %s8, 3
    %p91 = pnand %p89, %p90
    %p92 = pneg %p91
    // Predicated region
    $region9: #{ghost_bottleneck_v2_forward.1} parent=5 // pred_check
      _
    $region10: #{ghost_bottleneck_v2_forward.1} parent=5 // pred_check_branch
      %94 = sbr.rel (%p91) target = $region12
    $region11: #{ghost_bottleneck_v2_forward.1} parent=5 // pred_region
      %s95 = ssub.s32 %s8, 1
      // Predicated region
      $region13: #{ghost_bottleneck_v2_forward.1} parent=11 // pred_check
        %p96 = pneg %p55
      $region14: #{ghost_bottleneck_v2_forward.1} parent=11 // pred_check_branch
        %98 = sbr.rel (%p96) target = $region16
      $region15: #{ghost_bottleneck_v2_forward.1} parent=11 // pred_region
        _
      $region16: #{ghost_bottleneck_v2_forward.1} parent=11 // pred_fallthru
        _
    $region12: #{ghost_bottleneck_v2_forward.1} parent=5 // pred_fallthru
      _
    %p99 = scmp.lt.s32.totalorder %s8, 2
    // Predicated region
    $region17: #{ghost_bottleneck_v2_forward.1} parent=5 // pred_check
      %p100 = pneg %p99
    $region18: #{ghost_bottleneck_v2_forward.1} parent=5 // pred_check_branch
      %102 = sbr.rel (%p100) target = $region20
    $region19: #{ghost_bottleneck_v2_forward.1} parent=5 // pred_region
      // Predicated region
      $region21: #{ghost_bottleneck_v2_forward.1} parent=19 // pred_check
        %p103 = pneg %p28
      $region22: #{ghost_bottleneck_v2_forward.1} parent=19 // pred_check_branch
        %105 = sbr.rel (%p103) target = $region24
      $region23: #{ghost_bottleneck_v2_forward.1} parent=19 // pred_region
        %s106 = smul.u32 2, %s8
        %p107 = scmp.lt.s32.totalorder %s106, 3
        %s108 = scalar_select %p107, %s106, 3
        %s109 = smul.addr %s108, 2
        %s110 = smul.addr %s109, 8
        %s111 = scalar_lea.vmem %s0, %s110
        %s112 = smul.u32 2, %s8
      $region24: #{ghost_bottleneck_v2_forward.1} parent=19 // pred_fallthru
        _
    $region20: #{ghost_bottleneck_v2_forward.1} parent=5 // pred_fallthru
      _
    %p113 = scmp.le.s32.totalorder 1, %s8
    %p114 = scmp.lt.s32.totalorder %s8, 3
    %p115 = pnand %p113, %p114
    %p116 = pneg %p115
    // Predicated region
    $region25: #{ghost_bottleneck_v2_forward.1} parent=5 // pred_check
      _
    $region26: #{ghost_bottleneck_v2_forward.1} parent=5 // pred_check_branch
      %118 = sbr.rel (%p115) target = $region28
    $region27: #{ghost_bottleneck_v2_forward.1} parent=5 // pred_region
      %s119 = ssub.s32 %s8, 1
      %s120 = smul.u32 2, %s13
      %p121 = scmp.lt.s32.totalorder %s120, 3
      %s122 = scalar_select %p121, %s120, 3
      %s123 = smul.addr %s122, 2
      %s124 = smul.addr %s123, 8
      %s125 = scalar_lea.vmem %s0, %s124
      %p126 = pneg %p34
      %p127 = pneg %p31
      %p128 = pneg %p55
      %p129 = pneg %p52
      %p130 = pneg %p81
      %p131 = pneg %p78
      %s132 = smul.u32 2, %s13
      %p133 = scmp.lt.s32.totalorder %s132, 3
      %s134 = scalar_select %p133, %s132, 3
      %s135 = smul.addr %s134, 2
      %s136 = smul.addr %s135, 8
      %s137 = scalar_lea.vmem %s2, %s136
      %s138 = smul.u32 2, %s13
      %p139 = scmp.lt.s32.totalorder %s138, 3
      %s140 = scalar_select %p139, %s138, 3
      %s141 = smul.addr %s140, 2
      %s142 = smul.addr %s141, 8
      %s143 = scalar_lea.vmem %s0, %s142
      %s144 = smul.u32 2, %s13
      %s145 = smul.u32 2, %s13
      %p146 = scmp.lt.s32.totalorder %s145, 3
      %s147 = scalar_select %p146, %s145, 3
      %s148 = smul.addr %s147, 2
      %s149 = smul.addr %s148, 8
      %s150 = scalar_lea.vmem %s2, %s149
      %s151 = smul.u32 2, %s13
      %v152 = vlaneseq
      %v153 = vand.u32 %v152, 127
      %v154 = vadd.s32 %v153, 128
      %v155 = vand.u32 %v153, 15
      %v156 = vand.u32 %v154, 15
      %v157 = vshra.s32 %v153, 4
      %v158 = vshra.s32 %v154, 4
      %v159 = vand.u32 %v155, 1
      %v160 = vand.u32 %v156, 1
      %vm161 = vcmp.eq.s32.totalorder %v159, 0
      %vm162 = vcmp.eq.s32.totalorder %v160, 0
      %v163 = vand.u32 %v157, 1
      %v164 = vand.u32 %v158, 1
      %vm165 = vcmp.eq.s32.totalorder %v163, 0
      %vm166 = vcmp.eq.s32.totalorder %v164, 0
      %vm167 = vcmp.ge.s32.totalorder %v157, 4
      %vm168 = vcmp.ge.s32.totalorder %v158, 4
      %v169 = vsel %vm167, 1, 0
      %v170 = vsel %vm168, 1, 0
      %v171 = vcvt.s32.f32 %v169
      %v172 = vcvt.s32.f32 %v170
      %vm173 = vcmp.ge.s32.totalorder %v157, 2
      %vm174 = vcmp.ge.s32.totalorder %v158, 2
      %v175 = vsel %vm173, 1, 0
      %v176 = vsel %vm174, 1, 0
      %v177 = vcvt.s32.f32 %v175
      %v178 = vcvt.s32.f32 %v176
      %vm179 = vcmp.ge.s32.totalorder %v155, 1
      %vm180 = vcmp.ge.s32.totalorder %v156, 1
      %vm181 = vcmp.ge.s32.totalorder %v157, 1
      %vm182 = vcmp.ge.s32.totalorder %v158, 1
      %vm183 = vmand %vm179, %vm181
      %vm184 = vmand %vm180, %vm182
      %v185 = vsel %vm183, 1, 0
      %v186 = vsel %vm184, 1, 0
      %v187 = vcvt.s32.f32 %v185
      %v188 = vcvt.s32.f32 %v186
      %v189 = vsel %vm181, 1, 0
      %v190 = vsel %vm182, 1, 0
      %v191 = vcvt.s32.f32 %v189
      %v192 = vcvt.s32.f32 %v190
      %vm193 = vcmp.lt.s32.totalorder %v155, 15
      %vm194 = vcmp.lt.s32.totalorder %v156, 15
      %vm195 = vmand %vm193, %vm181
      %vm196 = vmand %vm194, %vm182
      %v197 = vsel %vm195, 1, 0
      %v198 = vsel %vm196, 1, 0
      %v199 = vcvt.s32.f32 %v197
      %v200 = vcvt.s32.f32 %v198
      %vm201 = vcmp.ge.s32.totalorder %v155, 4
      %vm202 = vcmp.ge.s32.totalorder %v156, 4
      %v203 = vsel %vm201, 1, 0
      %v204 = vsel %vm202, 1, 0
      %v205 = vcvt.s32.f32 %v203
      %v206 = vcvt.s32.f32 %v204
      %vm207 = vcmp.ge.s32.totalorder %v155, 2
      %vm208 = vcmp.ge.s32.totalorder %v156, 2
      %v209 = vsel %vm207, 1, 0
      %v210 = vsel %vm208, 1, 0
      %v211 = vcvt.s32.f32 %v209
      %v212 = vcvt.s32.f32 %v210
      %v213 = vsel %vm179, 1, 0
      %v214 = vsel %vm180, 1, 0
      %v215 = vcvt.s32.f32 %v213
      %v216 = vcvt.s32.f32 %v214
      %v217 = vsel %vm193, 1, 0
      %v218 = vsel %vm194, 1, 0
      %v219 = vcvt.s32.f32 %v217
      %v220 = vcvt.s32.f32 %v218
      %vm221 = vcmp.lt.s32.totalorder %v155, 14
      %vm222 = vcmp.lt.s32.totalorder %v156, 14
      %v223 = vsel %vm221, 1, 0
      %v224 = vsel %vm222, 1, 0
      %v225 = vcvt.s32.f32 %v223
      %v226 = vcvt.s32.f32 %v224
      %vm227 = vcmp.lt.s32.totalorder %v155, 12
      %vm228 = vcmp.lt.s32.totalorder %v156, 12
      %v229 = vsel %vm227, 1, 0
      %v230 = vsel %vm228, 1, 0
      %v231 = vcvt.s32.f32 %v229
      %v232 = vcvt.s32.f32 %v230
      %vm233 = vcmp.lt.s32.totalorder %v157, 15
      %vm234 = vcmp.lt.s32.totalorder %v158, 15
      %vm235 = vmand %vm179, %vm233
      %vm236 = vmand %vm180, %vm234
      %v237 = vsel %vm235, 1, 0
      %v238 = vsel %vm236, 1, 0
      %v239 = vcvt.s32.f32 %v237
      %v240 = vcvt.s32.f32 %v238
      %v241 = vsel %vm233, 1, 0
      %v242 = vsel %vm234, 1, 0
      %v243 = vcvt.s32.f32 %v241
      %v244 = vcvt.s32.f32 %v242
      %vm245 = vmand %vm193, %vm233
      %vm246 = vmand %vm194, %vm234
      %v247 = vsel %vm245, 1, 0
      %v248 = vsel %vm246, 1, 0
      %v249 = vcvt.s32.f32 %v247
      %v250 = vcvt.s32.f32 %v248
      %vm251 = vcmp.lt.s32.totalorder %v157, 14
      %vm252 = vcmp.lt.s32.totalorder %v158, 14
      %v253 = vsel %vm251, 1, 0
      %v254 = vsel %vm252, 1, 0
      %v255 = vcvt.s32.f32 %v253
      %v256 = vcvt.s32.f32 %v254
      %vm257 = vcmp.lt.s32.totalorder %v157, 12
      %vm258 = vcmp.lt.s32.totalorder %v158, 12
      %v259 = vsel %vm257, 1, 0
      %v260 = vsel %vm258, 1, 0
      %v261 = vcvt.s32.f32 %v259
      %v262 = vcvt.s32.f32 %v260
      %v263 = vld [vmem:[%s1] sm:$0xff]
      %v264 = vld [vmem:[%s1 + $0x8] sm:$0xff]
      %v265 = vld [vmem:[%s1 + $0x10] sm:$0xff]
      %v266 = vld [vmem:[%s1 + $0x18] sm:$0xff]
      %v267 = vld [vmem:[%s1 + $0x20] sm:$0xff]
      %v268 = vld [vmem:[%s1 + $0x28] sm:$0xff]
      %v269 = vld [vmem:[%s1 + $0x30] sm:$0xff]
      %v270 = vld [vmem:[%s1 + $0x38] sm:$0xff]
      %v271 = vld [vmem:[%s1 + $0x40] sm:$0xf]
      %v272 = vld [vmem:[%s1 + $0x48] sm:$0xf]
      %v273 = vld [vmem:[%s143] sm:$0xff]
      %v274 = vld [vmem:[%s143 + $0x8] sm:$0xff]
      %275 = vrot.lane.b32.xlu0 %v273, 127
      %v276 = vpop.permute.xlu0 %275
      %277 = vrot.lane.b32.xlu0 %v274, 127
      %v278 = vpop.permute.xlu0 %277
      %vm279 = vcmp.lt.s32.totalorder %v153, 127
      %v280 = vsel %vm279, %v276, %v278
      %v281 = vsel %vm279, %v278, %v276
      %282 = vrot.lane.b32.xlu0 %v273, 1
      %v283 = vpop.permute.xlu0 %282
      %284 = vrot.lane.b32.xlu0 %v274, 1
      %v285 = vpop.permute.xlu0 %284
      %vm286 = vcmp.lt.s32.totalorder %v153, 1
      %v287 = vsel %vm286, %v283, %v285
      %v288 = vsel %vm286, %v285, %v283
      %v289 = vsel %vm161, 1, 0
      %v290 = vsel %vm162, 1, 0
      %vm291 = vcmp.eq.s32.totalorder %v289, 1
      %vm292 = vcmp.eq.s32.totalorder %v290, 1
      %v293 = vsel %vm291, %v280, %v288
      %v294 = vsel %vm292, %v281, %v287
      %v295 = vadd.f32 %v273, %v293
      %v296 = vadd.f32 %v274, %v294
      %297 = vrot.lane.b32.xlu0 %v295, 112
      %v298 = vpop.permute.xlu0 %297
      %299 = vrot.lane.b32.xlu0 %v296, 112
      %v300 = vpop.permute.xlu0 %299
      %vm301 = vcmp.lt.s32.totalorder %v153, 112
      %v302 = vsel %vm301, %v298, %v300
      %v303 = vsel %vm301, %v300, %v298
      %304 = vrot.lane.b32.xlu0 %v295, 16
      %v305 = vpop.permute.xlu0 %304
      %306 = vrot.lane.b32.xlu0 %v296, 16
      %v307 = vpop.permute.xlu0 %306
      %vm308 = vcmp.lt.s32.totalorder %v153, 16
      %v309 = vsel %vm308, %v305, %v307
      %v310 = vsel %vm308, %v307, %v305
      %v311 = vsel %vm165, 1, 0
      %v312 = vsel %vm166, 1, 0
      %vm313 = vcmp.eq.s32.totalorder %v311, 1
      %vm314 = vcmp.eq.s32.totalorder %v312, 1
      %v315 = vsel %vm313, %v302, %v310
      %v316 = vsel %vm314, %v303, %v309
      %v317 = vadd.f32 %v295, %v315
      %v318 = vadd.f32 %v296, %v316
      %v319 = vmul.f32 %v317, 0.25
      %v320 = vmul.f32 %v318, 0.25
      %322 = vset.pattern.permute.xlu0 0
      %323 = vperm.xlu0 %322, %v265
      %v324 = vpop.permute.xlu0 %323
      %327 = vset.pattern.permute.xlu0 0
      %328 = vperm.xlu0 %327, %v266
      %v329 = vpop.permute.xlu0 %328
      %v331 = vlaneseq
      %v332 = vshrl.u32 %v331, 7
      %v333 = vsub.s32 0, %v332
      %v334 = vrot.slane %v319, %v333
      %v335 = vlaneseq
      %v336 = vshrl.u32 %v335, 7
      %v337 = vsub.s32 0, %v336
      %v338 = vrot.slane %v320, %v337
      %v339 = vmul.f32 %v324, %v334
      %v340 = vmul.f32 %v324, %v338
      %v341 = vmul.f32 %v329, %v334
      %v342 = vmul.f32 %v329, %v338
      %v343 = vadd.f32 %v339, 0.0
      %v344 = vadd.f32 %v340, 0.0
      %v345 = vadd.f32 %v341, 0.0
      %v346 = vadd.f32 %v342, 0.0
      %347 = vset.pattern.permute.xlu0 1
      %348 = vperm.xlu0 %347, %v265
      %v349 = vpop.permute.xlu0 %348
      %351 = vset.pattern.permute.xlu0 1
      %352 = vperm.xlu0 %351, %v266
      %v353 = vpop.permute.xlu0 %352
      %v355 = vlaneseq
      %v356 = vshrl.u32 %v355, 7
      %v357 = vsub.s32 1, %v356
      %v358 = vrot.slane %v319, %v357
      %v359 = vlaneseq
      %v360 = vshrl.u32 %v359, 7
      %v361 = vsub.s32 1, %v360
      %v362 = vrot.slane %v320, %v361
      %v363 = vmul.f32 %v349, %v358
      %v364 = vmul.f32 %v349, %v362
      %v365 = vmul.f32 %v353, %v358
      %v366 = vmul.f32 %v353, %v362
      %v367 = vadd.f32 %v343, %v363
      %v368 = vadd.f32 %v344, %v364
      %v369 = vadd.f32 %v345, %v365
      %v370 = vadd.f32 %v346, %v366
      %371 = vset.pattern.permute.xlu0 2
      %372 = vperm.xlu0 %371, %v265
      %v373 = vpop.permute.xlu0 %372
      %375 = vset.pattern.permute.xlu0 2
      %376 = vperm.xlu0 %375, %v266
      %v377 = vpop.permute.xlu0 %376
      %v379 = vlaneseq
      %v380 = vshrl.u32 %v379, 7
      %v381 = vsub.s32 2, %v380
      %v382 = vrot.slane %v319, %v381
      %v383 = vlaneseq
      %v384 = vshrl.u32 %v383, 7
      %v385 = vsub.s32 2, %v384
      %v386 = vrot.slane %v320, %v385
      %v387 = vmul.f32 %v373, %v382
      %v388 = vmul.f32 %v373, %v386
      %v389 = vmul.f32 %v377, %v382
      %v390 = vmul.f32 %v377, %v386
      %v391 = vadd.f32 %v367, %v387
      %v392 = vadd.f32 %v368, %v388
      %v393 = vadd.f32 %v369, %v389
      %v394 = vadd.f32 %v370, %v390
      %395 = vset.pattern.permute.xlu0 3
      %396 = vperm.xlu0 %395, %v265
      %v397 = vpop.permute.xlu0 %396
      %399 = vset.pattern.permute.xlu0 3
      %400 = vperm.xlu0 %399, %v266
      %v401 = vpop.permute.xlu0 %400
      %v403 = vlaneseq
      %v404 = vshrl.u32 %v403, 7
      %v405 = vsub.s32 3, %v404
      %v406 = vrot.slane %v319, %v405
      %v407 = vlaneseq
      %v408 = vshrl.u32 %v407, 7
      %v409 = vsub.s32 3, %v408
      %v410 = vrot.slane %v320, %v409
      %v411 = vmul.f32 %v397, %v406
      %v412 = vmul.f32 %v397, %v410
      %v413 = vmul.f32 %v401, %v406
      %v414 = vmul.f32 %v401, %v410
      %v415 = vadd.f32 %v391, %v411
      %v416 = vadd.f32 %v392, %v412
      %v417 = vadd.f32 %v393, %v413
      %v418 = vadd.f32 %v394, %v414
      %419 = vset.pattern.permute.xlu0 4
      %420 = vperm.xlu0 %419, %v265
      %v421 = vpop.permute.xlu0 %420
      %423 = vset.pattern.permute.xlu0 4
      %424 = vperm.xlu0 %423, %v266
      %v425 = vpop.permute.xlu0 %424
      %v427 = vlaneseq
      %v428 = vshrl.u32 %v427, 7
      %v429 = vsub.s32 4, %v428
      %v430 = vrot.slane %v319, %v429
      %v431 = vlaneseq
      %v432 = vshrl.u32 %v431, 7
      %v433 = vsub.s32 4, %v432
      %v434 = vrot.slane %v320, %v433
      %v435 = vmul.f32 %v421, %v430
      %v436 = vmul.f32 %v421, %v434
      %v437 = vmul.f32 %v425, %v430
      %v438 = vmul.f32 %v425, %v434
      %v439 = vadd.f32 %v415, %v435
      %v440 = vadd.f32 %v416, %v436
      %v441 = vadd.f32 %v417, %v437
      %v442 = vadd.f32 %v418, %v438
      %443 = vset.pattern.permute.xlu0 5
      %444 = vperm.xlu0 %443, %v265
      %v445 = vpop.permute.xlu0 %444
      %447 = vset.pattern.permute.xlu0 5
      %448 = vperm.xlu0 %447, %v266
      %v449 = vpop.permute.xlu0 %448
      %v451 = vlaneseq
      %v452 = vshrl.u32 %v451, 7
      %v453 = vsub.s32 5, %v452
      %v454 = vrot.slane %v319, %v453
      %v455 = vlaneseq
      %v456 = vshrl.u32 %v455, 7
      %v457 = vsub.s32 5, %v456
      %v458 = vrot.slane %v320, %v457
      %v459 = vmul.f32 %v445, %v454
      %v460 = vmul.f32 %v445, %v458
      %v461 = vmul.f32 %v449, %v454
      %v462 = vmul.f32 %v449, %v458
      %v463 = vadd.f32 %v439, %v459
      %v464 = vadd.f32 %v440, %v460
      %v465 = vadd.f32 %v441, %v461
      %v466 = vadd.f32 %v442, %v462
      %467 = vset.pattern.permute.xlu0 6
      %468 = vperm.xlu0 %467, %v265
      %v469 = vpop.permute.xlu0 %468
      %471 = vset.pattern.permute.xlu0 6
      %472 = vperm.xlu0 %471, %v266
      %v473 = vpop.permute.xlu0 %472
      %v475 = vlaneseq
      %v476 = vshrl.u32 %v475, 7
      %v477 = vsub.s32 6, %v476
      %v478 = vrot.slane %v319, %v477
      %v479 = vlaneseq
      %v480 = vshrl.u32 %v479, 7
      %v481 = vsub.s32 6, %v480
      %v482 = vrot.slane %v320, %v481
      %v483 = vmul.f32 %v469, %v478
      %v484 = vmul.f32 %v469, %v482
      %v485 = vmul.f32 %v473, %v478
      %v486 = vmul.f32 %v473, %v482
      %v487 = vadd.f32 %v463, %v483
      %v488 = vadd.f32 %v464, %v484
      %v489 = vadd.f32 %v465, %v485
      %v490 = vadd.f32 %v466, %v486
      %491 = vset.pattern.permute.xlu0 7
      %492 = vperm.xlu0 %491, %v265
      %v493 = vpop.permute.xlu0 %492
      %495 = vset.pattern.permute.xlu0 7
      %496 = vperm.xlu0 %495, %v266
      %v497 = vpop.permute.xlu0 %496
      %v499 = vlaneseq
      %v500 = vshrl.u32 %v499, 7
      %v501 = vsub.s32 7, %v500
      %v502 = vrot.slane %v319, %v501
      %v503 = vlaneseq
      %v504 = vshrl.u32 %v503, 7
      %v505 = vsub.s32 7, %v504
      %v506 = vrot.slane %v320, %v505
      %v507 = vmul.f32 %v493, %v502
      %v508 = vmul.f32 %v493, %v506
      %v509 = vmul.f32 %v497, %v502
      %v510 = vmul.f32 %v497, %v506
      %v511 = vadd.f32 %v487, %v507
      %v512 = vadd.f32 %v488, %v508
      %v513 = vadd.f32 %v489, %v509
      %v514 = vadd.f32 %v490, %v510
      %515 = vset.pattern.permute.xlu0 16
      %516 = vperm.xlu0 %515, %v265
      %v517 = vpop.permute.xlu0 %516
      %519 = vset.pattern.permute.xlu0 16
      %520 = vperm.xlu0 %519, %v266
      %v521 = vpop.permute.xlu0 %520
      %v523 = vadd.f32 %v511, %v517
      %v524 = vadd.f32 %v512, %v517
      %v525 = vadd.f32 %v513, %v521
      %v526 = vadd.f32 %v514, %v521
      %527 = vrot.lane.b32.xlu0 %v523, 4
      %v528 = vpop.permute.xlu0 %527
      %529 = vrot.lane.b32.xlu0 %v525, 4
      %v530 = vpop.permute.xlu0 %529
      %531 = vrot.lane.b32.xlu0 %v524, 4
      %v532 = vpop.permute.xlu0 %531
      %533 = vrot.lane.b32.xlu0 %v526, 4
      %v534 = vpop.permute.xlu0 %533
      %vm535 = vcmp.lt.s32.totalorder %v153, 4
      %v536 = vsel %vm535, %v528, %v532
      %v537 = vsel %vm535, %v530, %v534
      %v538 = vsel %vm535, %v532, %v528
      %v539 = vsel %vm535, %v534, %v530
      %v540 = vmul.f32 %v538, %v205
      %v541 = vmul.f32 %v536, %v206
      %v542 = vmul.f32 %v539, %v205
      %v543 = vmul.f32 %v537, %v206
      %545 = vset.pattern.permute.xlu0 0
      %546 = vperm.xlu0 %545, %v267
      %v547 = vpop.permute.xlu0 %546
      %550 = vset.pattern.permute.xlu0 0
      %551 = vperm.xlu0 %550, %v268
      %v552 = vpop.permute.xlu0 %551
      %v554 = vmul.f32 %v547, %v540
      %v555 = vmul.f32 %v547, %v541
      %v556 = vmul.f32 %v552, %v542
      %v557 = vmul.f32 %v552, %v543
      %v558 = vadd.f32 %v554, 0.0
      %v559 = vadd.f32 %v555, 0.0
      %v560 = vadd.f32 %v556, 0.0
      %v561 = vadd.f32 %v557, 0.0
      %562 = vrot.lane.b32.xlu0 %v523, 2
      %v563 = vpop.permute.xlu0 %562
      %564 = vrot.lane.b32.xlu0 %v525, 2
      %v565 = vpop.permute.xlu0 %564
      %566 = vrot.lane.b32.xlu0 %v524, 2
      %v567 = vpop.permute.xlu0 %566
      %568 = vrot.lane.b32.xlu0 %v526, 2
      %v569 = vpop.permute.xlu0 %568
      %vm570 = vcmp.lt.s32.totalorder %v153, 2
      %v571 = vsel %vm570, %v563, %v567
      %v572 = vsel %vm570, %v565, %v569
      %v573 = vsel %vm570, %v567, %v563
      %v574 = vsel %vm570, %v569, %v565
      %v575 = vmul.f32 %v573, %v211
      %v576 = vmul.f32 %v571, %v212
      %v577 = vmul.f32 %v574, %v211
      %v578 = vmul.f32 %v572, %v212
      %579 = vset.pattern.permute.xlu0 1
      %580 = vperm.xlu0 %579, %v267
      %v581 = vpop.permute.xlu0 %580
      %583 = vset.pattern.permute.xlu0 1
      %584 = vperm.xlu0 %583, %v268
      %v585 = vpop.permute.xlu0 %584
      %v587 = vmul.f32 %v581, %v575
      %v588 = vmul.f32 %v581, %v576
      %v589 = vmul.f32 %v585, %v577
      %v590 = vmul.f32 %v585, %v578
      %v591 = vadd.f32 %v558, %v587
      %v592 = vadd.f32 %v559, %v588
      %v593 = vadd.f32 %v560, %v589
      %v594 = vadd.f32 %v561, %v590
      %595 = vset.pattern.permute.xlu0 2
      %596 = vperm.xlu0 %595, %v267
      %v597 = vpop.permute.xlu0 %596
      %599 = vset.pattern.permute.xlu0 2
      %600 = vperm.xlu0 %599, %v268
      %v601 = vpop.permute.xlu0 %600
      %v603 = vmul.f32 %v597, %v523
      %v604 = vmul.f32 %v597, %v524
      %v605 = vmul.f32 %v601, %v525
      %v606 = vmul.f32 %v601, %v526
      %v607 = vadd.f32 %v591, %v603
      %v608 = vadd.f32 %v592, %v604
      %v609 = vadd.f32 %v593, %v605
      %v610 = vadd.f32 %v594, %v606
      %611 = vrot.lane.b32.xlu0 %v523, 126
      %v612 = vpop.permute.xlu0 %611
      %613 = vrot.lane.b32.xlu0 %v525, 126
      %v614 = vpop.permute.xlu0 %613
      %615 = vrot.lane.b32.xlu0 %v524, 126
      %v616 = vpop.permute.xlu0 %615
      %617 = vrot.lane.b32.xlu0 %v526, 126
      %v618 = vpop.permute.xlu0 %617
      %vm619 = vcmp.lt.s32.totalorder %v153, 126
      %v620 = vsel %vm619, %v612, %v616
      %v621 = vsel %vm619, %v614, %v618
      %v622 = vsel %vm619, %v616, %v612
      %v623 = vsel %vm619, %v618, %v614
      %v624 = vmul.f32 %v620, %v225
      %v625 = vmul.f32 %v622, %v226
      %v626 = vmul.f32 %v621, %v225
      %v627 = vmul.f32 %v623, %v226
      %628 = vset.pattern.permute.xlu0 3
      %629 = vperm.xlu0 %628, %v267
      %v630 = vpop.permute.xlu0 %629
      %632 = vset.pattern.permute.xlu0 3
      %633 = vperm.xlu0 %632, %v268
      %v634 = vpop.permute.xlu0 %633
      %v636 = vmul.f32 %v630, %v624
      %v637 = vmul.f32 %v630, %v625
      %v638 = vmul.f32 %v634, %v626
      %v639 = vmul.f32 %v634, %v627
      %v640 = vadd.f32 %v607, %v636
      %v641 = vadd.f32 %v608, %v637
      %v642 = vadd.f32 %v609, %v638
      %v643 = vadd.f32 %v610, %v639
      %644 = vrot.lane.b32.xlu0 %v523, 124
      %v645 = vpop.permute.xlu0 %644
      %646 = vrot.lane.b32.xlu0 %v525, 124
      %v647 = vpop.permute.xlu0 %646
      %648 = vrot.lane.b32.xlu0 %v524, 124
      %v649 = vpop.permute.xlu0 %648
      %650 = vrot.lane.b32.xlu0 %v526, 124
      %v651 = vpop.permute.xlu0 %650
      %vm652 = vcmp.lt.s32.totalorder %v153, 124
      %v653 = vsel %vm652, %v645, %v649
      %v654 = vsel %vm652, %v647, %v651
      %v655 = vsel %vm652, %v649, %v645
      %v656 = vsel %vm652, %v651, %v647
      %v657 = vmul.f32 %v653, %v231
      %v658 = vmul.f32 %v655, %v232
      %v659 = vmul.f32 %v654, %v231
      %v660 = vmul.f32 %v656, %v232
      %661 = vset.pattern.permute.xlu0 4
      %662 = vperm.xlu0 %661, %v267
      %v663 = vpop.permute.xlu0 %662
      %665 = vset.pattern.permute.xlu0 4
      %666 = vperm.xlu0 %665, %v268
      %v667 = vpop.permute.xlu0 %666
      %v669 = vmul.f32 %v663, %v657
      %v670 = vmul.f32 %v663, %v658
      %v671 = vmul.f32 %v667, %v659
      %v672 = vmul.f32 %v667, %v660
      %v673 = vadd.f32 %v640, %v669
      %v674 = vadd.f32 %v641, %v670
      %v675 = vadd.f32 %v642, %v671
      %v676 = vadd.f32 %v643, %v672
      %677 = vset.pattern.permute.xlu0 16
      %678 = vperm.xlu0 %677, %v267
      %v679 = vpop.permute.xlu0 %678
      %681 = vset.pattern.permute.xlu0 16
      %682 = vperm.xlu0 %681, %v268
      %v683 = vpop.permute.xlu0 %682
      %v685 = vadd.f32 %v673, %v679
      %v686 = vadd.f32 %v674, %v679
      %v687 = vadd.f32 %v675, %v683
      %v688 = vadd.f32 %v676, %v683
      %689 = vrot.lane.b32.xlu0 %v685, 64
      %v690 = vpop.permute.xlu0 %689
      %691 = vrot.lane.b32.xlu0 %v687, 64
      %v692 = vpop.permute.xlu0 %691
      %693 = vrot.lane.b32.xlu0 %v686, 64
      %v694 = vpop.permute.xlu0 %693
      %695 = vrot.lane.b32.xlu0 %v688, 64
      %v696 = vpop.permute.xlu0 %695
      %vm697 = vcmp.lt.s32.totalorder %v153, 64
      %v698 = vsel %vm697, %v690, %v694
      %v699 = vsel %vm697, %v692, %v696
      %v700 = vsel %vm697, %v694, %v690
      %v701 = vsel %vm697, %v696, %v692
      %v702 = vmul.f32 %v700, %v171
      %v703 = vmul.f32 %v698, %v172
      %v704 = vmul.f32 %v701, %v171
      %v705 = vmul.f32 %v699, %v172
      %707 = vset.pattern.permute.xlu0 0
      %708 = vperm.xlu0 %707, %v269
      %v709 = vpop.permute.xlu0 %708
      %712 = vset.pattern.permute.xlu0 0
      %713 = vperm.xlu0 %712, %v270
      %v714 = vpop.permute.xlu0 %713
      %v716 = vmul.f32 %v709, %v702
      %v717 = vmul.f32 %v709, %v703
      %v718 = vmul.f32 %v714, %v704
      %v719 = vmul.f32 %v714, %v705
      %v720 = vadd.f32 %v716, 0.0
      %v721 = vadd.f32 %v717, 0.0
      %v722 = vadd.f32 %v718, 0.0
      %v723 = vadd.f32 %v719, 0.0
      %724 = vrot.lane.b32.xlu0 %v685, 32
      %v725 = vpop.permute.xlu0 %724
      %726 = vrot.lane.b32.xlu0 %v687, 32
      %v727 = vpop.permute.xlu0 %726
      %728 = vrot.lane.b32.xlu0 %v686, 32
      %v729 = vpop.permute.xlu0 %728
      %730 = vrot.lane.b32.xlu0 %v688, 32
      %v731 = vpop.permute.xlu0 %730
      %vm732 = vcmp.lt.s32.totalorder %v153, 32
      %v733 = vsel %vm732, %v725, %v729
      %v734 = vsel %vm732, %v727, %v731
      %v735 = vsel %vm732, %v729, %v725
      %v736 = vsel %vm732, %v731, %v727
      %v737 = vmul.f32 %v735, %v177
      %v738 = vmul.f32 %v733, %v178
      %v739 = vmul.f32 %v736, %v177
      %v740 = vmul.f32 %v734, %v178
      %741 = vset.pattern.permute.xlu0 1
      %742 = vperm.xlu0 %741, %v269
      %v743 = vpop.permute.xlu0 %742
      %745 = vset.pattern.permute.xlu0 1
      %746 = vperm.xlu0 %745, %v270
      %v747 = vpop.permute.xlu0 %746
      %v749 = vmul.f32 %v743, %v737
      %v750 = vmul.f32 %v743, %v738
      %v751 = vmul.f32 %v747, %v739
      %v752 = vmul.f32 %v747, %v740
      %v753 = vadd.f32 %v720, %v749
      %v754 = vadd.f32 %v721, %v750
      %v755 = vadd.f32 %v722, %v751
      %v756 = vadd.f32 %v723, %v752
      %757 = vset.pattern.permute.xlu0 2
      %758 = vperm.xlu0 %757, %v269
      %v759 = vpop.permute.xlu0 %758
      %761 = vset.pattern.permute.xlu0 2
      %762 = vperm.xlu0 %761, %v270
      %v763 = vpop.permute.xlu0 %762
      %v765 = vmul.f32 %v759, %v685
      %v766 = vmul.f32 %v759, %v686
      %v767 = vmul.f32 %v763, %v687
      %v768 = vmul.f32 %v763, %v688
      %v769 = vadd.f32 %v753, %v765
      %v770 = vadd.f32 %v754, %v766
      %v771 = vadd.f32 %v755, %v767
      %v772 = vadd.f32 %v756, %v768
      %773 = vrot.lane.b32.xlu0 %v685, 96
      %v774 = vpop.permute.xlu0 %773
      %775 = vrot.lane.b32.xlu0 %v687, 96
      %v776 = vpop.permute.xlu0 %775
      %777 = vrot.lane.b32.xlu0 %v686, 96
      %v778 = vpop.permute.xlu0 %777
      %779 = vrot.lane.b32.xlu0 %v688, 96
      %v780 = vpop.permute.xlu0 %779
      %vm781 = vcmp.lt.s32.totalorder %v153, 96
      %v782 = vsel %vm781, %v774, %v778
      %v783 = vsel %vm781, %v776, %v780
      %v784 = vsel %vm781, %v778, %v774
      %v785 = vsel %vm781, %v780, %v776
      %v786 = vmul.f32 %v782, %v255
      %v787 = vmul.f32 %v784, %v256
      %v788 = vmul.f32 %v783, %v255
      %v789 = vmul.f32 %v785, %v256
      %790 = vset.pattern.permute.xlu0 3
      %791 = vperm.xlu0 %790, %v269
      %v792 = vpop.permute.xlu0 %791
      %794 = vset.pattern.permute.xlu0 3
      %795 = vperm.xlu0 %794, %v270
      %v796 = vpop.permute.xlu0 %795
      %v798 = vmul.f32 %v792, %v786
      %v799 = vmul.f32 %v792, %v787
      %v800 = vmul.f32 %v796, %v788
      %v801 = vmul.f32 %v796, %v789
      %v802 = vadd.f32 %v769, %v798
      %v803 = vadd.f32 %v770, %v799
      %v804 = vadd.f32 %v771, %v800
      %v805 = vadd.f32 %v772, %v801
      %v806 = vmul.f32 %v698, %v261
      %v807 = vmul.f32 %v700, %v262
      %v808 = vmul.f32 %v699, %v261
      %v809 = vmul.f32 %v701, %v262
      %810 = vset.pattern.permute.xlu0 4
      %811 = vperm.xlu0 %810, %v269
      %v812 = vpop.permute.xlu0 %811
      %814 = vset.pattern.permute.xlu0 4
      %815 = vperm.xlu0 %814, %v270
      %v816 = vpop.permute.xlu0 %815
      %v818 = vmul.f32 %v812, %v806
      %v819 = vmul.f32 %v812, %v807
      %v820 = vmul.f32 %v816, %v808
      %v821 = vmul.f32 %v816, %v809
      %v822 = vadd.f32 %v802, %v818
      %v823 = vadd.f32 %v803, %v819
      %v824 = vadd.f32 %v804, %v820
      %v825 = vadd.f32 %v805, %v821
      %826 = vset.pattern.permute.xlu0 16
      %827 = vperm.xlu0 %826, %v269
      %v828 = vpop.permute.xlu0 %827
      %830 = vset.pattern.permute.xlu0 16
      %831 = vperm.xlu0 %830, %v270
      %v832 = vpop.permute.xlu0 %831
      %v834 = vadd.f32 %v822, %v828
      %v835 = vadd.f32 %v823, %v828
      %v836 = vadd.f32 %v824, %v832
      %v837 = vadd.f32 %v825, %v832
      %v838 = vmul.f32 %v834, 0.5
      %v839 = vmul.f32 %v835, 0.5
      %v840 = vmul.f32 %v836, 0.5
      %v841 = vmul.f32 %v837, 0.5
      %v842 = vtanh.pop %v838
      %v843 = vtanh.pop %v839
      %v844 = vtanh.pop %v840
      %v845 = vtanh.pop %v841
      %v846 = vadd.f32 %v842, 1.0
      %v847 = vadd.f32 %v843, 1.0
      %v848 = vadd.f32 %v844, 1.0
      %v849 = vadd.f32 %v845, 1.0
      %v850 = vmul.f32 %v846, 0.5
      %v851 = vmul.f32 %v847, 0.5
      %v852 = vmul.f32 %v848, 0.5
      %v853 = vmul.f32 %v849, 0.5
      %855 = vset.pattern.permute.xlu0 0
      %856 = vperm.xlu0 %855, %v263
      %v857 = vpop.permute.xlu0 %856
      %v859 = vlaneseq
      %v860 = vshrl.u32 %v859, 7
      %v861 = vsub.s32 0, %v860
      %v862 = vrot.slane %v273, %v861
      %v863 = vlaneseq
      %v864 = vshrl.u32 %v863, 7
      %v865 = vsub.s32 0, %v864
      %v866 = vrot.slane %v274, %v865
      %v867 = vmul.f32 %v857, %v862
      %v868 = vmul.f32 %v857, %v866
      %v869 = vadd.f32 %v867, 0.0
      %v870 = vadd.f32 %v868, 0.0
      %871 = vset.pattern.permute.xlu0 1
      %872 = vperm.xlu0 %871, %v263
      %v873 = vpop.permute.xlu0 %872
      %v875 = vlaneseq
      %v876 = vshrl.u32 %v875, 7
      %v877 = vsub.s32 1, %v876
      %v878 = vrot.slane %v273, %v877
      %v879 = vlaneseq
      %v880 = vshrl.u32 %v879, 7
      %v881 = vsub.s32 1, %v880
      %v882 = vrot.slane %v274, %v881
      %v883 = vmul.f32 %v873, %v878
      %v884 = vmul.f32 %v873, %v882
      %v885 = vadd.f32 %v869, %v883
      %v886 = vadd.f32 %v870, %v884
      %887 = vset.pattern.permute.xlu0 2
      %888 = vperm.xlu0 %887, %v263
      %v889 = vpop.permute.xlu0 %888
      %v891 = vlaneseq
      %v892 = vshrl.u32 %v891, 7
      %v893 = vsub.s32 2, %v892
      %v894 = vrot.slane %v273, %v893
      %v895 = vlaneseq
      %v896 = vshrl.u32 %v895, 7
      %v897 = vsub.s32 2, %v896
      %v898 = vrot.slane %v274, %v897
      %v899 = vmul.f32 %v889, %v894
      %v900 = vmul.f32 %v889, %v898
      %v901 = vadd.f32 %v885, %v899
      %v902 = vadd.f32 %v886, %v900
      %903 = vset.pattern.permute.xlu0 3
      %904 = vperm.xlu0 %903, %v263
      %v905 = vpop.permute.xlu0 %904
      %v907 = vlaneseq
      %v908 = vshrl.u32 %v907, 7
      %v909 = vsub.s32 3, %v908
      %v910 = vrot.slane %v273, %v909
      %v911 = vlaneseq
      %v912 = vshrl.u32 %v911, 7
      %v913 = vsub.s32 3, %v912
      %v914 = vrot.slane %v274, %v913
      %v915 = vmul.f32 %v905, %v910
      %v916 = vmul.f32 %v905, %v914
      %v917 = vadd.f32 %v901, %v915
      %v918 = vadd.f32 %v902, %v916
      %919 = vset.pattern.permute.xlu0 4
      %920 = vperm.xlu0 %919, %v263
      %v921 = vpop.permute.xlu0 %920
      %v923 = vlaneseq
      %v924 = vshrl.u32 %v923, 7
      %v925 = vsub.s32 4, %v924
      %v926 = vrot.slane %v273, %v925
      %v927 = vlaneseq
      %v928 = vshrl.u32 %v927, 7
      %v929 = vsub.s32 4, %v928
      %v930 = vrot.slane %v274, %v929
      %v931 = vmul.f32 %v921, %v926
      %v932 = vmul.f32 %v921, %v930
      %v933 = vadd.f32 %v917, %v931
      %v934 = vadd.f32 %v918, %v932
      %935 = vset.pattern.permute.xlu0 5
      %936 = vperm.xlu0 %935, %v263
      %v937 = vpop.permute.xlu0 %936
      %v939 = vlaneseq
      %v940 = vshrl.u32 %v939, 7
      %v941 = vsub.s32 5, %v940
      %v942 = vrot.slane %v273, %v941
      %v943 = vlaneseq
      %v944 = vshrl.u32 %v943, 7
      %v945 = vsub.s32 5, %v944
      %v946 = vrot.slane %v274, %v945
      %v947 = vmul.f32 %v937, %v942
      %v948 = vmul.f32 %v937, %v946
      %v949 = vadd.f32 %v933, %v947
      %v950 = vadd.f32 %v934, %v948
      %951 = vset.pattern.permute.xlu0 6
      %952 = vperm.xlu0 %951, %v263
      %v953 = vpop.permute.xlu0 %952
      %v955 = vlaneseq
      %v956 = vshrl.u32 %v955, 7
      %v957 = vsub.s32 6, %v956
      %v958 = vrot.slane %v273, %v957
      %v959 = vlaneseq
      %v960 = vshrl.u32 %v959, 7
      %v961 = vsub.s32 6, %v960
      %v962 = vrot.slane %v274, %v961
      %v963 = vmul.f32 %v953, %v958
      %v964 = vmul.f32 %v953, %v962
      %v965 = vadd.f32 %v949, %v963
      %v966 = vadd.f32 %v950, %v964
      %967 = vset.pattern.permute.xlu0 7
      %968 = vperm.xlu0 %967, %v263
      %v969 = vpop.permute.xlu0 %968
      %v971 = vlaneseq
      %v972 = vshrl.u32 %v971, 7
      %v973 = vsub.s32 7, %v972
      %v974 = vrot.slane %v273, %v973
      %v975 = vlaneseq
      %v976 = vshrl.u32 %v975, 7
      %v977 = vsub.s32 7, %v976
      %v978 = vrot.slane %v274, %v977
      %v979 = vmul.f32 %v969, %v974
      %v980 = vmul.f32 %v969, %v978
      %v981 = vadd.f32 %v965, %v979
      %v982 = vadd.f32 %v966, %v980
      %983 = vset.pattern.permute.xlu0 16
      %984 = vperm.xlu0 %983, %v263
      %v985 = vpop.permute.xlu0 %984
      %v987 = vadd.f32 %v981, %v985
      %v988 = vadd.f32 %v982, %v985
      %v989 = vmax.f32 %v987, 0.0
      %v990 = vmax.f32 %v988, 0.0
      %991 = vrot.lane.b32.xlu0 %v989, 17
      %v992 = vpop.permute.xlu0 %991
      %993 = vrot.lane.b32.xlu0 %v990, 17
      %v994 = vpop.permute.xlu0 %993
      %vm995 = vcmp.lt.s32.totalorder %v153, 17
      %v996 = vsel %vm995, %v992, %v994
      %v997 = vsel %vm995, %v994, %v992
      %v998 = vmul.f32 %v997, %v187
      %v999 = vmul.f32 %v996, %v188
      %1001 = vset.pattern.permute.xlu0 0
      %1002 = vperm.xlu0 %1001, %v264
      %v1003 = vpop.permute.xlu0 %1002
      %v1005 = vmul.f32 %v1003, %v998
      %v1006 = vmul.f32 %v1003, %v999
      %v1007 = vadd.f32 %v1005, 0.0
      %v1008 = vadd.f32 %v1006, 0.0
      %1009 = vrot.lane.b32.xlu0 %v989, 16
      %v1010 = vpop.permute.xlu0 %1009
      %1011 = vrot.lane.b32.xlu0 %v990, 16
      %v1012 = vpop.permute.xlu0 %1011
      %v1013 = vsel %vm308, %v1010, %v1012
      %v1014 = vsel %vm308, %v1012, %v1010
      %v1015 = vmul.f32 %v1014, %v191
      %v1016 = vmul.f32 %v1013, %v192
      %1017 = vset.pattern.permute.xlu0 1
      %1018 = vperm.xlu0 %1017, %v264
      %v1019 = vpop.permute.xlu0 %1018
      %v1021 = vmul.f32 %v1019, %v1015
      %v1022 = vmul.f32 %v1019, %v1016
      %v1023 = vadd.f32 %v1007, %v1021
      %v1024 = vadd.f32 %v1008, %v1022
      %1025 = vrot.lane.b32.xlu0 %v989, 15
      %v1026 = vpop.permute.xlu0 %1025
      %1027 = vrot.lane.b32.xlu0 %v990, 15
      %v1028 = vpop.permute.xlu0 %1027
      %vm1029 = vcmp.lt.s32.totalorder %v153, 15
      %v1030 = vsel %vm1029, %v1026, %v1028
      %v1031 = vsel %vm1029, %v1028, %v1026
      %v1032 = vmul.f32 %v1031, %v199
      %v1033 = vmul.f32 %v1030, %v200
      %1034 = vset.pattern.permute.xlu0 2
      %1035 = vperm.xlu0 %1034, %v264
      %v1036 = vpop.permute.xlu0 %1035
      %v1038 = vmul.f32 %v1036, %v1032
      %v1039 = vmul.f32 %v1036, %v1033
      %v1040 = vadd.f32 %v1023, %v1038
      %v1041 = vadd.f32 %v1024, %v1039
      %1042 = vrot.lane.b32.xlu0 %v989, 1
      %v1043 = vpop.permute.xlu0 %1042
      %1044 = vrot.lane.b32.xlu0 %v990, 1
      %v1045 = vpop.permute.xlu0 %1044
      %v1046 = vsel %vm286, %v1043, %v1045
      %v1047 = vsel %vm286, %v1045, %v1043
      %v1048 = vmul.f32 %v1047, %v215
      %v1049 = vmul.f32 %v1046, %v216
      %1050 = vset.pattern.permute.xlu0 3
      %1051 = vperm.xlu0 %1050, %v264
      %v1052 = vpop.permute.xlu0 %1051
      %v1054 = vmul.f32 %v1052, %v1048
      %v1055 = vmul.f32 %v1052, %v1049
      %v1056 = vadd.f32 %v1040, %v1054
      %v1057 = vadd.f32 %v1041, %v1055
      %1058 = vset.pattern.permute.xlu0 4
      %1059 = vperm.xlu0 %1058, %v264
      %v1060 = vpop.permute.xlu0 %1059
      %v1062 = vmul.f32 %v1060, %v989
      %v1063 = vmul.f32 %v1060, %v990
      %v1064 = vadd.f32 %v1056, %v1062
      %v1065 = vadd.f32 %v1057, %v1063
      %1066 = vrot.lane.b32.xlu0 %v989, 127
      %v1067 = vpop.permute.xlu0 %1066
      %1068 = vrot.lane.b32.xlu0 %v990, 127
      %v1069 = vpop.permute.xlu0 %1068
      %v1070 = vsel %vm279, %v1067, %v1069
      %v1071 = vsel %vm279, %v1069, %v1067
      %v1072 = vmul.f32 %v1070, %v219
      %v1073 = vmul.f32 %v1071, %v220
      %1074 = vset.pattern.permute.xlu0 5
      %1075 = vperm.xlu0 %1074, %v264
      %v1076 = vpop.permute.xlu0 %1075
      %v1078 = vmul.f32 %v1076, %v1072
      %v1079 = vmul.f32 %v1076, %v1073
      %v1080 = vadd.f32 %v1064, %v1078
      %v1081 = vadd.f32 %v1065, %v1079
      %1082 = vrot.lane.b32.xlu0 %v989, 113
      %v1083 = vpop.permute.xlu0 %1082
      %1084 = vrot.lane.b32.xlu0 %v990, 113
      %v1085 = vpop.permute.xlu0 %1084
      %vm1086 = vcmp.lt.s32.totalorder %v153, 113
      %v1087 = vsel %vm1086, %v1083, %v1085
      %v1088 = vsel %vm1086, %v1085, %v1083
      %v1089 = vmul.f32 %v1087, %v239
      %v1090 = vmul.f32 %v1088, %v240
      %1091 = vset.pattern.permute.xlu0 6
      %1092 = vperm.xlu0 %1091, %v264
      %v1093 = vpop.permute.xlu0 %1092
      %v1095 = vmul.f32 %v1093, %v1089
      %v1096 = vmul.f32 %v1093, %v1090
      %v1097 = vadd.f32 %v1080, %v1095
      %v1098 = vadd.f32 %v1081, %v1096
      %1099 = vrot.lane.b32.xlu0 %v989, 112
      %v1100 = vpop.permute.xlu0 %1099
      %1101 = vrot.lane.b32.xlu0 %v990, 112
      %v1102 = vpop.permute.xlu0 %1101
      %v1103 = vsel %vm301, %v1100, %v1102
      %v1104 = vsel %vm301, %v1102, %v1100
      %v1105 = vmul.f32 %v1103, %v243
      %v1106 = vmul.f32 %v1104, %v244
      %1107 = vset.pattern.permute.xlu0 7
      %1108 = vperm.xlu0 %1107, %v264
      %v1109 = vpop.permute.xlu0 %1108
      %v1111 = vmul.f32 %v1109, %v1105
      %v1112 = vmul.f32 %v1109, %v1106
      %v1113 = vadd.f32 %v1097, %v1111
      %v1114 = vadd.f32 %v1098, %v1112
      %1115 = vrot.lane.b32.xlu0 %v989, 111
      %v1116 = vpop.permute.xlu0 %1115
      %1117 = vrot.lane.b32.xlu0 %v990, 111
      %v1118 = vpop.permute.xlu0 %1117
      %vm1119 = vcmp.lt.s32.totalorder %v153, 111
      %v1120 = vsel %vm1119, %v1116, %v1118
      %v1121 = vsel %vm1119, %v1118, %v1116
      %v1122 = vmul.f32 %v1120, %v249
      %v1123 = vmul.f32 %v1121, %v250
      %1124 = vset.pattern.permute.xlu0 8
      %1125 = vperm.xlu0 %1124, %v264
      %v1126 = vpop.permute.xlu0 %1125
      %v1128 = vmul.f32 %v1126, %v1122
      %v1129 = vmul.f32 %v1126, %v1123
      %v1130 = vadd.f32 %v1113, %v1128
      %v1131 = vadd.f32 %v1114, %v1129
      %1132 = vset.pattern.permute.xlu0 16
      %1133 = vperm.xlu0 %1132, %v264
      %v1134 = vpop.permute.xlu0 %1133
      %v1136 = vadd.f32 %v1130, %v1134
      %v1137 = vadd.f32 %v1131, %v1134
      %v1138 = vmax.f32 %v1136, 0.0
      %v1139 = vmax.f32 %v1137, 0.0
      %v1140 = vmul.f32 %v989, %v850
      %v1141 = vmul.f32 %v990, %v851
      %v1142 = vmul.f32 %v1138, %v852
      %v1143 = vmul.f32 %v1139, %v853
      %1145 = vset.pattern.permute.xlu0 0
      %1146 = vperm.xlu0 %1145, %v271
      %v1147 = vpop.permute.xlu0 %1146
      %v1149 = vlaneseq
      %v1150 = vshrl.u32 %v1149, 7
      %v1151 = vsub.s32 0, %v1150
      %v1152 = vrot.slane %v1140, %v1151
      %v1153 = vlaneseq
      %v1154 = vshrl.u32 %v1153, 7
      %v1155 = vsub.s32 0, %v1154
      %v1156 = vrot.slane %v1141, %v1155
      %v1157 = vmul.f32 %v1147, %v1152
      %v1158 = vmul.f32 %v1147, %v1156
      %v1159 = vadd.f32 %v1157, 0.0
      %v1160 = vadd.f32 %v1158, 0.0
      %1161 = vset.pattern.permute.xlu0 1
      %1162 = vperm.xlu0 %1161, %v271
      %v1163 = vpop.permute.xlu0 %1162
      %v1165 = vlaneseq
      %v1166 = vshrl.u32 %v1165, 7
      %v1167 = vsub.s32 1, %v1166
      %v1168 = vrot.slane %v1140, %v1167
      %v1169 = vlaneseq
      %v1170 = vshrl.u32 %v1169, 7
      %v1171 = vsub.s32 1, %v1170
      %v1172 = vrot.slane %v1141, %v1171
      %v1173 = vmul.f32 %v1163, %v1168
      %v1174 = vmul.f32 %v1163, %v1172
      %v1175 = vadd.f32 %v1159, %v1173
      %v1176 = vadd.f32 %v1160, %v1174
      %1177 = vset.pattern.permute.xlu0 2
      %1178 = vperm.xlu0 %1177, %v271
      %v1179 = vpop.permute.xlu0 %1178
      %v1181 = vlaneseq
      %v1182 = vshrl.u32 %v1181, 7
      %v1183 = vsub.s32 2, %v1182
      %v1184 = vrot.slane %v1140, %v1183
      %v1185 = vlaneseq
      %v1186 = vshrl.u32 %v1185, 7
      %v1187 = vsub.s32 2, %v1186
      %v1188 = vrot.slane %v1141, %v1187
      %v1189 = vmul.f32 %v1179, %v1184
      %v1190 = vmul.f32 %v1179, %v1188
      %v1191 = vadd.f32 %v1175, %v1189
      %v1192 = vadd.f32 %v1176, %v1190
      %1193 = vset.pattern.permute.xlu0 3
      %1194 = vperm.xlu0 %1193, %v271
      %v1195 = vpop.permute.xlu0 %1194
      %v1197 = vlaneseq
      %v1198 = vshrl.u32 %v1197, 7
      %v1199 = vsub.s32 3, %v1198
      %v1200 = vrot.slane %v1140, %v1199
      %v1201 = vlaneseq
      %v1202 = vshrl.u32 %v1201, 7
      %v1203 = vsub.s32 3, %v1202
      %v1204 = vrot.slane %v1141, %v1203
      %v1205 = vmul.f32 %v1195, %v1200
      %v1206 = vmul.f32 %v1195, %v1204
      %v1207 = vadd.f32 %v1191, %v1205
      %v1208 = vadd.f32 %v1192, %v1206
      %1209 = vset.pattern.permute.xlu0 4
      %1210 = vperm.xlu0 %1209, %v271
      %v1211 = vpop.permute.xlu0 %1210
      %v1213 = vlaneseq
      %v1214 = vshrl.u32 %v1213, 7
      %v1215 = vsub.s32 4, %v1214
      %v1216 = vrot.slane %v1140, %v1215
      %v1217 = vlaneseq
      %v1218 = vshrl.u32 %v1217, 7
      %v1219 = vsub.s32 4, %v1218
      %v1220 = vrot.slane %v1141, %v1219
      %v1221 = vmul.f32 %v1211, %v1216
      %v1222 = vmul.f32 %v1211, %v1220
      %v1223 = vadd.f32 %v1207, %v1221
      %v1224 = vadd.f32 %v1208, %v1222
      %1225 = vset.pattern.permute.xlu0 5
      %1226 = vperm.xlu0 %1225, %v271
      %v1227 = vpop.permute.xlu0 %1226
      %v1229 = vlaneseq
      %v1230 = vshrl.u32 %v1229, 7
      %v1231 = vsub.s32 5, %v1230
      %v1232 = vrot.slane %v1140, %v1231
      %v1233 = vlaneseq
      %v1234 = vshrl.u32 %v1233, 7
      %v1235 = vsub.s32 5, %v1234
      %v1236 = vrot.slane %v1141, %v1235
      %v1237 = vmul.f32 %v1227, %v1232
      %v1238 = vmul.f32 %v1227, %v1236
      %v1239 = vadd.f32 %v1223, %v1237
      %v1240 = vadd.f32 %v1224, %v1238
      %1241 = vset.pattern.permute.xlu0 6
      %1242 = vperm.xlu0 %1241, %v271
      %v1243 = vpop.permute.xlu0 %1242
      %v1245 = vlaneseq
      %v1246 = vshrl.u32 %v1245, 7
      %v1247 = vsub.s32 6, %v1246
      %v1248 = vrot.slane %v1140, %v1247
      %v1249 = vlaneseq
      %v1250 = vshrl.u32 %v1249, 7
      %v1251 = vsub.s32 6, %v1250
      %v1252 = vrot.slane %v1141, %v1251
      %v1253 = vmul.f32 %v1243, %v1248
      %v1254 = vmul.f32 %v1243, %v1252
      %v1255 = vadd.f32 %v1239, %v1253
      %v1256 = vadd.f32 %v1240, %v1254
      %1257 = vset.pattern.permute.xlu0 7
      %1258 = vperm.xlu0 %1257, %v271
      %v1259 = vpop.permute.xlu0 %1258
      %v1261 = vlaneseq
      %v1262 = vshrl.u32 %v1261, 7
      %v1263 = vsub.s32 7, %v1262
      %v1264 = vrot.slane %v1140, %v1263
      %v1265 = vlaneseq
      %v1266 = vshrl.u32 %v1265, 7
      %v1267 = vsub.s32 7, %v1266
      %v1268 = vrot.slane %v1141, %v1267
      %v1269 = vmul.f32 %v1259, %v1264
      %v1270 = vmul.f32 %v1259, %v1268
      %v1271 = vadd.f32 %v1255, %v1269
      %v1272 = vadd.f32 %v1256, %v1270
      %1273 = vset.pattern.permute.xlu0 8
      %1274 = vperm.xlu0 %1273, %v271
      %v1275 = vpop.permute.xlu0 %1274
      %v1277 = vlaneseq
      %v1278 = vshrl.u32 %v1277, 7
      %v1279 = vsub.s32 0, %v1278
      %v1280 = vrot.slane %v1142, %v1279
      %v1281 = vlaneseq
      %v1282 = vshrl.u32 %v1281, 7
      %v1283 = vsub.s32 0, %v1282
      %v1284 = vrot.slane %v1143, %v1283
      %v1285 = vmul.f32 %v1275, %v1280
      %v1286 = vmul.f32 %v1275, %v1284
      %v1287 = vadd.f32 %v1271, %v1285
      %v1288 = vadd.f32 %v1272, %v1286
      %1289 = vset.pattern.permute.xlu0 9
      %1290 = vperm.xlu0 %1289, %v271
      %v1291 = vpop.permute.xlu0 %1290
      %v1293 = vlaneseq
      %v1294 = vshrl.u32 %v1293, 7
      %v1295 = vsub.s32 1, %v1294
      %v1296 = vrot.slane %v1142, %v1295
      %v1297 = vlaneseq
      %v1298 = vshrl.u32 %v1297, 7
      %v1299 = vsub.s32 1, %v1298
      %v1300 = vrot.slane %v1143, %v1299
      %v1301 = vmul.f32 %v1291, %v1296
      %v1302 = vmul.f32 %v1291, %v1300
      %v1303 = vadd.f32 %v1287, %v1301
      %v1304 = vadd.f32 %v1288, %v1302
      %1305 = vset.pattern.permute.xlu0 10
      %1306 = vperm.xlu0 %1305, %v271
      %v1307 = vpop.permute.xlu0 %1306
      %v1309 = vlaneseq
      %v1310 = vshrl.u32 %v1309, 7
      %v1311 = vsub.s32 2, %v1310
      %v1312 = vrot.slane %v1142, %v1311
      %v1313 = vlaneseq
      %v1314 = vshrl.u32 %v1313, 7
      %v1315 = vsub.s32 2, %v1314
      %v1316 = vrot.slane %v1143, %v1315
      %v1317 = vmul.f32 %v1307, %v1312
      %v1318 = vmul.f32 %v1307, %v1316
      %v1319 = vadd.f32 %v1303, %v1317
      %v1320 = vadd.f32 %v1304, %v1318
      %1321 = vset.pattern.permute.xlu0 11
      %1322 = vperm.xlu0 %1321, %v271
      %v1323 = vpop.permute.xlu0 %1322
      %v1325 = vlaneseq
      %v1326 = vshrl.u32 %v1325, 7
      %v1327 = vsub.s32 3, %v1326
      %v1328 = vrot.slane %v1142, %v1327
      %v1329 = vlaneseq
      %v1330 = vshrl.u32 %v1329, 7
      %v1331 = vsub.s32 3, %v1330
      %v1332 = vrot.slane %v1143, %v1331
      %v1333 = vmul.f32 %v1323, %v1328
      %v1334 = vmul.f32 %v1323, %v1332
      %v1335 = vadd.f32 %v1319, %v1333
      %v1336 = vadd.f32 %v1320, %v1334
      %1337 = vset.pattern.permute.xlu0 12
      %1338 = vperm.xlu0 %1337, %v271
      %v1339 = vpop.permute.xlu0 %1338
      %v1341 = vlaneseq
      %v1342 = vshrl.u32 %v1341, 7
      %v1343 = vsub.s32 4, %v1342
      %v1344 = vrot.slane %v1142, %v1343
      %v1345 = vlaneseq
      %v1346 = vshrl.u32 %v1345, 7
      %v1347 = vsub.s32 4, %v1346
      %v1348 = vrot.slane %v1143, %v1347
      %v1349 = vmul.f32 %v1339, %v1344
      %v1350 = vmul.f32 %v1339, %v1348
      %v1351 = vadd.f32 %v1335, %v1349
      %v1352 = vadd.f32 %v1336, %v1350
      %1353 = vset.pattern.permute.xlu0 13
      %1354 = vperm.xlu0 %1353, %v271
      %v1355 = vpop.permute.xlu0 %1354
      %v1357 = vlaneseq
      %v1358 = vshrl.u32 %v1357, 7
      %v1359 = vsub.s32 5, %v1358
      %v1360 = vrot.slane %v1142, %v1359
      %v1361 = vlaneseq
      %v1362 = vshrl.u32 %v1361, 7
      %v1363 = vsub.s32 5, %v1362
      %v1364 = vrot.slane %v1143, %v1363
      %v1365 = vmul.f32 %v1355, %v1360
      %v1366 = vmul.f32 %v1355, %v1364
      %v1367 = vadd.f32 %v1351, %v1365
      %v1368 = vadd.f32 %v1352, %v1366
      %1369 = vset.pattern.permute.xlu0 14
      %1370 = vperm.xlu0 %1369, %v271
      %v1371 = vpop.permute.xlu0 %1370
      %v1373 = vlaneseq
      %v1374 = vshrl.u32 %v1373, 7
      %v1375 = vsub.s32 6, %v1374
      %v1376 = vrot.slane %v1142, %v1375
      %v1377 = vlaneseq
      %v1378 = vshrl.u32 %v1377, 7
      %v1379 = vsub.s32 6, %v1378
      %v1380 = vrot.slane %v1143, %v1379
      %v1381 = vmul.f32 %v1371, %v1376
      %v1382 = vmul.f32 %v1371, %v1380
      %v1383 = vadd.f32 %v1367, %v1381
      %v1384 = vadd.f32 %v1368, %v1382
      %1385 = vset.pattern.permute.xlu0 15
      %1386 = vperm.xlu0 %1385, %v271
      %v1387 = vpop.permute.xlu0 %1386
      %v1389 = vlaneseq
      %v1390 = vshrl.u32 %v1389, 7
      %v1391 = vsub.s32 7, %v1390
      %v1392 = vrot.slane %v1142, %v1391
      %v1393 = vlaneseq
      %v1394 = vshrl.u32 %v1393, 7
      %v1395 = vsub.s32 7, %v1394
      %v1396 = vrot.slane %v1143, %v1395
      %v1397 = vmul.f32 %v1387, %v1392
      %v1398 = vmul.f32 %v1387, %v1396
      %v1399 = vadd.f32 %v1383, %v1397
      %v1400 = vadd.f32 %v1384, %v1398
      %1401 = vset.pattern.permute.xlu0 16
      %1402 = vperm.xlu0 %1401, %v271
      %v1403 = vpop.permute.xlu0 %1402
      %v1405 = vadd.f32 %v1399, %v1403
      %v1406 = vadd.f32 %v1400, %v1403
      %1407 = vrot.lane.b32.xlu0 %v1405, 17
      %v1408 = vpop.permute.xlu0 %1407
      %1409 = vrot.lane.b32.xlu0 %v1406, 17
      %v1410 = vpop.permute.xlu0 %1409
      %v1411 = vsel %vm995, %v1408, %v1410
      %v1412 = vsel %vm995, %v1410, %v1408
      %v1413 = vmul.f32 %v1412, %v187
      %v1414 = vmul.f32 %v1411, %v188
      %1416 = vset.pattern.permute.xlu0 0
      %1417 = vperm.xlu0 %1416, %v272
      %v1418 = vpop.permute.xlu0 %1417
      %v1420 = vmul.f32 %v1418, %v1413
      %v1421 = vmul.f32 %v1418, %v1414
      %v1422 = vadd.f32 %v1420, 0.0
      %v1423 = vadd.f32 %v1421, 0.0
      %1424 = vrot.lane.b32.xlu0 %v1405, 16
      %v1425 = vpop.permute.xlu0 %1424
      %1426 = vrot.lane.b32.xlu0 %v1406, 16
      %v1427 = vpop.permute.xlu0 %1426
      %v1428 = vsel %vm308, %v1425, %v1427
      %v1429 = vsel %vm308, %v1427, %v1425
      %v1430 = vmul.f32 %v1429, %v191
      %v1431 = vmul.f32 %v1428, %v192
      %1432 = vset.pattern.permute.xlu0 1
      %1433 = vperm.xlu0 %1432, %v272
      %v1434 = vpop.permute.xlu0 %1433
      %v1436 = vmul.f32 %v1434, %v1430
      %v1437 = vmul.f32 %v1434, %v1431
      %v1438 = vadd.f32 %v1422, %v1436
      %v1439 = vadd.f32 %v1423, %v1437
      %1440 = vrot.lane.b32.xlu0 %v1405, 15
      %v1441 = vpop.permute.xlu0 %1440
      %1442 = vrot.lane.b32.xlu0 %v1406, 15
      %v1443 = vpop.permute.xlu0 %1442
      %v1444 = vsel %vm1029, %v1441, %v1443
      %v1445 = vsel %vm1029, %v1443, %v1441
      %v1446 = vmul.f32 %v1445, %v199
      %v1447 = vmul.f32 %v1444, %v200
      %1448 = vset.pattern.permute.xlu0 2
      %1449 = vperm.xlu0 %1448, %v272
      %v1450 = vpop.permute.xlu0 %1449
      %v1452 = vmul.f32 %v1450, %v1446
      %v1453 = vmul.f32 %v1450, %v1447
      %v1454 = vadd.f32 %v1438, %v1452
      %v1455 = vadd.f32 %v1439, %v1453
      %1456 = vrot.lane.b32.xlu0 %v1405, 1
      %v1457 = vpop.permute.xlu0 %1456
      %1458 = vrot.lane.b32.xlu0 %v1406, 1
      %v1459 = vpop.permute.xlu0 %1458
      %v1460 = vsel %vm286, %v1457, %v1459
      %v1461 = vsel %vm286, %v1459, %v1457
      %v1462 = vmul.f32 %v1461, %v215
      %v1463 = vmul.f32 %v1460, %v216
      %1464 = vset.pattern.permute.xlu0 3
      %1465 = vperm.xlu0 %1464, %v272
      %v1466 = vpop.permute.xlu0 %1465
      %v1468 = vmul.f32 %v1466, %v1462
      %v1469 = vmul.f32 %v1466, %v1463
      %v1470 = vadd.f32 %v1454, %v1468
      %v1471 = vadd.f32 %v1455, %v1469
      %1472 = vset.pattern.permute.xlu0 4
      %1473 = vperm.xlu0 %1472, %v272
      %v1474 = vpop.permute.xlu0 %1473
      %v1476 = vmul.f32 %v1474, %v1405
      %v1477 = vmul.f32 %v1474, %v1406
      %v1478 = vadd.f32 %v1470, %v1476
      %v1479 = vadd.f32 %v1471, %v1477
      %1480 = vrot.lane.b32.xlu0 %v1405, 127
      %v1481 = vpop.permute.xlu0 %1480
      %1482 = vrot.lane.b32.xlu0 %v1406, 127
      %v1483 = vpop.permute.xlu0 %1482
      %v1484 = vsel %vm279, %v1481, %v1483
      %v1485 = vsel %vm279, %v1483, %v1481
      %v1486 = vmul.f32 %v1484, %v219
      %v1487 = vmul.f32 %v1485, %v220
      %1488 = vset.pattern.permute.xlu0 5
      %1489 = vperm.xlu0 %1488, %v272
      %v1490 = vpop.permute.xlu0 %1489
      %v1492 = vmul.f32 %v1490, %v1486
      %v1493 = vmul.f32 %v1490, %v1487
      %v1494 = vadd.f32 %v1478, %v1492
      %v1495 = vadd.f32 %v1479, %v1493
      %1496 = vrot.lane.b32.xlu0 %v1405, 113
      %v1497 = vpop.permute.xlu0 %1496
      %1498 = vrot.lane.b32.xlu0 %v1406, 113
      %v1499 = vpop.permute.xlu0 %1498
      %v1500 = vsel %vm1086, %v1497, %v1499
      %v1501 = vsel %vm1086, %v1499, %v1497
      %v1502 = vmul.f32 %v1500, %v239
      %v1503 = vmul.f32 %v1501, %v240
      %1504 = vset.pattern.permute.xlu0 6
      %1505 = vperm.xlu0 %1504, %v272
      %v1506 = vpop.permute.xlu0 %1505
      %v1508 = vmul.f32 %v1506, %v1502
      %v1509 = vmul.f32 %v1506, %v1503
      %v1510 = vadd.f32 %v1494, %v1508
      %v1511 = vadd.f32 %v1495, %v1509
      %1512 = vrot.lane.b32.xlu0 %v1405, 112
      %v1513 = vpop.permute.xlu0 %1512
      %1514 = vrot.lane.b32.xlu0 %v1406, 112
      %v1515 = vpop.permute.xlu0 %1514
      %v1516 = vsel %vm301, %v1513, %v1515
      %v1517 = vsel %vm301, %v1515, %v1513
      %v1518 = vmul.f32 %v1516, %v243
      %v1519 = vmul.f32 %v1517, %v244
      %1520 = vset.pattern.permute.xlu0 7
      %1521 = vperm.xlu0 %1520, %v272
      %v1522 = vpop.permute.xlu0 %1521
      %v1524 = vmul.f32 %v1522, %v1518
      %v1525 = vmul.f32 %v1522, %v1519
      %v1526 = vadd.f32 %v1510, %v1524
      %v1527 = vadd.f32 %v1511, %v1525
      %1528 = vrot.lane.b32.xlu0 %v1405, 111
      %v1529 = vpop.permute.xlu0 %1528
      %1530 = vrot.lane.b32.xlu0 %v1406, 111
      %v1531 = vpop.permute.xlu0 %1530
      %v1532 = vsel %vm1119, %v1529, %v1531
      %v1533 = vsel %vm1119, %v1531, %v1529
      %v1534 = vmul.f32 %v1532, %v249
      %v1535 = vmul.f32 %v1533, %v250
      %1536 = vset.pattern.permute.xlu0 8
      %1537 = vperm.xlu0 %1536, %v272
      %v1538 = vpop.permute.xlu0 %1537
      %v1540 = vmul.f32 %v1538, %v1534
      %v1541 = vmul.f32 %v1538, %v1535
      %v1542 = vadd.f32 %v1526, %v1540
      %v1543 = vadd.f32 %v1527, %v1541
      %1544 = vset.pattern.permute.xlu0 16
      %1545 = vperm.xlu0 %1544, %v272
      %v1546 = vpop.permute.xlu0 %1545
      %v1548 = vadd.f32 %v1542, %v1546
      %v1549 = vadd.f32 %v1543, %v1546
      %v1552 = vrot.slane %v1548, 4
      %v1553 = vrot.slane %v1549, 4
      %vm1556 = vcmask 1043456
      %v1557 = vsel %vm1556, %v1405, %v1552
      %v1558 = vsel %vm1556, %v1406, %v1553
      %v1559 = vadd.f32 %v1557, %v273
      %v1560 = vadd.f32 %v1558, %v274
      %1561 = vst [vmem:[%s150] sm:$0xff] %v1559
      %1562 = vst [vmem:[%s150 + $0x8] sm:$0xff] %v1560
      %s1563 = scalar_lea.vmem %s143, 16
      %v1564 = vld [vmem:[%s1563] sm:$0xff]
      %v1565 = vld [vmem:[%s1563 + $0x8] sm:$0xff]
      %1566 = vrot.lane.b32.xlu0 %v1564, 127
      %v1567 = vpop.permute.xlu0 %1566
      %1568 = vrot.lane.b32.xlu0 %v1565, 127
      %v1569 = vpop.permute.xlu0 %1568
      %v1570 = vsel %vm279, %v1567, %v1569
      %v1571 = vsel %vm279, %v1569, %v1567
      %1572 = vrot.lane.b32.xlu0 %v1564, 1
      %v1573 = vpop.permute.xlu0 %1572
      %1574 = vrot.lane.b32.xlu0 %v1565, 1
      %v1575 = vpop.permute.xlu0 %1574
      %v1576 = vsel %vm286, %v1573, %v1575
      %v1577 = vsel %vm286, %v1575, %v1573
      %v1578 = vsel %vm291, %v1570, %v1577
      %v1579 = vsel %vm292, %v1571, %v1576
      %v1580 = vadd.f32 %v1564, %v1578
      %v1581 = vadd.f32 %v1565, %v1579
      %1582 = vrot.lane.b32.xlu0 %v1580, 112
      %v1583 = vpop.permute.xlu0 %1582
      %1584 = vrot.lane.b32.xlu0 %v1581, 112
      %v1585 = vpop.permute.xlu0 %1584
      %v1586 = vsel %vm301, %v1583, %v1585
      %v1587 = vsel %vm301, %v1585, %v1583
      %1588 = vrot.lane.b32.xlu0 %v1580, 16
      %v1589 = vpop.permute.xlu0 %1588
      %1590 = vrot.lane.b32.xlu0 %v1581, 16
      %v1591 = vpop.permute.xlu0 %1590
      %v1592 = vsel %vm308, %v1589, %v1591
      %v1593 = vsel %vm308, %v1591, %v1589
      %v1594 = vsel %vm313, %v1586, %v1593
      %v1595 = vsel %vm314, %v1587, %v1592
      %v1596 = vadd.f32 %v1580, %v1594
      %v1597 = vadd.f32 %v1581, %v1595
      %v1598 = vmul.f32 %v1596, 0.25
      %v1599 = vmul.f32 %v1597, 0.25
      %v1600 = vlaneseq
      %v1601 = vshrl.u32 %v1600, 7
      %v1602 = vsub.s32 0, %v1601
      %v1603 = vrot.slane %v1598, %v1602
      %v1604 = vlaneseq
      %v1605 = vshrl.u32 %v1604, 7
      %v1606 = vsub.s32 0, %v1605
      %v1607 = vrot.slane %v1599, %v1606
      %v1608 = vmul.f32 %v324, %v1603
      %v1609 = vmul.f32 %v324, %v1607
      %v1610 = vmul.f32 %v329, %v1603
      %v1611 = vmul.f32 %v329, %v1607
      %v1612 = vadd.f32 %v1608, 0.0
      %v1613 = vadd.f32 %v1609, 0.0
      %v1614 = vadd.f32 %v1610, 0.0
      %v1615 = vadd.f32 %v1611, 0.0
      %v1616 = vlaneseq
      %v1617 = vshrl.u32 %v1616, 7
      %v1618 = vsub.s32 1, %v1617
      %v1619 = vrot.slane %v1598, %v1618
      %v1620 = vlaneseq
      %v1621 = vshrl.u32 %v1620, 7
      %v1622 = vsub.s32 1, %v1621
      %v1623 = vrot.slane %v1599, %v1622
      %v1624 = vmul.f32 %v349, %v1619
      %v1625 = vmul.f32 %v349, %v1623
      %v1626 = vmul.f32 %v353, %v1619
      %v1627 = vmul.f32 %v353, %v1623
      %v1628 = vadd.f32 %v1612, %v1624
      %v1629 = vadd.f32 %v1613, %v1625
      %v1630 = vadd.f32 %v1614, %v1626
      %v1631 = vadd.f32 %v1615, %v1627
      %v1632 = vlaneseq
      %v1633 = vshrl.u32 %v1632, 7
      %v1634 = vsub.s32 2, %v1633
      %v1635 = vrot.slane %v1598, %v1634
      %v1636 = vlaneseq
      %v1637 = vshrl.u32 %v1636, 7
      %v1638 = vsub.s32 2, %v1637
      %v1639 = vrot.slane %v1599, %v1638
      %v1640 = vmul.f32 %v373, %v1635
      %v1641 = vmul.f32 %v373, %v1639
      %v1642 = vmul.f32 %v377, %v1635
      %v1643 = vmul.f32 %v377, %v1639
      %v1644 = vadd.f32 %v1628, %v1640
      %v1645 = vadd.f32 %v1629, %v1641
      %v1646 = vadd.f32 %v1630, %v1642
      %v1647 = vadd.f32 %v1631, %v1643
      %v1648 = vlaneseq
      %v1649 = vshrl.u32 %v1648, 7
      %v1650 = vsub.s32 3, %v1649
      %v1651 = vrot.slane %v1598, %v1650
      %v1652 = vlaneseq
      %v1653 = vshrl.u32 %v1652, 7
      %v1654 = vsub.s32 3, %v1653
      %v1655 = vrot.slane %v1599, %v1654
      %v1656 = vmul.f32 %v397, %v1651
      %v1657 = vmul.f32 %v397, %v1655
      %v1658 = vmul.f32 %v401, %v1651
      %v1659 = vmul.f32 %v401, %v1655
      %v1660 = vadd.f32 %v1644, %v1656
      %v1661 = vadd.f32 %v1645, %v1657
      %v1662 = vadd.f32 %v1646, %v1658
      %v1663 = vadd.f32 %v1647, %v1659
      %v1664 = vlaneseq
      %v1665 = vshrl.u32 %v1664, 7
      %v1666 = vsub.s32 4, %v1665
      %v1667 = vrot.slane %v1598, %v1666
      %v1668 = vlaneseq
      %v1669 = vshrl.u32 %v1668, 7
      %v1670 = vsub.s32 4, %v1669
      %v1671 = vrot.slane %v1599, %v1670
      %v1672 = vmul.f32 %v421, %v1667
      %v1673 = vmul.f32 %v421, %v1671
      %v1674 = vmul.f32 %v425, %v1667
      %v1675 = vmul.f32 %v425, %v1671
      %v1676 = vadd.f32 %v1660, %v1672
      %v1677 = vadd.f32 %v1661, %v1673
      %v1678 = vadd.f32 %v1662, %v1674
      %v1679 = vadd.f32 %v1663, %v1675
      %v1680 = vlaneseq
      %v1681 = vshrl.u32 %v1680, 7
      %v1682 = vsub.s32 5, %v1681
      %v1683 = vrot.slane %v1598, %v1682
      %v1684 = vlaneseq
      %v1685 = vshrl.u32 %v1684, 7
      %v1686 = vsub.s32 5, %v1685
      %v1687 = vrot.slane %v1599, %v1686
      %v1688 = vmul.f32 %v445, %v1683
      %v1689 = vmul.f32 %v445, %v1687
      %v1690 = vmul.f32 %v449, %v1683
      %v1691 = vmul.f32 %v449, %v1687
      %v1692 = vadd.f32 %v1676, %v1688
      %v1693 = vadd.f32 %v1677, %v1689
      %v1694 = vadd.f32 %v1678, %v1690
      %v1695 = vadd.f32 %v1679, %v1691
      %v1696 = vlaneseq
      %v1697 = vshrl.u32 %v1696, 7
      %v1698 = vsub.s32 6, %v1697
      %v1699 = vrot.slane %v1598, %v1698
      %v1700 = vlaneseq
      %v1701 = vshrl.u32 %v1700, 7
      %v1702 = vsub.s32 6, %v1701
      %v1703 = vrot.slane %v1599, %v1702
      %v1704 = vmul.f32 %v469, %v1699
      %v1705 = vmul.f32 %v469, %v1703
      %v1706 = vmul.f32 %v473, %v1699
      %v1707 = vmul.f32 %v473, %v1703
      %v1708 = vadd.f32 %v1692, %v1704
      %v1709 = vadd.f32 %v1693, %v1705
      %v1710 = vadd.f32 %v1694, %v1706
      %v1711 = vadd.f32 %v1695, %v1707
      %v1712 = vlaneseq
      %v1713 = vshrl.u32 %v1712, 7
      %v1714 = vsub.s32 7, %v1713
      %v1715 = vrot.slane %v1598, %v1714
      %v1716 = vlaneseq
      %v1717 = vshrl.u32 %v1716, 7
      %v1718 = vsub.s32 7, %v1717
      %v1719 = vrot.slane %v1599, %v1718
      %v1720 = vmul.f32 %v493, %v1715
      %v1721 = vmul.f32 %v493, %v1719
      %v1722 = vmul.f32 %v497, %v1715
      %v1723 = vmul.f32 %v497, %v1719
      %v1724 = vadd.f32 %v1708, %v1720
      %v1725 = vadd.f32 %v1709, %v1721
      %v1726 = vadd.f32 %v1710, %v1722
      %v1727 = vadd.f32 %v1711, %v1723
      %v1728 = vadd.f32 %v1724, %v517
      %v1729 = vadd.f32 %v1725, %v517
      %v1730 = vadd.f32 %v1726, %v521
      %v1731 = vadd.f32 %v1727, %v521
      %1732 = vrot.lane.b32.xlu0 %v1728, 4
      %v1733 = vpop.permute.xlu0 %1732
      %1734 = vrot.lane.b32.xlu0 %v1730, 4
      %v1735 = vpop.permute.xlu0 %1734
      %1736 = vrot.lane.b32.xlu0 %v1729, 4
      %v1737 = vpop.permute.xlu0 %1736
      %1738 = vrot.lane.b32.xlu0 %v1731, 4
      %v1739 = vpop.permute.xlu0 %1738
      %v1740 = vsel %vm535, %v1733, %v1737
      %v1741 = vsel %vm535, %v1735, %v1739
      %v1742 = vsel %vm535, %v1737, %v1733
      %v1743 = vsel %vm535, %v1739, %v1735
      %v1744 = vmul.f32 %v1742, %v205
      %v1745 = vmul.f32 %v1740, %v206
      %v1746 = vmul.f32 %v1743, %v205
      %v1747 = vmul.f32 %v1741, %v206
      %v1748 = vmul.f32 %v547, %v1744
      %v1749 = vmul.f32 %v547, %v1745
      %v1750 = vmul.f32 %v552, %v1746
      %v1751 = vmul.f32 %v552, %v1747
      %v1752 = vadd.f32 %v1748, 0.0
      %v1753 = vadd.f32 %v1749, 0.0
      %v1754 = vadd.f32 %v1750, 0.0
      %v1755 = vadd.f32 %v1751, 0.0
      %1756 = vrot.lane.b32.xlu0 %v1728, 2
      %v1757 = vpop.permute.xlu0 %1756
      %1758 = vrot.lane.b32.xlu0 %v1730, 2
      %v1759 = vpop.permute.xlu0 %1758
      %1760 = vrot.lane.b32.xlu0 %v1729, 2
      %v1761 = vpop.permute.xlu0 %1760
      %1762 = vrot.lane.b32.xlu0 %v1731, 2
      %v1763 = vpop.permute.xlu0 %1762
      %v1764 = vsel %vm570, %v1757, %v1761
      %v1765 = vsel %vm570, %v1759, %v1763
      %v1766 = vsel %vm570, %v1761, %v1757
      %v1767 = vsel %vm570, %v1763, %v1759
      %v1768 = vmul.f32 %v1766, %v211
      %v1769 = vmul.f32 %v1764, %v212
      %v1770 = vmul.f32 %v1767, %v211
      %v1771 = vmul.f32 %v1765, %v212
      %v1772 = vmul.f32 %v581, %v1768
      %v1773 = vmul.f32 %v581, %v1769
      %v1774 = vmul.f32 %v585, %v1770
      %v1775 = vmul.f32 %v585, %v1771
      %v1776 = vadd.f32 %v1752, %v1772
      %v1777 = vadd.f32 %v1753, %v1773
      %v1778 = vadd.f32 %v1754, %v1774
      %v1779 = vadd.f32 %v1755, %v1775
      %v1780 = vmul.f32 %v597, %v1728
      %v1781 = vmul.f32 %v597, %v1729
      %v1782 = vmul.f32 %v601, %v1730
      %v1783 = vmul.f32 %v601, %v1731
      %v1784 = vadd.f32 %v1776, %v1780
      %v1785 = vadd.f32 %v1777, %v1781
      %v1786 = vadd.f32 %v1778, %v1782
      %v1787 = vadd.f32 %v1779, %v1783
      %1788 = vrot.lane.b32.xlu0 %v1728, 126
      %v1789 = vpop.permute.xlu0 %1788
      %1790 = vrot.lane.b32.xlu0 %v1730, 126
      %v1791 = vpop.permute.xlu0 %1790
      %1792 = vrot.lane.b32.xlu0 %v1729, 126
      %v1793 = vpop.permute.xlu0 %1792
      %1794 = vrot.lane.b32.xlu0 %v1731, 126
      %v1795 = vpop.permute.xlu0 %1794
      %v1796 = vsel %vm619, %v1789, %v1793
      %v1797 = vsel %vm619, %v1791, %v1795
      %v1798 = vsel %vm619, %v1793, %v1789
      %v1799 = vsel %vm619, %v1795, %v1791
      %v1800 = vmul.f32 %v1796, %v225
      %v1801 = vmul.f32 %v1798, %v226
      %v1802 = vmul.f32 %v1797, %v225
      %v1803 = vmul.f32 %v1799, %v226
      %v1804 = vmul.f32 %v630, %v1800
      %v1805 = vmul.f32 %v630, %v1801
      %v1806 = vmul.f32 %v634, %v1802
      %v1807 = vmul.f32 %v634, %v1803
      %v1808 = vadd.f32 %v1784, %v1804
      %v1809 = vadd.f32 %v1785, %v1805
      %v1810 = vadd.f32 %v1786, %v1806
      %v1811 = vadd.f32 %v1787, %v1807
      %1812 = vrot.lane.b32.xlu0 %v1728, 124
      %v1813 = vpop.permute.xlu0 %1812
      %1814 = vrot.lane.b32.xlu0 %v1730, 124
      %v1815 = vpop.permute.xlu0 %1814
      %1816 = vrot.lane.b32.xlu0 %v1729, 124
      %v1817 = vpop.permute.xlu0 %1816
      %1818 = vrot.lane.b32.xlu0 %v1731, 124
      %v1819 = vpop.permute.xlu0 %1818
      %v1820 = vsel %vm652, %v1813, %v1817
      %v1821 = vsel %vm652, %v1815, %v1819
      %v1822 = vsel %vm652, %v1817, %v1813
      %v1823 = vsel %vm652, %v1819, %v1815
      %v1824 = vmul.f32 %v1820, %v231
      %v1825 = vmul.f32 %v1822, %v232
      %v1826 = vmul.f32 %v1821, %v231
      %v1827 = vmul.f32 %v1823, %v232
      %v1828 = vmul.f32 %v663, %v1824
      %v1829 = vmul.f32 %v663, %v1825
      %v1830 = vmul.f32 %v667, %v1826
      %v1831 = vmul.f32 %v667, %v1827
      %v1832 = vadd.f32 %v1808, %v1828
      %v1833 = vadd.f32 %v1809, %v1829
      %v1834 = vadd.f32 %v1810, %v1830
      %v1835 = vadd.f32 %v1811, %v1831
      %v1836 = vadd.f32 %v1832, %v679
      %v1837 = vadd.f32 %v1833, %v679
      %v1838 = vadd.f32 %v1834, %v683
      %v1839 = vadd.f32 %v1835, %v683
      %1840 = vrot.lane.b32.xlu0 %v1836, 64
      %v1841 = vpop.permute.xlu0 %1840
      %1842 = vrot.lane.b32.xlu0 %v1838, 64
      %v1843 = vpop.permute.xlu0 %1842
      %1844 = vrot.lane.b32.xlu0 %v1837, 64
      %v1845 = vpop.permute.xlu0 %1844
      %1846 = vrot.lane.b32.xlu0 %v1839, 64
      %v1847 = vpop.permute.xlu0 %1846
      %v1848 = vsel %vm697, %v1841, %v1845
      %v1849 = vsel %vm697, %v1843, %v1847
      %v1850 = vsel %vm697, %v1845, %v1841
      %v1851 = vsel %vm697, %v1847, %v1843
      %v1852 = vmul.f32 %v1850, %v171
      %v1853 = vmul.f32 %v1848, %v172
      %v1854 = vmul.f32 %v1851, %v171
      %v1855 = vmul.f32 %v1849, %v172
      %v1856 = vmul.f32 %v709, %v1852
      %v1857 = vmul.f32 %v709, %v1853
      %v1858 = vmul.f32 %v714, %v1854
      %v1859 = vmul.f32 %v714, %v1855
      %v1860 = vadd.f32 %v1856, 0.0
      %v1861 = vadd.f32 %v1857, 0.0
      %v1862 = vadd.f32 %v1858, 0.0
      %v1863 = vadd.f32 %v1859, 0.0
      %1864 = vrot.lane.b32.xlu0 %v1836, 32
      %v1865 = vpop.permute.xlu0 %1864
      %1866 = vrot.lane.b32.xlu0 %v1838, 32
      %v1867 = vpop.permute.xlu0 %1866
      %1868 = vrot.lane.b32.xlu0 %v1837, 32
      %v1869 = vpop.permute.xlu0 %1868
      %1870 = vrot.lane.b32.xlu0 %v1839, 32
      %v1871 = vpop.permute.xlu0 %1870
      %v1872 = vsel %vm732, %v1865, %v1869
      %v1873 = vsel %vm732, %v1867, %v1871
      %v1874 = vsel %vm732, %v1869, %v1865
      %v1875 = vsel %vm732, %v1871, %v1867
      %v1876 = vmul.f32 %v1874, %v177
      %v1877 = vmul.f32 %v1872, %v178
      %v1878 = vmul.f32 %v1875, %v177
      %v1879 = vmul.f32 %v1873, %v178
      %v1880 = vmul.f32 %v743, %v1876
      %v1881 = vmul.f32 %v743, %v1877
      %v1882 = vmul.f32 %v747, %v1878
      %v1883 = vmul.f32 %v747, %v1879
      %v1884 = vadd.f32 %v1860, %v1880
      %v1885 = vadd.f32 %v1861, %v1881
      %v1886 = vadd.f32 %v1862, %v1882
      %v1887 = vadd.f32 %v1863, %v1883
      %v1888 = vmul.f32 %v759, %v1836
      %v1889 = vmul.f32 %v759, %v1837
      %v1890 = vmul.f32 %v763, %v1838
      %v1891 = vmul.f32 %v763, %v1839
      %v1892 = vadd.f32 %v1884, %v1888
      %v1893 = vadd.f32 %v1885, %v1889
      %v1894 = vadd.f32 %v1886, %v1890
      %v1895 = vadd.f32 %v1887, %v1891
      %1896 = vrot.lane.b32.xlu0 %v1836, 96
      %v1897 = vpop.permute.xlu0 %1896
      %1898 = vrot.lane.b32.xlu0 %v1838, 96
      %v1899 = vpop.permute.xlu0 %1898
      %1900 = vrot.lane.b32.xlu0 %v1837, 96
      %v1901 = vpop.permute.xlu0 %1900
      %1902 = vrot.lane.b32.xlu0 %v1839, 96
      %v1903 = vpop.permute.xlu0 %1902
      %v1904 = vsel %vm781, %v1897, %v1901
      %v1905 = vsel %vm781, %v1899, %v1903
      %v1906 = vsel %vm781, %v1901, %v1897
      %v1907 = vsel %vm781, %v1903, %v1899
      %v1908 = vmul.f32 %v1904, %v255
      %v1909 = vmul.f32 %v1906, %v256
      %v1910 = vmul.f32 %v1905, %v255
      %v1911 = vmul.f32 %v1907, %v256
      %v1912 = vmul.f32 %v792, %v1908
      %v1913 = vmul.f32 %v792, %v1909
      %v1914 = vmul.f32 %v796, %v1910
      %v1915 = vmul.f32 %v796, %v1911
      %v1916 = vadd.f32 %v1892, %v1912
      %v1917 = vadd.f32 %v1893, %v1913
      %v1918 = vadd.f32 %v1894, %v1914
      %v1919 = vadd.f32 %v1895, %v1915
      %v1920 = vmul.f32 %v1848, %v261
      %v1921 = vmul.f32 %v1850, %v262
      %v1922 = vmul.f32 %v1849, %v261
      %v1923 = vmul.f32 %v1851, %v262
      %v1924 = vmul.f32 %v812, %v1920
      %v1925 = vmul.f32 %v812, %v1921
      %v1926 = vmul.f32 %v816, %v1922
      %v1927 = vmul.f32 %v816, %v1923
      %v1928 = vadd.f32 %v1916, %v1924
      %v1929 = vadd.f32 %v1917, %v1925
      %v1930 = vadd.f32 %v1918, %v1926
      %v1931 = vadd.f32 %v1919, %v1927
      %v1932 = vadd.f32 %v1928, %v828
      %v1933 = vadd.f32 %v1929, %v828
      %v1934 = vadd.f32 %v1930, %v832
      %v1935 = vadd.f32 %v1931, %v832
      %v1936 = vmul.f32 %v1932, 0.5
      %v1937 = vmul.f32 %v1933, 0.5
      %v1938 = vmul.f32 %v1934, 0.5
      %v1939 = vmul.f32 %v1935, 0.5
      %v1940 = vtanh.pop %v1936
      %v1941 = vtanh.pop %v1937
      %v1942 = vtanh.pop %v1938
      %v1943 = vtanh.pop %v1939
      %v1944 = vadd.f32 %v1940, 1.0
      %v1945 = vadd.f32 %v1941, 1.0
      %v1946 = vadd.f32 %v1942, 1.0
      %v1947 = vadd.f32 %v1943, 1.0
      %v1948 = vmul.f32 %v1944, 0.5
      %v1949 = vmul.f32 %v1945, 0.5
      %v1950 = vmul.f32 %v1946, 0.5
      %v1951 = vmul.f32 %v1947, 0.5
      %v1952 = vlaneseq
      %v1953 = vshrl.u32 %v1952, 7
      %v1954 = vsub.s32 0, %v1953
      %v1955 = vrot.slane %v1564, %v1954
      %v1956 = vlaneseq
      %v1957 = vshrl.u32 %v1956, 7
      %v1958 = vsub.s32 0, %v1957
      %v1959 = vrot.slane %v1565, %v1958
      %v1960 = vmul.f32 %v857, %v1955
      %v1961 = vmul.f32 %v857, %v1959
      %v1962 = vadd.f32 %v1960, 0.0
      %v1963 = vadd.f32 %v1961, 0.0
      %v1964 = vlaneseq
      %v1965 = vshrl.u32 %v1964, 7
      %v1966 = vsub.s32 1, %v1965
      %v1967 = vrot.slane %v1564, %v1966
      %v1968 = vlaneseq
      %v1969 = vshrl.u32 %v1968, 7
      %v1970 = vsub.s32 1, %v1969
      %v1971 = vrot.slane %v1565, %v1970
      %v1972 = vmul.f32 %v873, %v1967
      %v1973 = vmul.f32 %v873, %v1971
      %v1974 = vadd.f32 %v1962, %v1972
      %v1975 = vadd.f32 %v1963, %v1973
      %v1976 = vlaneseq
      %v1977 = vshrl.u32 %v1976, 7
      %v1978 = vsub.s32 2, %v1977
      %v1979 = vrot.slane %v1564, %v1978
      %v1980 = vlaneseq
      %v1981 = vshrl.u32 %v1980, 7
      %v1982 = vsub.s32 2, %v1981
      %v1983 = vrot.slane %v1565, %v1982
      %v1984 = vmul.f32 %v889, %v1979
      %v1985 = vmul.f32 %v889, %v1983
      %v1986 = vadd.f32 %v1974, %v1984
      %v1987 = vadd.f32 %v1975, %v1985
      %v1988 = vlaneseq
      %v1989 = vshrl.u32 %v1988, 7
      %v1990 = vsub.s32 3, %v1989
      %v1991 = vrot.slane %v1564, %v1990
      %v1992 = vlaneseq
      %v1993 = vshrl.u32 %v1992, 7
      %v1994 = vsub.s32 3, %v1993
      %v1995 = vrot.slane %v1565, %v1994
      %v1996 = vmul.f32 %v905, %v1991
      %v1997 = vmul.f32 %v905, %v1995
      %v1998 = vadd.f32 %v1986, %v1996
      %v1999 = vadd.f32 %v1987, %v1997
      %v2000 = vlaneseq
      %v2001 = vshrl.u32 %v2000, 7
      %v2002 = vsub.s32 4, %v2001
      %v2003 = vrot.slane %v1564, %v2002
      %v2004 = vlaneseq
      %v2005 = vshrl.u32 %v2004, 7
      %v2006 = vsub.s32 4, %v2005
      %v2007 = vrot.slane %v1565, %v2006
      %v2008 = vmul.f32 %v921, %v2003
      %v2009 = vmul.f32 %v921, %v2007
      %v2010 = vadd.f32 %v1998, %v2008
      %v2011 = vadd.f32 %v1999, %v2009
      %v2012 = vlaneseq
      %v2013 = vshrl.u32 %v2012, 7
      %v2014 = vsub.s32 5, %v2013
      %v2015 = vrot.slane %v1564, %v2014
      %v2016 = vlaneseq
      %v2017 = vshrl.u32 %v2016, 7
      %v2018 = vsub.s32 5, %v2017
      %v2019 = vrot.slane %v1565, %v2018
      %v2020 = vmul.f32 %v937, %v2015
      %v2021 = vmul.f32 %v937, %v2019
      %v2022 = vadd.f32 %v2010, %v2020
      %v2023 = vadd.f32 %v2011, %v2021
      %v2024 = vlaneseq
      %v2025 = vshrl.u32 %v2024, 7
      %v2026 = vsub.s32 6, %v2025
      %v2027 = vrot.slane %v1564, %v2026
      %v2028 = vlaneseq
      %v2029 = vshrl.u32 %v2028, 7
      %v2030 = vsub.s32 6, %v2029
      %v2031 = vrot.slane %v1565, %v2030
      %v2032 = vmul.f32 %v953, %v2027
      %v2033 = vmul.f32 %v953, %v2031
      %v2034 = vadd.f32 %v2022, %v2032
      %v2035 = vadd.f32 %v2023, %v2033
      %v2036 = vlaneseq
      %v2037 = vshrl.u32 %v2036, 7
      %v2038 = vsub.s32 7, %v2037
      %v2039 = vrot.slane %v1564, %v2038
      %v2040 = vlaneseq
      %v2041 = vshrl.u32 %v2040, 7
      %v2042 = vsub.s32 7, %v2041
      %v2043 = vrot.slane %v1565, %v2042
      %v2044 = vmul.f32 %v969, %v2039
      %v2045 = vmul.f32 %v969, %v2043
      %v2046 = vadd.f32 %v2034, %v2044
      %v2047 = vadd.f32 %v2035, %v2045
      %v2048 = vadd.f32 %v2046, %v985
      %v2049 = vadd.f32 %v2047, %v985
      %v2050 = vmax.f32 %v2048, 0.0
      %v2051 = vmax.f32 %v2049, 0.0
      %2052 = vrot.lane.b32.xlu0 %v2050, 17
      %v2053 = vpop.permute.xlu0 %2052
      %2054 = vrot.lane.b32.xlu0 %v2051, 17
      %v2055 = vpop.permute.xlu0 %2054
      %v2056 = vsel %vm995, %v2053, %v2055
      %v2057 = vsel %vm995, %v2055, %v2053
      %v2058 = vmul.f32 %v2057, %v187
      %v2059 = vmul.f32 %v2056, %v188
      %v2060 = vmul.f32 %v1003, %v2058
      %v2061 = vmul.f32 %v1003, %v2059
      %v2062 = vadd.f32 %v2060, 0.0
      %v2063 = vadd.f32 %v2061, 0.0
      %2064 = vrot.lane.b32.xlu0 %v2050, 16
      %v2065 = vpop.permute.xlu0 %2064
      %2066 = vrot.lane.b32.xlu0 %v2051, 16
      %v2067 = vpop.permute.xlu0 %2066
      %v2068 = vsel %vm308, %v2065, %v2067
      %v2069 = vsel %vm308, %v2067, %v2065
      %v2070 = vmul.f32 %v2069, %v191
      %v2071 = vmul.f32 %v2068, %v192
      %v2072 = vmul.f32 %v1019, %v2070
      %v2073 = vmul.f32 %v1019, %v2071
      %v2074 = vadd.f32 %v2062, %v2072
      %v2075 = vadd.f32 %v2063, %v2073
      %2076 = vrot.lane.b32.xlu0 %v2050, 15
      %v2077 = vpop.permute.xlu0 %2076
      %2078 = vrot.lane.b32.xlu0 %v2051, 15
      %v2079 = vpop.permute.xlu0 %2078
      %v2080 = vsel %vm1029, %v2077, %v2079
      %v2081 = vsel %vm1029, %v2079, %v2077
      %v2082 = vmul.f32 %v2081, %v199
      %v2083 = vmul.f32 %v2080, %v200
      %v2084 = vmul.f32 %v1036, %v2082
      %v2085 = vmul.f32 %v1036, %v2083
      %v2086 = vadd.f32 %v2074, %v2084
      %v2087 = vadd.f32 %v2075, %v2085
      %2088 = vrot.lane.b32.xlu0 %v2050, 1
      %v2089 = vpop.permute.xlu0 %2088
      %2090 = vrot.lane.b32.xlu0 %v2051, 1
      %v2091 = vpop.permute.xlu0 %2090
      %v2092 = vsel %vm286, %v2089, %v2091
      %v2093 = vsel %vm286, %v2091, %v2089
      %v2094 = vmul.f32 %v2093, %v215
      %v2095 = vmul.f32 %v2092, %v216
      %v2096 = vmul.f32 %v1052, %v2094
      %v2097 = vmul.f32 %v1052, %v2095
      %v2098 = vadd.f32 %v2086, %v2096
      %v2099 = vadd.f32 %v2087, %v2097
      %v2100 = vmul.f32 %v1060, %v2050
      %v2101 = vmul.f32 %v1060, %v2051
      %v2102 = vadd.f32 %v2098, %v2100
      %v2103 = vadd.f32 %v2099, %v2101
      %2104 = vrot.lane.b32.xlu0 %v2050, 127
      %v2105 = vpop.permute.xlu0 %2104
      %2106 = vrot.lane.b32.xlu0 %v2051, 127
      %v2107 = vpop.permute.xlu0 %2106
      %v2108 = vsel %vm279, %v2105, %v2107
      %v2109 = vsel %vm279, %v2107, %v2105
      %v2110 = vmul.f32 %v2108, %v219
      %v2111 = vmul.f32 %v2109, %v220
      %v2112 = vmul.f32 %v1076, %v2110
      %v2113 = vmul.f32 %v1076, %v2111
      %v2114 = vadd.f32 %v2102, %v2112
      %v2115 = vadd.f32 %v2103, %v2113
      %2116 = vrot.lane.b32.xlu0 %v2050, 113
      %v2117 = vpop.permute.xlu0 %2116
      %2118 = vrot.lane.b32.xlu0 %v2051, 113
      %v2119 = vpop.permute.xlu0 %2118
      %v2120 = vsel %vm1086, %v2117, %v2119
      %v2121 = vsel %vm1086, %v2119, %v2117
      %v2122 = vmul.f32 %v2120, %v239
      %v2123 = vmul.f32 %v2121, %v240
      %v2124 = vmul.f32 %v1093, %v2122
      %v2125 = vmul.f32 %v1093, %v2123
      %v2126 = vadd.f32 %v2114, %v2124
      %v2127 = vadd.f32 %v2115, %v2125
      %2128 = vrot.lane.b32.xlu0 %v2050, 112
      %v2129 = vpop.permute.xlu0 %2128
      %2130 = vrot.lane.b32.xlu0 %v2051, 112
      %v2131 = vpop.permute.xlu0 %2130
      %v2132 = vsel %vm301, %v2129, %v2131
      %v2133 = vsel %vm301, %v2131, %v2129
      %v2134 = vmul.f32 %v2132, %v243
      %v2135 = vmul.f32 %v2133, %v244
      %v2136 = vmul.f32 %v1109, %v2134
      %v2137 = vmul.f32 %v1109, %v2135
      %v2138 = vadd.f32 %v2126, %v2136
      %v2139 = vadd.f32 %v2127, %v2137
      %2140 = vrot.lane.b32.xlu0 %v2050, 111
      %v2141 = vpop.permute.xlu0 %2140
      %2142 = vrot.lane.b32.xlu0 %v2051, 111
      %v2143 = vpop.permute.xlu0 %2142
      %v2144 = vsel %vm1119, %v2141, %v2143
      %v2145 = vsel %vm1119, %v2143, %v2141
      %v2146 = vmul.f32 %v2144, %v249
      %v2147 = vmul.f32 %v2145, %v250
      %v2148 = vmul.f32 %v1126, %v2146
      %v2149 = vmul.f32 %v1126, %v2147
      %v2150 = vadd.f32 %v2138, %v2148
      %v2151 = vadd.f32 %v2139, %v2149
      %v2152 = vadd.f32 %v2150, %v1134
      %v2153 = vadd.f32 %v2151, %v1134
      %v2154 = vmax.f32 %v2152, 0.0
      %v2155 = vmax.f32 %v2153, 0.0
      %v2156 = vmul.f32 %v2050, %v1948
      %v2157 = vmul.f32 %v2051, %v1949
      %v2158 = vmul.f32 %v2154, %v1950
      %v2159 = vmul.f32 %v2155, %v1951
      %v2160 = vlaneseq
      %v2161 = vshrl.u32 %v2160, 7
      %v2162 = vsub.s32 0, %v2161
      %v2163 = vrot.slane %v2156, %v2162
      %v2164 = vlaneseq
      %v2165 = vshrl.u32 %v2164, 7
      %v2166 = vsub.s32 0, %v2165
      %v2167 = vrot.slane %v2157, %v2166
      %v2168 = vmul.f32 %v1147, %v2163
      %v2169 = vmul.f32 %v1147, %v2167
      %v2170 = vadd.f32 %v2168, 0.0
      %v2171 = vadd.f32 %v2169, 0.0
      %v2172 = vlaneseq
      %v2173 = vshrl.u32 %v2172, 7
      %v2174 = vsub.s32 1, %v2173
      %v2175 = vrot.slane %v2156, %v2174
      %v2176 = vlaneseq
      %v2177 = vshrl.u32 %v2176, 7
      %v2178 = vsub.s32 1, %v2177
      %v2179 = vrot.slane %v2157, %v2178
      %v2180 = vmul.f32 %v1163, %v2175
      %v2181 = vmul.f32 %v1163, %v2179
      %v2182 = vadd.f32 %v2170, %v2180
      %v2183 = vadd.f32 %v2171, %v2181
      %v2184 = vlaneseq
      %v2185 = vshrl.u32 %v2184, 7
      %v2186 = vsub.s32 2, %v2185
      %v2187 = vrot.slane %v2156, %v2186
      %v2188 = vlaneseq
      %v2189 = vshrl.u32 %v2188, 7
      %v2190 = vsub.s32 2, %v2189
      %v2191 = vrot.slane %v2157, %v2190
      %v2192 = vmul.f32 %v1179, %v2187
      %v2193 = vmul.f32 %v1179, %v2191
      %v2194 = vadd.f32 %v2182, %v2192
      %v2195 = vadd.f32 %v2183, %v2193
      %v2196 = vlaneseq
      %v2197 = vshrl.u32 %v2196, 7
      %v2198 = vsub.s32 3, %v2197
      %v2199 = vrot.slane %v2156, %v2198
      %v2200 = vlaneseq
      %v2201 = vshrl.u32 %v2200, 7
      %v2202 = vsub.s32 3, %v2201
      %v2203 = vrot.slane %v2157, %v2202
      %v2204 = vmul.f32 %v1195, %v2199
      %v2205 = vmul.f32 %v1195, %v2203
      %v2206 = vadd.f32 %v2194, %v2204
      %v2207 = vadd.f32 %v2195, %v2205
      %v2208 = vlaneseq
      %v2209 = vshrl.u32 %v2208, 7
      %v2210 = vsub.s32 4, %v2209
      %v2211 = vrot.slane %v2156, %v2210
      %v2212 = vlaneseq
      %v2213 = vshrl.u32 %v2212, 7
      %v2214 = vsub.s32 4, %v2213
      %v2215 = vrot.slane %v2157, %v2214
      %v2216 = vmul.f32 %v1211, %v2211
      %v2217 = vmul.f32 %v1211, %v2215
      %v2218 = vadd.f32 %v2206, %v2216
      %v2219 = vadd.f32 %v2207, %v2217
      %v2220 = vlaneseq
      %v2221 = vshrl.u32 %v2220, 7
      %v2222 = vsub.s32 5, %v2221
      %v2223 = vrot.slane %v2156, %v2222
      %v2224 = vlaneseq
      %v2225 = vshrl.u32 %v2224, 7
      %v2226 = vsub.s32 5, %v2225
      %v2227 = vrot.slane %v2157, %v2226
      %v2228 = vmul.f32 %v1227, %v2223
      %v2229 = vmul.f32 %v1227, %v2227
      %v2230 = vadd.f32 %v2218, %v2228
      %v2231 = vadd.f32 %v2219, %v2229
      %v2232 = vlaneseq
      %v2233 = vshrl.u32 %v2232, 7
      %v2234 = vsub.s32 6, %v2233
      %v2235 = vrot.slane %v2156, %v2234
      %v2236 = vlaneseq
      %v2237 = vshrl.u32 %v2236, 7
      %v2238 = vsub.s32 6, %v2237
      %v2239 = vrot.slane %v2157, %v2238
      %v2240 = vmul.f32 %v1243, %v2235
      %v2241 = vmul.f32 %v1243, %v2239
      %v2242 = vadd.f32 %v2230, %v2240
      %v2243 = vadd.f32 %v2231, %v2241
      %v2244 = vlaneseq
      %v2245 = vshrl.u32 %v2244, 7
      %v2246 = vsub.s32 7, %v2245
      %v2247 = vrot.slane %v2156, %v2246
      %v2248 = vlaneseq
      %v2249 = vshrl.u32 %v2248, 7
      %v2250 = vsub.s32 7, %v2249
      %v2251 = vrot.slane %v2157, %v2250
      %v2252 = vmul.f32 %v1259, %v2247
      %v2253 = vmul.f32 %v1259, %v2251
      %v2254 = vadd.f32 %v2242, %v2252
      %v2255 = vadd.f32 %v2243, %v2253
      %v2256 = vlaneseq
      %v2257 = vshrl.u32 %v2256, 7
      %v2258 = vsub.s32 0, %v2257
      %v2259 = vrot.slane %v2158, %v2258
      %v2260 = vlaneseq
      %v2261 = vshrl.u32 %v2260, 7
      %v2262 = vsub.s32 0, %v2261
      %v2263 = vrot.slane %v2159, %v2262
      %v2264 = vmul.f32 %v1275, %v2259
      %v2265 = vmul.f32 %v1275, %v2263
      %v2266 = vadd.f32 %v2254, %v2264
      %v2267 = vadd.f32 %v2255, %v2265
      %v2268 = vlaneseq
      %v2269 = vshrl.u32 %v2268, 7
      %v2270 = vsub.s32 1, %v2269
      %v2271 = vrot.slane %v2158, %v2270
      %v2272 = vlaneseq
      %v2273 = vshrl.u32 %v2272, 7
      %v2274 = vsub.s32 1, %v2273
      %v2275 = vrot.slane %v2159, %v2274
      %v2276 = vmul.f32 %v1291, %v2271
      %v2277 = vmul.f32 %v1291, %v2275
      %v2278 = vadd.f32 %v2266, %v2276
      %v2279 = vadd.f32 %v2267, %v2277
      %v2280 = vlaneseq
      %v2281 = vshrl.u32 %v2280, 7
      %v2282 = vsub.s32 2, %v2281
      %v2283 = vrot.slane %v2158, %v2282
      %v2284 = vlaneseq
      %v2285 = vshrl.u32 %v2284, 7
      %v2286 = vsub.s32 2, %v2285
      %v2287 = vrot.slane %v2159, %v2286
      %v2288 = vmul.f32 %v1307, %v2283
      %v2289 = vmul.f32 %v1307, %v2287
      %v2290 = vadd.f32 %v2278, %v2288
      %v2291 = vadd.f32 %v2279, %v2289
      %v2292 = vlaneseq
      %v2293 = vshrl.u32 %v2292, 7
      %v2294 = vsub.s32 3, %v2293
      %v2295 = vrot.slane %v2158, %v2294
      %v2296 = vlaneseq
      %v2297 = vshrl.u32 %v2296, 7
      %v2298 = vsub.s32 3, %v2297
      %v2299 = vrot.slane %v2159, %v2298
      %v2300 = vmul.f32 %v1323, %v2295
      %v2301 = vmul.f32 %v1323, %v2299
      %v2302 = vadd.f32 %v2290, %v2300
      %v2303 = vadd.f32 %v2291, %v2301
      %v2304 = vlaneseq
      %v2305 = vshrl.u32 %v2304, 7
      %v2306 = vsub.s32 4, %v2305
      %v2307 = vrot.slane %v2158, %v2306
      %v2308 = vlaneseq
      %v2309 = vshrl.u32 %v2308, 7
      %v2310 = vsub.s32 4, %v2309
      %v2311 = vrot.slane %v2159, %v2310
      %v2312 = vmul.f32 %v1339, %v2307
      %v2313 = vmul.f32 %v1339, %v2311
      %v2314 = vadd.f32 %v2302, %v2312
      %v2315 = vadd.f32 %v2303, %v2313
      %v2316 = vlaneseq
      %v2317 = vshrl.u32 %v2316, 7
      %v2318 = vsub.s32 5, %v2317
      %v2319 = vrot.slane %v2158, %v2318
      %v2320 = vlaneseq
      %v2321 = vshrl.u32 %v2320, 7
      %v2322 = vsub.s32 5, %v2321
      %v2323 = vrot.slane %v2159, %v2322
      %v2324 = vmul.f32 %v1355, %v2319
      %v2325 = vmul.f32 %v1355, %v2323
      %v2326 = vadd.f32 %v2314, %v2324
      %v2327 = vadd.f32 %v2315, %v2325
      %v2328 = vlaneseq
      %v2329 = vshrl.u32 %v2328, 7
      %v2330 = vsub.s32 6, %v2329
      %v2331 = vrot.slane %v2158, %v2330
      %v2332 = vlaneseq
      %v2333 = vshrl.u32 %v2332, 7
      %v2334 = vsub.s32 6, %v2333
      %v2335 = vrot.slane %v2159, %v2334
      %v2336 = vmul.f32 %v1371, %v2331
      %v2337 = vmul.f32 %v1371, %v2335
      %v2338 = vadd.f32 %v2326, %v2336
      %v2339 = vadd.f32 %v2327, %v2337
      %v2340 = vlaneseq
      %v2341 = vshrl.u32 %v2340, 7
      %v2342 = vsub.s32 7, %v2341
      %v2343 = vrot.slane %v2158, %v2342
      %v2344 = vlaneseq
      %v2345 = vshrl.u32 %v2344, 7
      %v2346 = vsub.s32 7, %v2345
      %v2347 = vrot.slane %v2159, %v2346
      %v2348 = vmul.f32 %v1387, %v2343
      %v2349 = vmul.f32 %v1387, %v2347
      %v2350 = vadd.f32 %v2338, %v2348
      %v2351 = vadd.f32 %v2339, %v2349
      %v2352 = vadd.f32 %v2350, %v1403
      %v2353 = vadd.f32 %v2351, %v1403
      %2354 = vrot.lane.b32.xlu0 %v2352, 17
      %v2355 = vpop.permute.xlu0 %2354
      %2356 = vrot.lane.b32.xlu0 %v2353, 17
      %v2357 = vpop.permute.xlu0 %2356
      %v2358 = vsel %vm995, %v2355, %v2357
      %v2359 = vsel %vm995, %v2357, %v2355
      %v2360 = vmul.f32 %v2359, %v187
      %v2361 = vmul.f32 %v2358, %v188
      %v2362 = vmul.f32 %v1418, %v2360
      %v2363 = vmul.f32 %v1418, %v2361
      %v2364 = vadd.f32 %v2362, 0.0
      %v2365 = vadd.f32 %v2363, 0.0
      %2366 = vrot.lane.b32.xlu0 %v2352, 16
      %v2367 = vpop.permute.xlu0 %2366
      %2368 = vrot.lane.b32.xlu0 %v2353, 16
      %v2369 = vpop.permute.xlu0 %2368
      %v2370 = vsel %vm308, %v2367, %v2369
      %v2371 = vsel %vm308, %v2369, %v2367
      %v2372 = vmul.f32 %v2371, %v191
      %v2373 = vmul.f32 %v2370, %v192
      %v2374 = vmul.f32 %v1434, %v2372
      %v2375 = vmul.f32 %v1434, %v2373
      %v2376 = vadd.f32 %v2364, %v2374
      %v2377 = vadd.f32 %v2365, %v2375
      %2378 = vrot.lane.b32.xlu0 %v2352, 15
      %v2379 = vpop.permute.xlu0 %2378
      %2380 = vrot.lane.b32.xlu0 %v2353, 15
      %v2381 = vpop.permute.xlu0 %2380
      %v2382 = vsel %vm1029, %v2379, %v2381
      %v2383 = vsel %vm1029, %v2381, %v2379
      %v2384 = vmul.f32 %v2383, %v199
      %v2385 = vmul.f32 %v2382, %v200
      %v2386 = vmul.f32 %v1450, %v2384
      %v2387 = vmul.f32 %v1450, %v2385
      %v2388 = vadd.f32 %v2376, %v2386
      %v2389 = vadd.f32 %v2377, %v2387
      %2390 = vrot.lane.b32.xlu0 %v2352, 1
      %v2391 = vpop.permute.xlu0 %2390
      %2392 = vrot.lane.b32.xlu0 %v2353, 1
      %v2393 = vpop.permute.xlu0 %2392
      %v2394 = vsel %vm286, %v2391, %v2393
      %v2395 = vsel %vm286, %v2393, %v2391
      %v2396 = vmul.f32 %v2395, %v215
      %v2397 = vmul.f32 %v2394, %v216
      %v2398 = vmul.f32 %v1466, %v2396
      %v2399 = vmul.f32 %v1466, %v2397
      %v2400 = vadd.f32 %v2388, %v2398
      %v2401 = vadd.f32 %v2389, %v2399
      %v2402 = vmul.f32 %v1474, %v2352
      %v2403 = vmul.f32 %v1474, %v2353
      %v2404 = vadd.f32 %v2400, %v2402
      %v2405 = vadd.f32 %v2401, %v2403
      %2406 = vrot.lane.b32.xlu0 %v2352, 127
      %v2407 = vpop.permute.xlu0 %2406
      %2408 = vrot.lane.b32.xlu0 %v2353, 127
      %v2409 = vpop.permute.xlu0 %2408
      %v2410 = vsel %vm279, %v2407, %v2409
      %v2411 = vsel %vm279, %v2409, %v2407
      %v2412 = vmul.f32 %v2410, %v219
      %v2413 = vmul.f32 %v2411, %v220
      %v2414 = vmul.f32 %v1490, %v2412
      %v2415 = vmul.f32 %v1490, %v2413
      %v2416 = vadd.f32 %v2404, %v2414
      %v2417 = vadd.f32 %v2405, %v2415
      %2418 = vrot.lane.b32.xlu0 %v2352, 113
      %v2419 = vpop.permute.xlu0 %2418
      %2420 = vrot.lane.b32.xlu0 %v2353, 113
      %v2421 = vpop.permute.xlu0 %2420
      %v2422 = vsel %vm1086, %v2419, %v2421
      %v2423 = vsel %vm1086, %v2421, %v2419
      %v2424 = vmul.f32 %v2422, %v239
      %v2425 = vmul.f32 %v2423, %v240
      %v2426 = vmul.f32 %v1506, %v2424
      %v2427 = vmul.f32 %v1506, %v2425
      %v2428 = vadd.f32 %v2416, %v2426
      %v2429 = vadd.f32 %v2417, %v2427
      %2430 = vrot.lane.b32.xlu0 %v2352, 112
      %v2431 = vpop.permute.xlu0 %2430
      %2432 = vrot.lane.b32.xlu0 %v2353, 112
      %v2433 = vpop.permute.xlu0 %2432
      %v2434 = vsel %vm301, %v2431, %v2433
      %v2435 = vsel %vm301, %v2433, %v2431
      %v2436 = vmul.f32 %v2434, %v243
      %v2437 = vmul.f32 %v2435, %v244
      %v2438 = vmul.f32 %v1522, %v2436
      %v2439 = vmul.f32 %v1522, %v2437
      %v2440 = vadd.f32 %v2428, %v2438
      %v2441 = vadd.f32 %v2429, %v2439
      %2442 = vrot.lane.b32.xlu0 %v2352, 111
      %v2443 = vpop.permute.xlu0 %2442
      %2444 = vrot.lane.b32.xlu0 %v2353, 111
      %v2445 = vpop.permute.xlu0 %2444
      %v2446 = vsel %vm1119, %v2443, %v2445
      %v2447 = vsel %vm1119, %v2445, %v2443
      %v2448 = vmul.f32 %v2446, %v249
      %v2449 = vmul.f32 %v2447, %v250
      %v2450 = vmul.f32 %v1538, %v2448
      %v2451 = vmul.f32 %v1538, %v2449
      %v2452 = vadd.f32 %v2440, %v2450
      %v2453 = vadd.f32 %v2441, %v2451
      %v2454 = vadd.f32 %v2452, %v1546
      %v2455 = vadd.f32 %v2453, %v1546
      %v2458 = vrot.slane %v2454, 4
      %v2459 = vrot.slane %v2455, 4
      %v2462 = vsel %vm1556, %v2352, %v2458
      %v2463 = vsel %vm1556, %v2353, %v2459
      %v2464 = vadd.f32 %v2462, %v1564
      %v2465 = vadd.f32 %v2463, %v1565
      %s2466 = scalar_lea.vmem %s150, 16
      %2467 = vst [vmem:[%s2466] sm:$0xff] %v2464
      %2468 = vst [vmem:[%s2466 + $0x8] sm:$0xff] %v2465
      %s2469 = smul.u32 2, %s13
      %p2470 = scmp.lt.s32.totalorder %s2469, 3
      %s2471 = scalar_select %p2470, %s2469, 3
      %s2472 = smul.addr %s2471, 2
      %s2473 = smul.addr %s2472, 8
      %s2474 = scalar_lea.vmem %s2, %s2473
      // Predicated region
      $region29: #{ghost_bottleneck_v2_forward.1} parent=27 // pred_check
        %p2475 = pneg %p78
      $region30: #{ghost_bottleneck_v2_forward.1} parent=27 // pred_check_branch
        %2477 = sbr.rel (%p2475) target = $region32
      $region31: #{ghost_bottleneck_v2_forward.1} parent=27 // pred_region
        %s2478 = smul.u32 2, %s13
      $region32: #{ghost_bottleneck_v2_forward.1} parent=27 // pred_fallthru
        _
    $region28: #{ghost_bottleneck_v2_forward.1} parent=5 // pred_fallthru
      _
    %p2479 = scmp.le.s32.totalorder 2, %s8
    // Predicated region
    $region33: #{ghost_bottleneck_v2_forward.1} parent=5 // pred_check
      %p2480 = pneg %p2479
    $region34: #{ghost_bottleneck_v2_forward.1} parent=5 // pred_check_branch
      %2482 = sbr.rel (%p2480) target = $region36
    $region35: #{ghost_bottleneck_v2_forward.1} parent=5 // pred_region
      %s2483 = ssub.s32 %s8, 2
      // Predicated region
      $region37: #{ghost_bottleneck_v2_forward.1} parent=35 // pred_check
        %p2484 = pneg %p84
      $region38: #{ghost_bottleneck_v2_forward.1} parent=35 // pred_check_branch
        %2486 = sbr.rel (%p2484) target = $region40
      $region39: #{ghost_bottleneck_v2_forward.1} parent=35 // pred_region
        %s2487 = smul.u32 2, %s14
        %p2488 = scmp.lt.s32.totalorder %s2487, 3
        %s2489 = scalar_select %p2488, %s2487, 3
        %s2490 = smul.addr %s2489, 2
        %s2491 = smul.addr %s2490, 8
        %s2492 = scalar_lea.vmem %s2, %s2491
      $region40: #{ghost_bottleneck_v2_forward.1} parent=35 // pred_fallthru
        _
    $region36: #{ghost_bottleneck_v2_forward.1} parent=5 // pred_fallthru
      _
  $region6: #{ghost_bottleneck_v2_forward.1} parent=0 // loop_footer
    %s12 = sadd.s32 1, %s8
  $region7: #{ghost_bottleneck_v2_forward.1} parent=0 // loop_footer_branch
    %7 = sbr.rel target = $region3
  $region8: #{ghost_bottleneck_v2_forward.1} parent=0 // loop_exit
    _

</llo_original>
